<compile_context>
chip_gen: v7x
topology: tpu7x:2x2x1
jax: 0.10.0
libtpu: 0.0.40
codegen_flags: <defaults>
</compile_context>

<pallas_src>
import math

import jax
import jax.numpy as jnp
from jax.experimental import pallas as pl
from jax.experimental.pallas import tpu as pltpu

D_MODEL = 32
N_HEADS = 4
D_K = D_MODEL // N_HEADS
D_FF = 64
EPS = 1e-6

# ---- packed weight-slab layout (SLAB_ROWS x 128 lanes, f32) ----------------------------
SLAB_LANES = 4 * D_MODEL                    # 128
ROW_SA_W  = 0                               # [Wq | Wk | Wv | Wo] self-attn   (D rows)
ROW_CA_W  = ROW_SA_W + D_MODEL              # [Wq | Wk | Wv | Wo] cross-attn  (D rows)
ROW_W1    = ROW_CA_W + D_MODEL              # FFN W1 (D, D_FF)
ROW_W2    = ROW_W1 + D_MODEL                # FFN W2 (D_FF, D)
ROW_LN    = ROW_W2 + D_FF                   # [ln_a | ln_b] (3, 2D)
ROW_SA_B  = ROW_LN + 3                      # [bq | bk | bv | bo] self-attn (1, 4D)
ROW_CA_B  = ROW_SA_B + 1                    # [bq | bk | bv | bo] cross-attn (1, 4D)
ROW_FFN_B = ROW_CA_B + 1                    # [b1 | b2] (1, D_FF + D)
SLAB_ROWS = ((ROW_FFN_B + 1 + 7) // 8) * 8  # pad rows to a sublane multiple


# ------------------------------ small math helpers --------------------------------------

def _fast_recip(x):
    # EUP approximate reciprocal + one Newton step (~1e-6 rel. error): the divide
    # leaves the VALU path while the 1e-4 check vs. the exact reference still holds.
    r = pl.reciprocal(x, approx=True)
    return r * (2.0 - x * r)


def _layer_norm(x, a, b, recip):
    # torch (annotated transformer): a_2 * (x - mean) / (std + eps) + b_2, UNBIASED std
    mean = jnp.mean(x, axis=-1, keepdims=True)
    var = jnp.sum((x - mean) ** 2, axis=-1, keepdims=True) / (x.shape[-1] - 1)
    std = jnp.sqrt(var)
    return a * (x - mean) * recip(std + EPS) + b


def _attend(q, k, v, neg_mask, w_o, b_o):
    # q: (Nq, D) / k, v: (Nk, D) with heads packed head-major along lanes.
    # neg_mask: (Nq, Nk) additive (0.0 valid, -1e9 masked), precomputed in the wrapper.
    scale = 1.0 / math.sqrt(D_K)
    ctx_heads = []
    for h in range(N_HEADS):                       # static unroll, H = 4
        lo, hi = h * D_K, (h + 1) * D_K
        s = jnp.einsum("nd,md->nm", q[:, lo:hi], k[:, lo:hi],
                       preferred_element_type=jnp.float32) * scale + neg_mask
        s = s - jnp.max(s, axis=-1, keepdims=True)
        p = jnp.exp(s)
        p = p * _fast_recip(jnp.sum(p, axis=-1, keepdims=True))
        ctx_heads.append(jnp.dot(p, v[:, lo:hi], preferred_element_type=jnp.float32))
    ctx = jnp.concatenate(ctx_heads, axis=-1)      # (Nq, D), heads along lanes
    # fused output projection: ONE (Nq,D)@(D,D) matmul
    return jnp.dot(ctx, w_o, preferred_element_type=jnp.float32) + b_o


# ---------------------------------- Pallas kernel ----------------------------------------

def decoder_layer_kernel(xm_ref, mask_ref, w_ref, o_ref):
    D = D_MODEL
    nq = o_ref.shape[0]
    nk = xm_ref.shape[0] - nq

    x = xm_ref[0:nq, :]                            # flattened (B*T, D) residual stream
    m = xm_ref[nq:nq + nk, :]                      # flattened (B*S, D) encoder memory
    tgt_neg = mask_ref[:, 0:nq]                    # additive block-diagonal masks
    src_neg = mask_ref[:, nq:nq + nk]

    # ---- carve the packed weight slab with static views ---------------------------------
    sa_wqkv = w_ref[ROW_SA_W:ROW_SA_W + D, 0:3 * D]          # (D, 3D) fused [Wq|Wk|Wv]
    sa_wo   = w_ref[ROW_SA_W:ROW_SA_W + D, 3 * D:4 * D]      # (D, D)
    ca_wq   = w_ref[ROW_CA_W:ROW_CA_W + D, 0:D]
    ca_wkv  = w_ref[ROW_CA_W:ROW_CA_W + D, D:3 * D]          # (D, 2D) fused [Wk|Wv]
    ca_wo   = w_ref[ROW_CA_W:ROW_CA_W + D, 3 * D:4 * D]
    w1      = w_ref[ROW_W1:ROW_W1 + D, 0:D_FF]
    w2      = w_ref[ROW_W2:ROW_W2 + D_FF, 0:D]
    ln_a    = w_ref[ROW_LN:ROW_LN + 3, 0:D]                  # (3, D)
    ln_b    = w_ref[ROW_LN:ROW_LN + 3, D:2 * D]
    sa_bqkv = w_ref[ROW_SA_B:ROW_SA_B + 1, 0:3 * D]
    sa_bo   = w_ref[ROW_SA_B:ROW_SA_B + 1, 3 * D:4 * D]
    ca_bq   = w_ref[ROW_CA_B:ROW_CA_B + 1, 0:D]
    ca_bkv  = w_ref[ROW_CA_B:ROW_CA_B + 1, D:3 * D]
    ca_bo   = w_ref[ROW_CA_B:ROW_CA_B + 1, 3 * D:4 * D]
    b1      = w_ref[ROW_FFN_B:ROW_FFN_B + 1, 0:D_FF]
    b2      = w_ref[ROW_FFN_B:ROW_FFN_B + 1, D_FF:D_FF + D]

    # ---- sublayer 0: masked self-attention (dropout == identity) ------------------------
    y = _layer_norm(x, ln_a[0:1], ln_b[0:1], _fast_recip)
    qkv = jnp.dot(y, sa_wqkv, preferred_element_type=jnp.float32) + sa_bqkv    # (Nq, 3D)
    x = x + _attend(qkv[:, 0:D], qkv[:, D:2 * D], qkv[:, 2 * D:3 * D],
                    tgt_neg, sa_wo, sa_bo)

    # ---- sublayer 1: source (cross) attention -------------------------------------------
    y = _layer_norm(x, ln_a[1:2], ln_b[1:2], _fast_recip)
    q = jnp.dot(y, ca_wq, preferred_element_type=jnp.float32) + ca_bq          # (Nq, D)
    kv = jnp.dot(m, ca_wkv, preferred_element_type=jnp.float32) + ca_bkv       # (Nk, 2D)
    x = x + _attend(q, kv[:, 0:D], kv[:, D:2 * D], src_neg, ca_wo, ca_bo)

    # ---- sublayer 2: position-wise feed-forward  w2(relu(w1(x))) -------------------------
    y = _layer_norm(x, ln_a[2:3], ln_b[2:3], _fast_recip)
    h = jnp.maximum(jnp.dot(y, w1, preferred_element_type=jnp.float32) + b1, 0.0)
    x = x + jnp.dot(h, w2, preferred_element_type=jnp.float32) + b2

    o_ref[...] = x


# ------------------------------- wrapper (trace-time work) -------------------------------

def _pack_weights(p):
    """Pack every parameter into one lane-dense (SLAB_ROWS, 128) f32 slab."""
    L = SLAB_LANES

    def pad_lanes(a):
        return jnp.pad(a, ((0, 0), (0, L - a.shape[1])))

    sa_block = jnp.concatenate([p["sa_w"][0], p["sa_w"][1],
                                p["sa_w"][2], p["sa_w"][3]], axis=1)      # (D, 4D)
    ca_block = jnp.concatenate([p["ca_w"][0], p["ca_w"][1],
                                p["ca_w"][2], p["ca_w"][3]], axis=1)      # (D, 4D)
    w1_block = pad_lanes(p["w1"])                                         # (D, L)
    w2_block = pad_lanes(p["w2"])                                         # (D_FF, L)
    ln_block = pad_lanes(jnp.concatenate([p["ln_a"], p["ln_b"]], axis=1)) # (3, L)
    sa_b_row = p["sa_b"].reshape(1, 4 * D_MODEL)                          # (1, L)
    ca_b_row = p["ca_b"].reshape(1, 4 * D_MODEL)                          # (1, L)
    ffn_b_row = pad_lanes(jnp.concatenate([p["b1"], p["b2"]], axis=1))    # (1, L)

    slab = jnp.concatenate([sa_block, ca_block, w1_block, w2_block,
                            ln_block, sa_b_row, ca_b_row, ffn_b_row], axis=0)
    slab = jnp.pad(slab, ((0, SLAB_ROWS - slab.shape[0]), (0, 0)))
    return slab.astype(jnp.float32)


@jax.jit
def decoder_layer(x, memory, src_mask, tgt_mask, params):
    B, T, D = x.shape
    S = memory.shape[1]
    Nq, Nk = B * T, B * S

    # Flatten batch into the row axis; pack x + memory into one input (one DMA).
    xm = jnp.concatenate([x.reshape(Nq, D), memory.reshape(Nk, D)], axis=0)

    # Block-diagonal ADDITIVE masks (0 valid / -1e9 masked), built once at trace time.
    eye = jnp.eye(B, dtype=jnp.float32)
    tgt_big = (eye[:, None, :, None] * tgt_mask[:, :, None, :]).reshape(Nq, Nq)
    src_big = jnp.repeat(
        (eye[:, None, :, None] * src_mask[:, :, None, :]).reshape(B, Nk), T, axis=0)
    tgt_neg = jnp.where(tgt_big == 0.0, jnp.float32(-1e9), jnp.float32(0.0))
    src_neg = jnp.where(src_big == 0.0, jnp.float32(-1e9), jnp.float32(0.0))
    masks = jnp.concatenate([tgt_neg, src_neg], axis=1)       # (Nq, Nq + Nk)

    w_slab = _pack_weights(params)

    vmem = pl.BlockSpec(memory_space=pltpu.MemorySpace.VMEM)
    out = pl.pallas_call(
        decoder_layer_kernel,
        out_shape=jax.ShapeDtypeStruct((Nq, D), jnp.float32),
        in_specs=[vmem, vmem, vmem],
        out_specs=vmem,
    )(xm, masks, w_slab)
    return out.reshape(B, T, D)


# ----------------------------------- reference -------------------------------------------

def ref_decoder_layer(x, memory, src_mask, tgt_mask, p):
    # Pure-JAX, per-batch (vmapped), torch-structured reference with exact division —
    # also validates the block-diagonal flattening and fused-weight layout in the kernel.
    def ln(xb, a, b):
        mean = jnp.mean(xb, -1, keepdims=True)
        var = jnp.sum((xb - mean) ** 2, -1, keepdims=True) / (xb.shape[-1] - 1)
        return a * (xb - mean) / (jnp.sqrt(var) + EPS) + b

    def attn(q_in, kv_in, mask, w, b):
        q = q_in @ w[0] + b[0]
        k = kv_in @ w[1] + b[1]
        v = kv_in @ w[2] + b[2]
        qh = q.reshape(-1, N_HEADS, D_K).transpose(1, 0, 2)
        kh = k.reshape(-1, N_HEADS, D_K).transpose(1, 0, 2)
        vh = v.reshape(-1, N_HEADS, D_K).transpose(1, 0, 2)
        s = jnp.einsum("hqd,hkd->hqk", qh, kh) / math.sqrt(D_K)
        s = jnp.where(mask[None] == 0.0, -1e9, s)
        pr = jax.nn.softmax(s, axis=-1)
        ctx = jnp.einsum("hqk,hkd->hqd", pr, vh)
        ctx = ctx.transpose(1, 0, 2).reshape(-1, D_MODEL)
        return ctx @ w[3] + b[3]

    def one(xb, mb, sm, tm):
        y = ln(xb, p["ln_a"][0], p["ln_b"][0])
        x1 = xb + attn(y, y, tm, p["sa_w"], p["sa_b"])
        y = ln(x1, p["ln_a"][1], p["ln_b"][1])
        x2 = x1 + attn(y, mb, sm, p["ca_w"], p["ca_b"])
        y = ln(x2, p["ln_a"][2], p["ln_b"][2])
        h = jnp.maximum(y @ p["w1"] + p["b1"], 0.0)
        return x2 + h @ p["w2"] + p["b2"]

    return jax.vmap(one)(x, memory, src_mask, tgt_mask)


# ------------------------------------- driver --------------------------------------------

def init_params(key):
    ks = jax.random.split(key, 8)
    scale = 0.1
    return {
        # 3 SublayerConnection LayerNorms: a_2 = ones, b_2 = zeros (as in __init__)
        "ln_a": jnp.ones((3, D_MODEL), jnp.float32),
        "ln_b": jnp.zeros((3, D_MODEL), jnp.float32),
        # self-attention: [Wq, Wk, Wv, Wo] stacked, stored as (in, out)
        "sa_w": scale * jax.random.normal(ks[0], (4, D_MODEL, D_MODEL), jnp.float32),
        "sa_b": scale * jax.random.normal(ks[1], (4, D_MODEL), jnp.float32),
        # source (cross) attention
        "ca_w": scale * jax.random.normal(ks[2], (4, D_MODEL, D_MODEL), jnp.float32),
        "ca_b": scale * jax.random.normal(ks[3], (4, D_MODEL), jnp.float32),
        # position-wise feed-forward
        "w1": scale * jax.random.normal(ks[4], (D_MODEL, D_FF), jnp.float32),
        "b1": scale * jax.random.normal(ks[5], (1, D_FF), jnp.float32),
        "w2": scale * jax.random.normal(ks[6], (D_FF, D_MODEL), jnp.float32),
        "b2": scale * jax.random.normal(ks[7], (1, D_MODEL), jnp.float32),
    }


if __name__ == "__main__":
    B, T, S = 2, 8, 8
    key = jax.random.PRNGKey(0)
    k_x, k_m, k_p = jax.random.split(key, 3)

    x = jax.random.normal(k_x, (B, T, D_MODEL), jnp.float32)
    memory = jax.random.normal(k_m, (B, S, D_MODEL), jnp.float32)

    # tgt_mask: causal mask (B, T, T); src_mask: padding mask (B, 1, S)
    causal = jnp.tril(jnp.ones((T, T), jnp.float32))
    tgt_mask = jnp.broadcast_to(causal, (B, T, T))
    src_mask = jnp.ones((B, 1, S), jnp.float32)
    src_mask = src_mask.at[1, 0, S - 2:].set(0.0)   # mask last 2 src positions in batch 1

    params = init_params(k_p)

    out = decoder_layer(x, memory, src_mask, tgt_mask, params)
    out = jax.block_until_ready(out)

    ref = ref_decoder_layer(x, memory, src_mask, tgt_mask, params)
    assert out.shape == (B, T, D_MODEL)
    assert jnp.allclose(out, ref, atol=1e-4, rtol=1e-4), "Pallas output != reference"

    print("KERNEL_OK")
</pallas_src>

<mosaic_0001>
module attributes {stable_mosaic.version = 11 : i64} {
  func.func @decoder_layer_kernel(%arg0: memref<32x32xf32, #tpu.memory_space<vmem>>, %arg1: memref<16x32xf32, #tpu.memory_space<vmem>>, %arg2: memref<168x128xf32, #tpu.memory_space<vmem>>, %arg3: memref<16x32xf32, #tpu.memory_space<vmem>>) attributes {dimension_semantics = [], scalar_prefetch = 0 : i64, scratch_operands = 0 : i64, tpu.core_type = #tpu.core_type<tc>} {
    %c0 = arith.constant 0 : index
    %c0_0 = arith.constant 0 : index
    %0 = vector.load %arg0[%c0, %c0_0] : memref<32x32xf32, #tpu.memory_space<vmem>>, vector<16x32xf32>
    %c16 = arith.constant 16 : index
    %c0_1 = arith.constant 0 : index
    %1 = vector.load %arg0[%c16, %c0_1] : memref<32x32xf32, #tpu.memory_space<vmem>>, vector<16x32xf32>
    %c0_2 = arith.constant 0 : index
    %c0_3 = arith.constant 0 : index
    %2 = vector.load %arg1[%c0_2, %c0_3] : memref<16x32xf32, #tpu.memory_space<vmem>>, vector<16x16xf32>
    %c0_4 = arith.constant 0 : index
    %c16_5 = arith.constant 16 : index
    %3 = vector.load %arg1[%c0_4, %c16_5] : memref<16x32xf32, #tpu.memory_space<vmem>>, vector<16x16xf32>
    %c0_6 = arith.constant 0 : index
    %c0_7 = arith.constant 0 : index
    %4 = vector.load %arg2[%c0_6, %c0_7] : memref<168x128xf32, #tpu.memory_space<vmem>>, vector<32x96xf32>
    %c0_8 = arith.constant 0 : index
    %c96 = arith.constant 96 : index
    %5 = vector.load %arg2[%c0_8, %c96] : memref<168x128xf32, #tpu.memory_space<vmem>>, vector<32x32xf32>
    %c32 = arith.constant 32 : index
    %c0_9 = arith.constant 0 : index
    %6 = vector.load %arg2[%c32, %c0_9] : memref<168x128xf32, #tpu.memory_space<vmem>>, vector<32x32xf32>
    %c32_10 = arith.constant 32 : index
    %c32_11 = arith.constant 32 : index
    %7 = vector.load %arg2[%c32_10, %c32_11] : memref<168x128xf32, #tpu.memory_space<vmem>>, vector<32x64xf32>
    %c32_12 = arith.constant 32 : index
    %c96_13 = arith.constant 96 : index
    %8 = vector.load %arg2[%c32_12, %c96_13] : memref<168x128xf32, #tpu.memory_space<vmem>>, vector<32x32xf32>
    %c64 = arith.constant 64 : index
    %c0_14 = arith.constant 0 : index
    %9 = vector.load %arg2[%c64, %c0_14] : memref<168x128xf32, #tpu.memory_space<vmem>>, vector<32x64xf32>
    %c96_15 = arith.constant 96 : index
    %c0_16 = arith.constant 0 : index
    %10 = vector.load %arg2[%c96_15, %c0_16] : memref<168x128xf32, #tpu.memory_space<vmem>>, vector<64x32xf32>
    %c160 = arith.constant 160 : index
    %c0_17 = arith.constant 0 : index
    %11 = vector.load %arg2[%c160, %c0_17] : memref<168x128xf32, #tpu.memory_space<vmem>>, vector<3x32xf32>
    %c160_18 = arith.constant 160 : index
    %c32_19 = arith.constant 32 : index
    %12 = vector.load %arg2[%c160_18, %c32_19] : memref<168x128xf32, #tpu.memory_space<vmem>>, vector<3x32xf32>
    %c163 = arith.constant 163 : index
    %c0_20 = arith.constant 0 : index
    %13 = vector.load %arg2[%c163, %c0_20] : memref<168x128xf32, #tpu.memory_space<vmem>>, vector<1x96xf32>
    %c163_21 = arith.constant 163 : index
    %c96_22 = arith.constant 96 : index
    %14 = vector.load %arg2[%c163_21, %c96_22] : memref<168x128xf32, #tpu.memory_space<vmem>>, vector<1x32xf32>
    %c164 = arith.constant 164 : index
    %c0_23 = arith.constant 0 : index
    %15 = vector.load %arg2[%c164, %c0_23] : memref<168x128xf32, #tpu.memory_space<vmem>>, vector<1x32xf32>
    %c164_24 = arith.constant 164 : index
    %c32_25 = arith.constant 32 : index
    %16 = vector.load %arg2[%c164_24, %c32_25] : memref<168x128xf32, #tpu.memory_space<vmem>>, vector<1x64xf32>
    %c164_26 = arith.constant 164 : index
    %c96_27 = arith.constant 96 : index
    %17 = vector.load %arg2[%c164_26, %c96_27] : memref<168x128xf32, #tpu.memory_space<vmem>>, vector<1x32xf32>
    %c165 = arith.constant 165 : index
    %c0_28 = arith.constant 0 : index
    %18 = vector.load %arg2[%c165, %c0_28] : memref<168x128xf32, #tpu.memory_space<vmem>>, vector<1x64xf32>
    %c165_29 = arith.constant 165 : index
    %c64_30 = arith.constant 64 : index
    %19 = vector.load %arg2[%c165_29, %c64_30] : memref<168x128xf32, #tpu.memory_space<vmem>>, vector<1x32xf32>
    %20 = vector.extract_strided_slice %11 {offsets = [0, 0], sizes = [1, 32], strides = [1, 1]} : vector<3x32xf32> to vector<1x32xf32>
    %21 = vector.extract_strided_slice %12 {offsets = [0, 0], sizes = [1, 32], strides = [1, 1]} : vector<3x32xf32> to vector<1x32xf32>
    %cst = arith.constant dense<0.000000e+00> : vector<16xf32>
    %22 = vector.multi_reduction <add>, %0, %cst [1] : vector<16x32xf32> to vector<16xf32>
    %23 = vector.shape_cast %22 : vector<16xf32> to vector<16x1xf32>
    %cst_31 = arith.constant 3.200000e+01 : f32
    %24 = vector.broadcast %cst_31 : f32 to vector<16x1xf32>
    %25 = arith.divf %23, %24 : vector<16x1xf32>
    %26 = vector.broadcast %25 : vector<16x1xf32> to vector<16x32xf32>
    %27 = arith.subf %0, %26 : vector<16x32xf32>
    %28 = arith.mulf %27, %27 : vector<16x32xf32>
    %cst_32 = arith.constant dense<0.000000e+00> : vector<16xf32>
    %29 = vector.multi_reduction <add>, %28, %cst_32 [1] : vector<16x32xf32> to vector<16xf32>
    %30 = vector.shape_cast %29 : vector<16xf32> to vector<16x1xf32>
    %cst_33 = arith.constant 3.100000e+01 : f32
    %31 = vector.broadcast %cst_33 : f32 to vector<16x1xf32>
    %32 = arith.divf %30, %31 : vector<16x1xf32>
    %33 = math.sqrt %32 : vector<16x1xf32>
    %34 = vector.broadcast %25 : vector<16x1xf32> to vector<16x32xf32>
    %35 = arith.subf %0, %34 : vector<16x32xf32>
    %36 = vector.broadcast %20 : vector<1x32xf32> to vector<16x32xf32>
    %37 = arith.mulf %36, %35 : vector<16x32xf32>
    %cst_34 = arith.constant 9.99999997E-7 : f32
    %38 = vector.broadcast %cst_34 : f32 to vector<16x1xf32>
    %39 = arith.addf %33, %38 : vector<16x1xf32>
    %40 = tpu.reciprocal %39 {approx = true} : vector<16x1xf32> -> vector<16x1xf32>
    %41 = arith.mulf %39, %40 : vector<16x1xf32>
    %cst_35 = arith.constant 2.000000e+00 : f32
    %42 = vector.broadcast %cst_35 : f32 to vector<16x1xf32>
    %43 = arith.subf %42, %41 : vector<16x1xf32>
    %44 = arith.mulf %40, %43 : vector<16x1xf32>
    %45 = vector.broadcast %44 : vector<16x1xf32> to vector<16x32xf32>
    %46 = arith.mulf %37, %45 : vector<16x32xf32>
    %47 = vector.broadcast %21 : vector<1x32xf32> to vector<16x32xf32>
    %48 = arith.addf %46, %47 : vector<16x32xf32>
    %cst_36 = arith.constant dense<0.000000e+00> : vector<16x96xf32>
    %49 = tpu.matmul %48, %4, %cst_36 {dimension_numbers = #tpu.dot_dimension_numbers<[1], [0], [0], [1], [0, 0, 1, 1], [], []>} : vector<16x32xf32>, vector<32x96xf32>, vector<16x96xf32> -> vector<16x96xf32>
    %50 = vector.broadcast %13 : vector<1x96xf32> to vector<16x96xf32>
    %51 = arith.addf %49, %50 : vector<16x96xf32>
    %52 = vector.extract_strided_slice %51 {offsets = [0, 0], sizes = [16, 32], strides = [1, 1]} : vector<16x96xf32> to vector<16x32xf32>
    %53 = vector.extract_strided_slice %51 {offsets = [0, 32], sizes = [16, 32], strides = [1, 1]} : vector<16x96xf32> to vector<16x32xf32>
    %54 = vector.extract_strided_slice %51 {offsets = [0, 64], sizes = [16, 32], strides = [1, 1]} : vector<16x96xf32> to vector<16x32xf32>
    %55 = vector.extract_strided_slice %52 {offsets = [0, 0], sizes = [16, 8], strides = [1, 1]} : vector<16x32xf32> to vector<16x8xf32>
    %56 = vector.extract_strided_slice %53 {offsets = [0, 0], sizes = [16, 8], strides = [1, 1]} : vector<16x32xf32> to vector<16x8xf32>
    "tpu.trace_start"() <{level = 10 : i32, message = "nd,md->nm"}> : () -> ()
    %cst_37 = arith.constant dense<0.000000e+00> : vector<16x16xf32>
    %57 = tpu.matmul %55, %56, %cst_37 {dimension_numbers = #tpu.dot_dimension_numbers<[1], [1], [0], [0], [0, 0, 1, 0], [], []>} : vector<16x8xf32>, vector<16x8xf32>, vector<16x16xf32> -> vector<16x16xf32>
    "tpu.trace_stop"() : () -> ()
    %cst_38 = arith.constant 0.353553385 : f32
    %58 = vector.broadcast %cst_38 : f32 to vector<16x16xf32>
    %59 = arith.mulf %57, %58 : vector<16x16xf32>
    %60 = arith.addf %59, %2 : vector<16x16xf32>
    %cst_39 = arith.constant dense<0xFF800000> : vector<16xf32>
    %61 = vector.multi_reduction <maximumf>, %60, %cst_39 [1] : vector<16x16xf32> to vector<16xf32>
    %62 = vector.shape_cast %61 : vector<16xf32> to vector<16x1xf32>
    %63 = vector.broadcast %62 : vector<16x1xf32> to vector<16x16xf32>
    %64 = arith.subf %60, %63 : vector<16x16xf32>
    %65 = math.exp %64 : vector<16x16xf32>
    %cst_40 = arith.constant dense<0.000000e+00> : vector<16xf32>
    %66 = vector.multi_reduction <add>, %65, %cst_40 [1] : vector<16x16xf32> to vector<16xf32>
    %67 = vector.shape_cast %66 : vector<16xf32> to vector<16x1xf32>
    %68 = tpu.reciprocal %67 {approx = true} : vector<16x1xf32> -> vector<16x1xf32>
    %69 = arith.mulf %67, %68 : vector<16x1xf32>
    %cst_41 = arith.constant 2.000000e+00 : f32
    %70 = vector.broadcast %cst_41 : f32 to vector<16x1xf32>
    %71 = arith.subf %70, %69 : vector<16x1xf32>
    %72 = arith.mulf %68, %71 : vector<16x1xf32>
    %73 = vector.broadcast %72 : vector<16x1xf32> to vector<16x16xf32>
    %74 = arith.mulf %65, %73 : vector<16x16xf32>
    %75 = vector.extract_strided_slice %54 {offsets = [0, 0], sizes = [16, 8], strides = [1, 1]} : vector<16x32xf32> to vector<16x8xf32>
    %cst_42 = arith.constant dense<0.000000e+00> : vector<16x8xf32>
    %76 = tpu.matmul %74, %75, %cst_42 {dimension_numbers = #tpu.dot_dimension_numbers<[1], [0], [0], [1], [0, 0, 1, 1], [], []>} : vector<16x16xf32>, vector<16x8xf32>, vector<16x8xf32> -> vector<16x8xf32>
    %77 = vector.extract_strided_slice %52 {offsets = [0, 8], sizes = [16, 8], strides = [1, 1]} : vector<16x32xf32> to vector<16x8xf32>
    %78 = vector.extract_strided_slice %53 {offsets = [0, 8], sizes = [16, 8], strides = [1, 1]} : vector<16x32xf32> to vector<16x8xf32>
    "tpu.trace_start"() <{level = 10 : i32, message = "nd,md->nm"}> : () -> ()
    %cst_43 = arith.constant dense<0.000000e+00> : vector<16x16xf32>
    %79 = tpu.matmul %77, %78, %cst_43 {dimension_numbers = #tpu.dot_dimension_numbers<[1], [1], [0], [0], [0, 0, 1, 0], [], []>} : vector<16x8xf32>, vector<16x8xf32>, vector<16x16xf32> -> vector<16x16xf32>
    "tpu.trace_stop"() : () -> ()
    %cst_44 = arith.constant 0.353553385 : f32
    %80 = vector.broadcast %cst_44 : f32 to vector<16x16xf32>
    %81 = arith.mulf %79, %80 : vector<16x16xf32>
    %82 = arith.addf %81, %2 : vector<16x16xf32>
    %cst_45 = arith.constant dense<0xFF800000> : vector<16xf32>
    %83 = vector.multi_reduction <maximumf>, %82, %cst_45 [1] : vector<16x16xf32> to vector<16xf32>
    %84 = vector.shape_cast %83 : vector<16xf32> to vector<16x1xf32>
    %85 = vector.broadcast %84 : vector<16x1xf32> to vector<16x16xf32>
    %86 = arith.subf %82, %85 : vector<16x16xf32>
    %87 = math.exp %86 : vector<16x16xf32>
    %cst_46 = arith.constant dense<0.000000e+00> : vector<16xf32>
    %88 = vector.multi_reduction <add>, %87, %cst_46 [1] : vector<16x16xf32> to vector<16xf32>
    %89 = vector.shape_cast %88 : vector<16xf32> to vector<16x1xf32>
    %90 = tpu.reciprocal %89 {approx = true} : vector<16x1xf32> -> vector<16x1xf32>
    %91 = arith.mulf %89, %90 : vector<16x1xf32>
    %cst_47 = arith.constant 2.000000e+00 : f32
    %92 = vector.broadcast %cst_47 : f32 to vector<16x1xf32>
    %93 = arith.subf %92, %91 : vector<16x1xf32>
    %94 = arith.mulf %90, %93 : vector<16x1xf32>
    %95 = vector.broadcast %94 : vector<16x1xf32> to vector<16x16xf32>
    %96 = arith.mulf %87, %95 : vector<16x16xf32>
    %97 = vector.extract_strided_slice %54 {offsets = [0, 8], sizes = [16, 8], strides = [1, 1]} : vector<16x32xf32> to vector<16x8xf32>
    %cst_48 = arith.constant dense<0.000000e+00> : vector<16x8xf32>
    %98 = tpu.matmul %96, %97, %cst_48 {dimension_numbers = #tpu.dot_dimension_numbers<[1], [0], [0], [1], [0, 0, 1, 1], [], []>} : vector<16x16xf32>, vector<16x8xf32>, vector<16x8xf32> -> vector<16x8xf32>
    %99 = vector.extract_strided_slice %52 {offsets = [0, 16], sizes = [16, 8], strides = [1, 1]} : vector<16x32xf32> to vector<16x8xf32>
    %100 = vector.extract_strided_slice %53 {offsets = [0, 16], sizes = [16, 8], strides = [1, 1]} : vector<16x32xf32> to vector<16x8xf32>
    "tpu.trace_start"() <{level = 10 : i32, message = "nd,md->nm"}> : () -> ()
    %cst_49 = arith.constant dense<0.000000e+00> : vector<16x16xf32>
    %101 = tpu.matmul %99, %100, %cst_49 {dimension_numbers = #tpu.dot_dimension_numbers<[1], [1], [0], [0], [0, 0, 1, 0], [], []>} : vector<16x8xf32>, vector<16x8xf32>, vector<16x16xf32> -> vector<16x16xf32>
    "tpu.trace_stop"() : () -> ()
    %cst_50 = arith.constant 0.353553385 : f32
    %102 = vector.broadcast %cst_50 : f32 to vector<16x16xf32>
    %103 = arith.mulf %101, %102 : vector<16x16xf32>
    %104 = arith.addf %103, %2 : vector<16x16xf32>
    %cst_51 = arith.constant dense<0xFF800000> : vector<16xf32>
    %105 = vector.multi_reduction <maximumf>, %104, %cst_51 [1] : vector<16x16xf32> to vector<16xf32>
    %106 = vector.shape_cast %105 : vector<16xf32> to vector<16x1xf32>
    %107 = vector.broadcast %106 : vector<16x1xf32> to vector<16x16xf32>
    %108 = arith.subf %104, %107 : vector<16x16xf32>
    %109 = math.exp %108 : vector<16x16xf32>
    %cst_52 = arith.constant dense<0.000000e+00> : vector<16xf32>
    %110 = vector.multi_reduction <add>, %109, %cst_52 [1] : vector<16x16xf32> to vector<16xf32>
    %111 = vector.shape_cast %110 : vector<16xf32> to vector<16x1xf32>
    %112 = tpu.reciprocal %111 {approx = true} : vector<16x1xf32> -> vector<16x1xf32>
    %113 = arith.mulf %111, %112 : vector<16x1xf32>
    %cst_53 = arith.constant 2.000000e+00 : f32
    %114 = vector.broadcast %cst_53 : f32 to vector<16x1xf32>
    %115 = arith.subf %114, %113 : vector<16x1xf32>
    %116 = arith.mulf %112, %115 : vector<16x1xf32>
    %117 = vector.broadcast %116 : vector<16x1xf32> to vector<16x16xf32>
    %118 = arith.mulf %109, %117 : vector<16x16xf32>
    %119 = vector.extract_strided_slice %54 {offsets = [0, 16], sizes = [16, 8], strides = [1, 1]} : vector<16x32xf32> to vector<16x8xf32>
    %cst_54 = arith.constant dense<0.000000e+00> : vector<16x8xf32>
    %120 = tpu.matmul %118, %119, %cst_54 {dimension_numbers = #tpu.dot_dimension_numbers<[1], [0], [0], [1], [0, 0, 1, 1], [], []>} : vector<16x16xf32>, vector<16x8xf32>, vector<16x8xf32> -> vector<16x8xf32>
    %121 = vector.extract_strided_slice %52 {offsets = [0, 24], sizes = [16, 8], strides = [1, 1]} : vector<16x32xf32> to vector<16x8xf32>
    %122 = vector.extract_strided_slice %53 {offsets = [0, 24], sizes = [16, 8], strides = [1, 1]} : vector<16x32xf32> to vector<16x8xf32>
    "tpu.trace_start"() <{level = 10 : i32, message = "nd,md->nm"}> : () -> ()
    %cst_55 = arith.constant dense<0.000000e+00> : vector<16x16xf32>
    %123 = tpu.matmul %121, %122, %cst_55 {dimension_numbers = #tpu.dot_dimension_numbers<[1], [1], [0], [0], [0, 0, 1, 0], [], []>} : vector<16x8xf32>, vector<16x8xf32>, vector<16x16xf32> -> vector<16x16xf32>
    "tpu.trace_stop"() : () -> ()
    %cst_56 = arith.constant 0.353553385 : f32
    %124 = vector.broadcast %cst_56 : f32 to vector<16x16xf32>
    %125 = arith.mulf %123, %124 : vector<16x16xf32>
    %126 = arith.addf %125, %2 : vector<16x16xf32>
    %cst_57 = arith.constant dense<0xFF800000> : vector<16xf32>
    %127 = vector.multi_reduction <maximumf>, %126, %cst_57 [1] : vector<16x16xf32> to vector<16xf32>
    %128 = vector.shape_cast %127 : vector<16xf32> to vector<16x1xf32>
    %129 = vector.broadcast %128 : vector<16x1xf32> to vector<16x16xf32>
    %130 = arith.subf %126, %129 : vector<16x16xf32>
    %131 = math.exp %130 : vector<16x16xf32>
    %cst_58 = arith.constant dense<0.000000e+00> : vector<16xf32>
    %132 = vector.multi_reduction <add>, %131, %cst_58 [1] : vector<16x16xf32> to vector<16xf32>
    %133 = vector.shape_cast %132 : vector<16xf32> to vector<16x1xf32>
    %134 = tpu.reciprocal %133 {approx = true} : vector<16x1xf32> -> vector<16x1xf32>
    %135 = arith.mulf %133, %134 : vector<16x1xf32>
    %cst_59 = arith.constant 2.000000e+00 : f32
    %136 = vector.broadcast %cst_59 : f32 to vector<16x1xf32>
    %137 = arith.subf %136, %135 : vector<16x1xf32>
    %138 = arith.mulf %134, %137 : vector<16x1xf32>
    %139 = vector.broadcast %138 : vector<16x1xf32> to vector<16x16xf32>
    %140 = arith.mulf %131, %139 : vector<16x16xf32>
    %141 = vector.extract_strided_slice %54 {offsets = [0, 24], sizes = [16, 8], strides = [1, 1]} : vector<16x32xf32> to vector<16x8xf32>
    %cst_60 = arith.constant dense<0.000000e+00> : vector<16x8xf32>
    %142 = tpu.matmul %140, %141, %cst_60 {dimension_numbers = #tpu.dot_dimension_numbers<[1], [0], [0], [1], [0, 0, 1, 1], [], []>} : vector<16x16xf32>, vector<16x8xf32>, vector<16x8xf32> -> vector<16x8xf32>
    %143 = tpu.concatenate %76, %98, %120, %142 in 1 : vector<16x8xf32>, vector<16x8xf32>, vector<16x8xf32>, vector<16x8xf32> -> vector<16x32xf32>
    %cst_61 = arith.constant dense<0.000000e+00> : vector<16x32xf32>
    %144 = tpu.matmul %143, %5, %cst_61 {dimension_numbers = #tpu.dot_dimension_numbers<[1], [0], [0], [1], [0, 0, 1, 1], [], []>} : vector<16x32xf32>, vector<32x32xf32>, vector<16x32xf32> -> vector<16x32xf32>
    %145 = vector.broadcast %14 : vector<1x32xf32> to vector<16x32xf32>
    %146 = arith.addf %144, %145 : vector<16x32xf32>
    %147 = arith.addf %0, %146 : vector<16x32xf32>
    %148 = vector.extract_strided_slice %11 {offsets = [1, 0], sizes = [1, 32], strides = [1, 1]} : vector<3x32xf32> to vector<1x32xf32>
    %149 = vector.extract_strided_slice %12 {offsets = [1, 0], sizes = [1, 32], strides = [1, 1]} : vector<3x32xf32> to vector<1x32xf32>
    %cst_62 = arith.constant dense<0.000000e+00> : vector<16xf32>
    %150 = vector.multi_reduction <add>, %147, %cst_62 [1] : vector<16x32xf32> to vector<16xf32>
    %151 = vector.shape_cast %150 : vector<16xf32> to vector<16x1xf32>
    %cst_63 = arith.constant 3.200000e+01 : f32
    %152 = vector.broadcast %cst_63 : f32 to vector<16x1xf32>
    %153 = arith.divf %151, %152 : vector<16x1xf32>
    %154 = vector.broadcast %153 : vector<16x1xf32> to vector<16x32xf32>
    %155 = arith.subf %147, %154 : vector<16x32xf32>
    %156 = arith.mulf %155, %155 : vector<16x32xf32>
    %cst_64 = arith.constant dense<0.000000e+00> : vector<16xf32>
    %157 = vector.multi_reduction <add>, %156, %cst_64 [1] : vector<16x32xf32> to vector<16xf32>
    %158 = vector.shape_cast %157 : vector<16xf32> to vector<16x1xf32>
    %cst_65 = arith.constant 3.100000e+01 : f32
    %159 = vector.broadcast %cst_65 : f32 to vector<16x1xf32>
    %160 = arith.divf %158, %159 : vector<16x1xf32>
    %161 = math.sqrt %160 : vector<16x1xf32>
    %162 = vector.broadcast %153 : vector<16x1xf32> to vector<16x32xf32>
    %163 = arith.subf %147, %162 : vector<16x32xf32>
    %164 = vector.broadcast %148 : vector<1x32xf32> to vector<16x32xf32>
    %165 = arith.mulf %164, %163 : vector<16x32xf32>
    %cst_66 = arith.constant 9.99999997E-7 : f32
    %166 = vector.broadcast %cst_66 : f32 to vector<16x1xf32>
    %167 = arith.addf %161, %166 : vector<16x1xf32>
    %168 = tpu.reciprocal %167 {approx = true} : vector<16x1xf32> -> vector<16x1xf32>
    %169 = arith.mulf %167, %168 : vector<16x1xf32>
    %cst_67 = arith.constant 2.000000e+00 : f32
    %170 = vector.broadcast %cst_67 : f32 to vector<16x1xf32>
    %171 = arith.subf %170, %169 : vector<16x1xf32>
    %172 = arith.mulf %168, %171 : vector<16x1xf32>
    %173 = vector.broadcast %172 : vector<16x1xf32> to vector<16x32xf32>
    %174 = arith.mulf %165, %173 : vector<16x32xf32>
    %175 = vector.broadcast %149 : vector<1x32xf32> to vector<16x32xf32>
    %176 = arith.addf %174, %175 : vector<16x32xf32>
    %cst_68 = arith.constant dense<0.000000e+00> : vector<16x32xf32>
    %177 = tpu.matmul %176, %6, %cst_68 {dimension_numbers = #tpu.dot_dimension_numbers<[1], [0], [0], [1], [0, 0, 1, 1], [], []>} : vector<16x32xf32>, vector<32x32xf32>, vector<16x32xf32> -> vector<16x32xf32>
    %178 = vector.broadcast %15 : vector<1x32xf32> to vector<16x32xf32>
    %179 = arith.addf %177, %178 : vector<16x32xf32>
    %cst_69 = arith.constant dense<0.000000e+00> : vector<16x64xf32>
    %180 = tpu.matmul %1, %7, %cst_69 {dimension_numbers = #tpu.dot_dimension_numbers<[1], [0], [0], [1], [0, 0, 1, 1], [], []>} : vector<16x32xf32>, vector<32x64xf32>, vector<16x64xf32> -> vector<16x64xf32>
    %181 = vector.broadcast %16 : vector<1x64xf32> to vector<16x64xf32>
    %182 = arith.addf %180, %181 : vector<16x64xf32>
    %183 = vector.extract_strided_slice %182 {offsets = [0, 0], sizes = [16, 32], strides = [1, 1]} : vector<16x64xf32> to vector<16x32xf32>
    %184 = vector.extract_strided_slice %182 {offsets = [0, 32], sizes = [16, 32], strides = [1, 1]} : vector<16x64xf32> to vector<16x32xf32>
    %185 = vector.extract_strided_slice %179 {offsets = [0, 0], sizes = [16, 8], strides = [1, 1]} : vector<16x32xf32> to vector<16x8xf32>
    %186 = vector.extract_strided_slice %183 {offsets = [0, 0], sizes = [16, 8], strides = [1, 1]} : vector<16x32xf32> to vector<16x8xf32>
    "tpu.trace_start"() <{level = 10 : i32, message = "nd,md->nm"}> : () -> ()
    %cst_70 = arith.constant dense<0.000000e+00> : vector<16x16xf32>
    %187 = tpu.matmul %185, %186, %cst_70 {dimension_numbers = #tpu.dot_dimension_numbers<[1], [1], [0], [0], [0, 0, 1, 0], [], []>} : vector<16x8xf32>, vector<16x8xf32>, vector<16x16xf32> -> vector<16x16xf32>
    "tpu.trace_stop"() : () -> ()
    %cst_71 = arith.constant 0.353553385 : f32
    %188 = vector.broadcast %cst_71 : f32 to vector<16x16xf32>
    %189 = arith.mulf %187, %188 : vector<16x16xf32>
    %190 = arith.addf %189, %3 : vector<16x16xf32>
    %cst_72 = arith.constant dense<0xFF800000> : vector<16xf32>
    %191 = vector.multi_reduction <maximumf>, %190, %cst_72 [1] : vector<16x16xf32> to vector<16xf32>
    %192 = vector.shape_cast %191 : vector<16xf32> to vector<16x1xf32>
    %193 = vector.broadcast %192 : vector<16x1xf32> to vector<16x16xf32>
    %194 = arith.subf %190, %193 : vector<16x16xf32>
    %195 = math.exp %194 : vector<16x16xf32>
    %cst_73 = arith.constant dense<0.000000e+00> : vector<16xf32>
    %196 = vector.multi_reduction <add>, %195, %cst_73 [1] : vector<16x16xf32> to vector<16xf32>
    %197 = vector.shape_cast %196 : vector<16xf32> to vector<16x1xf32>
    %198 = tpu.reciprocal %197 {approx = true} : vector<16x1xf32> -> vector<16x1xf32>
    %199 = arith.mulf %197, %198 : vector<16x1xf32>
    %cst_74 = arith.constant 2.000000e+00 : f32
    %200 = vector.broadcast %cst_74 : f32 to vector<16x1xf32>
    %201 = arith.subf %200, %199 : vector<16x1xf32>
    %202 = arith.mulf %198, %201 : vector<16x1xf32>
    %203 = vector.broadcast %202 : vector<16x1xf32> to vector<16x16xf32>
    %204 = arith.mulf %195, %203 : vector<16x16xf32>
    %205 = vector.extract_strided_slice %184 {offsets = [0, 0], sizes = [16, 8], strides = [1, 1]} : vector<16x32xf32> to vector<16x8xf32>
    %cst_75 = arith.constant dense<0.000000e+00> : vector<16x8xf32>
    %206 = tpu.matmul %204, %205, %cst_75 {dimension_numbers = #tpu.dot_dimension_numbers<[1], [0], [0], [1], [0, 0, 1, 1], [], []>} : vector<16x16xf32>, vector<16x8xf32>, vector<16x8xf32> -> vector<16x8xf32>
    %207 = vector.extract_strided_slice %179 {offsets = [0, 8], sizes = [16, 8], strides = [1, 1]} : vector<16x32xf32> to vector<16x8xf32>
    %208 = vector.extract_strided_slice %183 {offsets = [0, 8], sizes = [16, 8], strides = [1, 1]} : vector<16x32xf32> to vector<16x8xf32>
    "tpu.trace_start"() <{level = 10 : i32, message = "nd,md->nm"}> : () -> ()
    %cst_76 = arith.constant dense<0.000000e+00> : vector<16x16xf32>
    %209 = tpu.matmul %207, %208, %cst_76 {dimension_numbers = #tpu.dot_dimension_numbers<[1], [1], [0], [0], [0, 0, 1, 0], [], []>} : vector<16x8xf32>, vector<16x8xf32>, vector<16x16xf32> -> vector<16x16xf32>
    "tpu.trace_stop"() : () -> ()
    %cst_77 = arith.constant 0.353553385 : f32
    %210 = vector.broadcast %cst_77 : f32 to vector<16x16xf32>
    %211 = arith.mulf %209, %210 : vector<16x16xf32>
    %212 = arith.addf %211, %3 : vector<16x16xf32>
    %cst_78 = arith.constant dense<0xFF800000> : vector<16xf32>
    %213 = vector.multi_reduction <maximumf>, %212, %cst_78 [1] : vector<16x16xf32> to vector<16xf32>
    %214 = vector.shape_cast %213 : vector<16xf32> to vector<16x1xf32>
    %215 = vector.broadcast %214 : vector<16x1xf32> to vector<16x16xf32>
    %216 = arith.subf %212, %215 : vector<16x16xf32>
    %217 = math.exp %216 : vector<16x16xf32>
    %cst_79 = arith.constant dense<0.000000e+00> : vector<16xf32>
    %218 = vector.multi_reduction <add>, %217, %cst_79 [1] : vector<16x16xf32> to vector<16xf32>
    %219 = vector.shape_cast %218 : vector<16xf32> to vector<16x1xf32>
    %220 = tpu.reciprocal %219 {approx = true} : vector<16x1xf32> -> vector<16x1xf32>
    %221 = arith.mulf %219, %220 : vector<16x1xf32>
    %cst_80 = arith.constant 2.000000e+00 : f32
    %222 = vector.broadcast %cst_80 : f32 to vector<16x1xf32>
    %223 = arith.subf %222, %221 : vector<16x1xf32>
    %224 = arith.mulf %220, %223 : vector<16x1xf32>
    %225 = vector.broadcast %224 : vector<16x1xf32> to vector<16x16xf32>
    %226 = arith.mulf %217, %225 : vector<16x16xf32>
    %227 = vector.extract_strided_slice %184 {offsets = [0, 8], sizes = [16, 8], strides = [1, 1]} : vector<16x32xf32> to vector<16x8xf32>
    %cst_81 = arith.constant dense<0.000000e+00> : vector<16x8xf32>
    %228 = tpu.matmul %226, %227, %cst_81 {dimension_numbers = #tpu.dot_dimension_numbers<[1], [0], [0], [1], [0, 0, 1, 1], [], []>} : vector<16x16xf32>, vector<16x8xf32>, vector<16x8xf32> -> vector<16x8xf32>
    %229 = vector.extract_strided_slice %179 {offsets = [0, 16], sizes = [16, 8], strides = [1, 1]} : vector<16x32xf32> to vector<16x8xf32>
    %230 = vector.extract_strided_slice %183 {offsets = [0, 16], sizes = [16, 8], strides = [1, 1]} : vector<16x32xf32> to vector<16x8xf32>
    "tpu.trace_start"() <{level = 10 : i32, message = "nd,md->nm"}> : () -> ()
    %cst_82 = arith.constant dense<0.000000e+00> : vector<16x16xf32>
    %231 = tpu.matmul %229, %230, %cst_82 {dimension_numbers = #tpu.dot_dimension_numbers<[1], [1], [0], [0], [0, 0, 1, 0], [], []>} : vector<16x8xf32>, vector<16x8xf32>, vector<16x16xf32> -> vector<16x16xf32>
    "tpu.trace_stop"() : () -> ()
    %cst_83 = arith.constant 0.353553385 : f32
    %232 = vector.broadcast %cst_83 : f32 to vector<16x16xf32>
    %233 = arith.mulf %231, %232 : vector<16x16xf32>
    %234 = arith.addf %233, %3 : vector<16x16xf32>
    %cst_84 = arith.constant dense<0xFF800000> : vector<16xf32>
    %235 = vector.multi_reduction <maximumf>, %234, %cst_84 [1] : vector<16x16xf32> to vector<16xf32>
    %236 = vector.shape_cast %235 : vector<16xf32> to vector<16x1xf32>
    %237 = vector.broadcast %236 : vector<16x1xf32> to vector<16x16xf32>
    %238 = arith.subf %234, %237 : vector<16x16xf32>
    %239 = math.exp %238 : vector<16x16xf32>
    %cst_85 = arith.constant dense<0.000000e+00> : vector<16xf32>
    %240 = vector.multi_reduction <add>, %239, %cst_85 [1] : vector<16x16xf32> to vector<16xf32>
    %241 = vector.shape_cast %240 : vector<16xf32> to vector<16x1xf32>
    %242 = tpu.reciprocal %241 {approx = true} : vector<16x1xf32> -> vector<16x1xf32>
    %243 = arith.mulf %241, %242 : vector<16x1xf32>
    %cst_86 = arith.constant 2.000000e+00 : f32
    %244 = vector.broadcast %cst_86 : f32 to vector<16x1xf32>
    %245 = arith.subf %244, %243 : vector<16x1xf32>
    %246 = arith.mulf %242, %245 : vector<16x1xf32>
    %247 = vector.broadcast %246 : vector<16x1xf32> to vector<16x16xf32>
    %248 = arith.mulf %239, %247 : vector<16x16xf32>
    %249 = vector.extract_strided_slice %184 {offsets = [0, 16], sizes = [16, 8], strides = [1, 1]} : vector<16x32xf32> to vector<16x8xf32>
    %cst_87 = arith.constant dense<0.000000e+00> : vector<16x8xf32>
    %250 = tpu.matmul %248, %249, %cst_87 {dimension_numbers = #tpu.dot_dimension_numbers<[1], [0], [0], [1], [0, 0, 1, 1], [], []>} : vector<16x16xf32>, vector<16x8xf32>, vector<16x8xf32> -> vector<16x8xf32>
    %251 = vector.extract_strided_slice %179 {offsets = [0, 24], sizes = [16, 8], strides = [1, 1]} : vector<16x32xf32> to vector<16x8xf32>
    %252 = vector.extract_strided_slice %183 {offsets = [0, 24], sizes = [16, 8], strides = [1, 1]} : vector<16x32xf32> to vector<16x8xf32>
    "tpu.trace_start"() <{level = 10 : i32, message = "nd,md->nm"}> : () -> ()
    %cst_88 = arith.constant dense<0.000000e+00> : vector<16x16xf32>
    %253 = tpu.matmul %251, %252, %cst_88 {dimension_numbers = #tpu.dot_dimension_numbers<[1], [1], [0], [0], [0, 0, 1, 0], [], []>} : vector<16x8xf32>, vector<16x8xf32>, vector<16x16xf32> -> vector<16x16xf32>
    "tpu.trace_stop"() : () -> ()
    %cst_89 = arith.constant 0.353553385 : f32
    %254 = vector.broadcast %cst_89 : f32 to vector<16x16xf32>
    %255 = arith.mulf %253, %254 : vector<16x16xf32>
    %256 = arith.addf %255, %3 : vector<16x16xf32>
    %cst_90 = arith.constant dense<0xFF800000> : vector<16xf32>
    %257 = vector.multi_reduction <maximumf>, %256, %cst_90 [1] : vector<16x16xf32> to vector<16xf32>
    %258 = vector.shape_cast %257 : vector<16xf32> to vector<16x1xf32>
    %259 = vector.broadcast %258 : vector<16x1xf32> to vector<16x16xf32>
    %260 = arith.subf %256, %259 : vector<16x16xf32>
    %261 = math.exp %260 : vector<16x16xf32>
    %cst_91 = arith.constant dense<0.000000e+00> : vector<16xf32>
    %262 = vector.multi_reduction <add>, %261, %cst_91 [1] : vector<16x16xf32> to vector<16xf32>
    %263 = vector.shape_cast %262 : vector<16xf32> to vector<16x1xf32>
    %264 = tpu.reciprocal %263 {approx = true} : vector<16x1xf32> -> vector<16x1xf32>
    %265 = arith.mulf %263, %264 : vector<16x1xf32>
    %cst_92 = arith.constant 2.000000e+00 : f32
    %266 = vector.broadcast %cst_92 : f32 to vector<16x1xf32>
    %267 = arith.subf %266, %265 : vector<16x1xf32>
    %268 = arith.mulf %264, %267 : vector<16x1xf32>
    %269 = vector.broadcast %268 : vector<16x1xf32> to vector<16x16xf32>
    %270 = arith.mulf %261, %269 : vector<16x16xf32>
    %271 = vector.extract_strided_slice %184 {offsets = [0, 24], sizes = [16, 8], strides = [1, 1]} : vector<16x32xf32> to vector<16x8xf32>
    %cst_93 = arith.constant dense<0.000000e+00> : vector<16x8xf32>
    %272 = tpu.matmul %270, %271, %cst_93 {dimension_numbers = #tpu.dot_dimension_numbers<[1], [0], [0], [1], [0, 0, 1, 1], [], []>} : vector<16x16xf32>, vector<16x8xf32>, vector<16x8xf32> -> vector<16x8xf32>
    %273 = tpu.concatenate %206, %228, %250, %272 in 1 : vector<16x8xf32>, vector<16x8xf32>, vector<16x8xf32>, vector<16x8xf32> -> vector<16x32xf32>
    %cst_94 = arith.constant dense<0.000000e+00> : vector<16x32xf32>
    %274 = tpu.matmul %273, %8, %cst_94 {dimension_numbers = #tpu.dot_dimension_numbers<[1], [0], [0], [1], [0, 0, 1, 1], [], []>} : vector<16x32xf32>, vector<32x32xf32>, vector<16x32xf32> -> vector<16x32xf32>
    %275 = vector.broadcast %17 : vector<1x32xf32> to vector<16x32xf32>
    %276 = arith.addf %274, %275 : vector<16x32xf32>
    %277 = arith.addf %147, %276 : vector<16x32xf32>
    %278 = vector.extract_strided_slice %11 {offsets = [2, 0], sizes = [1, 32], strides = [1, 1]} : vector<3x32xf32> to vector<1x32xf32>
    %279 = vector.extract_strided_slice %12 {offsets = [2, 0], sizes = [1, 32], strides = [1, 1]} : vector<3x32xf32> to vector<1x32xf32>
    %cst_95 = arith.constant dense<0.000000e+00> : vector<16xf32>
    %280 = vector.multi_reduction <add>, %277, %cst_95 [1] : vector<16x32xf32> to vector<16xf32>
    %281 = vector.shape_cast %280 : vector<16xf32> to vector<16x1xf32>
    %cst_96 = arith.constant 3.200000e+01 : f32
    %282 = vector.broadcast %cst_96 : f32 to vector<16x1xf32>
    %283 = arith.divf %281, %282 : vector<16x1xf32>
    %284 = vector.broadcast %283 : vector<16x1xf32> to vector<16x32xf32>
    %285 = arith.subf %277, %284 : vector<16x32xf32>
    %286 = arith.mulf %285, %285 : vector<16x32xf32>
    %cst_97 = arith.constant dense<0.000000e+00> : vector<16xf32>
    %287 = vector.multi_reduction <add>, %286, %cst_97 [1] : vector<16x32xf32> to vector<16xf32>
    %288 = vector.shape_cast %287 : vector<16xf32> to vector<16x1xf32>
    %cst_98 = arith.constant 3.100000e+01 : f32
    %289 = vector.broadcast %cst_98 : f32 to vector<16x1xf32>
    %290 = arith.divf %288, %289 : vector<16x1xf32>
    %291 = math.sqrt %290 : vector<16x1xf32>
    %292 = vector.broadcast %283 : vector<16x1xf32> to vector<16x32xf32>
    %293 = arith.subf %277, %292 : vector<16x32xf32>
    %294 = vector.broadcast %278 : vector<1x32xf32> to vector<16x32xf32>
    %295 = arith.mulf %294, %293 : vector<16x32xf32>
    %cst_99 = arith.constant 9.99999997E-7 : f32
    %296 = vector.broadcast %cst_99 : f32 to vector<16x1xf32>
    %297 = arith.addf %291, %296 : vector<16x1xf32>
    %298 = tpu.reciprocal %297 {approx = true} : vector<16x1xf32> -> vector<16x1xf32>
    %299 = arith.mulf %297, %298 : vector<16x1xf32>
    %cst_100 = arith.constant 2.000000e+00 : f32
    %300 = vector.broadcast %cst_100 : f32 to vector<16x1xf32>
    %301 = arith.subf %300, %299 : vector<16x1xf32>
    %302 = arith.mulf %298, %301 : vector<16x1xf32>
    %303 = vector.broadcast %302 : vector<16x1xf32> to vector<16x32xf32>
    %304 = arith.mulf %295, %303 : vector<16x32xf32>
    %305 = vector.broadcast %279 : vector<1x32xf32> to vector<16x32xf32>
    %306 = arith.addf %304, %305 : vector<16x32xf32>
    %cst_101 = arith.constant dense<0.000000e+00> : vector<16x64xf32>
    %307 = tpu.matmul %306, %9, %cst_101 {dimension_numbers = #tpu.dot_dimension_numbers<[1], [0], [0], [1], [0, 0, 1, 1], [], []>} : vector<16x32xf32>, vector<32x64xf32>, vector<16x64xf32> -> vector<16x64xf32>
    %308 = vector.broadcast %18 : vector<1x64xf32> to vector<16x64xf32>
    %309 = arith.addf %307, %308 : vector<16x64xf32>
    %cst_102 = arith.constant 0.000000e+00 : f32
    %310 = vector.broadcast %cst_102 : f32 to vector<16x64xf32>
    %311 = arith.maximumf %309, %310 : vector<16x64xf32>
    %cst_103 = arith.constant dense<0.000000e+00> : vector<16x32xf32>
    %312 = tpu.matmul %311, %10, %cst_103 {dimension_numbers = #tpu.dot_dimension_numbers<[1], [0], [0], [1], [0, 0, 1, 1], [], []>} : vector<16x64xf32>, vector<64x32xf32>, vector<16x32xf32> -> vector<16x32xf32>
    %313 = arith.addf %277, %312 : vector<16x32xf32>
    %314 = vector.broadcast %19 : vector<1x32xf32> to vector<16x32xf32>
    %315 = arith.addf %313, %314 : vector<16x32xf32>
    %c0_104 = arith.constant 0 : index
    %c0_105 = arith.constant 0 : index
    %316 = vector.load %arg3[%c0_104, %c0_105] : memref<16x32xf32, #tpu.memory_space<vmem>>, vector<16x32xf32>
    tpu.vector_store %arg3[%c0_104, %c0_105], %315 {strides = array<i32>} : memref<16x32xf32, #tpu.memory_space<vmem>>, vector<16x32xf32>,
    return
  }
}

</mosaic_0001>

<llo_original>
// kernel: decoder_layer.1
$region0: #{decoder_layer.1}
  #allocation0 [shape = 'u32[]', space=smem, size = 0x4, offset = 0x4, fixed_abs, tag = 'smem constant byte address 0x4 - core index']
  #allocation1 [shape = 'u32[144,128]{1,0:T(1,128)}', space=vmem, size = 0x12000, scoped, tag = 'internal scratch']
  %s0 = inlined_call_operand.vmem [shape: f32[32,32], index: 0, kind: input, shape index: {}]
  %s1 = inlined_call_operand.vmem [shape: f32[16,32], index: 1, kind: input, shape index: {}]
  %s2 = inlined_call_operand.vmem [shape: f32[168,128], index: 2, kind: input, shape index: {}]
  %s3 = inlined_call_operand.hbm [shape: f32[16,32], index: 3, kind: output, shape index: {}]
  %s4 = sld [smem:[#allocation0]]
  $region22: #{decoder_layer.1} parent=0
    _
  %s6 = ssub.s32 1, %s4
  %s7 = scalar_select 0, %s6, %s4
  $region1: #{decoder_layer.1} parent=0
    #allocation2 [shape = 'u8[8192]{0}', space=vmem, size = 0x2000, scoped, tag = 'output window, operand 0, single buffered']
    #allocation3 [shape = 's32[1]{0}', space=sflag, size = 0x4, scoped, tag = 'scoped memory for decoder_layer.1']
    %8 = vsyncpa [#allocation3], 0
    // Predicated region
    $region2: #{decoder_layer.1} parent=1 // pred_check
      _
    $region3: #{decoder_layer.1} parent=1 // pred_check_branch
      %10 = sbr.rel (0) target = $region5
    $region4: #{decoder_layer.1} parent=1 // pred_region
      _
    $region5: #{decoder_layer.1} parent=1 // pred_fallthru
      _
    // Predicated region
    $region6: #{decoder_layer.1} parent=1 // pred_check
      _
    $region7: #{decoder_layer.1} parent=1 // pred_check_branch
      %12 = sbr.rel (0) target = $region9
    $region8: #{decoder_layer.1} parent=1 // pred_region
      _
    $region9: #{decoder_layer.1} parent=1 // pred_fallthru
      _
    // Predicated region
    $region10: #{decoder_layer.1} parent=1 // pred_check
      _
    $region11: #{decoder_layer.1} parent=1 // pred_check_branch
      %14 = sbr.rel (0) target = $region13
    $region12: #{decoder_layer.1} parent=1 // pred_region
      _
    $region13: #{decoder_layer.1} parent=1 // pred_fallthru
      _
    %v15 = vld [vmem:[%s0] sm:$0xff]
    %v16 = vld [vmem:[%s0 + $0x8] sm:$0xff]
    %v17 = vld [vmem:[%s0 + $0x10] sm:$0xff]
    %v18 = vld [vmem:[%s0 + $0x18] sm:$0xff]
    %v19 = vld [vmem:[%s1] sm:$0xff]
    %v20 = vld [vmem:[%s1 + $0x8] sm:$0xff]
    %v21 = vld [vmem:[%s2] sm:$0xff]
    %v22 = vld [vmem:[%s2 + $0x8] sm:$0xff]
    %v23 = vld [vmem:[%s2 + $0x10] sm:$0xff]
    %v24 = vld [vmem:[%s2 + $0x18] sm:$0xff]
    %v25 = vld [vmem:[%s2 + $0x20] sm:$0xff]
    %v26 = vld [vmem:[%s2 + $0x28] sm:$0xff]
    %v27 = vld [vmem:[%s2 + $0x30] sm:$0xff]
    %v28 = vld [vmem:[%s2 + $0x38] sm:$0xff]
    %v29 = vld [vmem:[%s2 + $0x40] sm:$0xff]
    %v30 = vld [vmem:[%s2 + $0x48] sm:$0xff]
    %v31 = vld [vmem:[%s2 + $0x50] sm:$0xff]
    %v32 = vld [vmem:[%s2 + $0x58] sm:$0xff]
    %v33 = vld [vmem:[%s2 + $0x60] sm:$0xff]
    %v34 = vld [vmem:[%s2 + $0x68] sm:$0xff]
    %v35 = vld [vmem:[%s2 + $0x70] sm:$0xff]
    %v36 = vld [vmem:[%s2 + $0x78] sm:$0xff]
    %v37 = vld [vmem:[%s2 + $0x80] sm:$0xff]
    %v38 = vld [vmem:[%s2 + $0x88] sm:$0xff]
    %v39 = vld [vmem:[%s2 + $0x90] sm:$0xff]
    %v40 = vld [vmem:[%s2 + $0x98] sm:$0xff]
    %v41 = vld [vmem:[%s2 + $0xa0] sm:$0x7]
    %v42 = vld [vmem:[%s2 + $0xa3] sm:$0x1]
    %v43 = vld [vmem:[%s2 + $0xa4] sm:$0x1]
    %v44 = vld [vmem:[%s2 + $0xa5] sm:$0x1]
    %vm45 = vcmask 261120
    %v46 = vsel %vm45, %v15, 0.0
    %47 = vadd.xlane.f32.xlu0 %v46
    %v48 = vpop.xlane.xlu0 %47
    %v49 = vsel %vm45, %v16, 0.0
    %50 = vadd.xlane.f32.xlu0 %v49
    %v51 = vpop.xlane.xlu0 %50
    %v52 = vrcp.pop 32.0
    %v53 = vmul.f32 %v48, %v52
    %v54 = vmul.f32 %v51, %v52
    %v55 = vsub.f32 %v15, %v53
    %v56 = vsub.f32 %v16, %v54
    %v57 = vmul.f32 %v55, %v55
    %v58 = vmul.f32 %v56, %v56
    %v59 = vsel %vm45, %v57, 0.0
    %60 = vadd.xlane.f32.xlu0 %v59
    %v61 = vpop.xlane.xlu0 %60
    %v62 = vsel %vm45, %v58, 0.0
    %63 = vadd.xlane.f32.xlu0 %v62
    %v64 = vpop.xlane.xlu0 %63
    %v65 = vrcp.pop 31.0
    %v66 = vmul.f32 %v61, %v65
    %v67 = vmul.f32 %v64, %v65
    %v68 = vrsqrt.pop %v66
    %v69 = vmul.f32 %v66, %v68
    %vm70 = vcmp.eq.f32.partialorder %v66, inf
    %v71 = vsel %vm70, %v66, %v69
    %vm72 = vcmp.eq.f32.partialorder %v66, 0.0
    %v73 = vand.u32 %v66, 2147483648
    %v74 = vsel %vm72, %v73, %v71
    %v75 = vrsqrt.pop %v67
    %v76 = vmul.f32 %v67, %v75
    %vm77 = vcmp.eq.f32.partialorder %v67, inf
    %v78 = vsel %vm77, %v67, %v76
    %vm79 = vcmp.eq.f32.partialorder %v67, 0.0
    %v80 = vand.u32 %v67, 2147483648
    %v81 = vsel %vm79, %v80, %v78
    %v82 = vlaneseq
    %v83 = vshrl.u32 %v82, 7
    %v84 = vsub.s32 0, %v83
    %v85 = vrot.slane %v41, %v84
    %v86 = vmul.f32 %v85, %v55
    %v87 = vmul.f32 %v85, %v56
    %v88 = vadd.f32 %v74, 1e-06
    %v89 = vadd.f32 %v81, 1e-06
    %v90 = vrcp.pop %v88
    %v91 = vrcp.pop %v89
    %v92 = vmul.f32 %v88, %v90
    %v93 = vmul.f32 %v89, %v91
    %v94 = vsub.f32 2.0, %v92
    %v95 = vsub.f32 2.0, %v93
    %v96 = vmul.f32 %v90, %v94
    %v97 = vmul.f32 %v91, %v95
    %v98 = vmul.f32 %v86, %v96
    %v99 = vmul.f32 %v87, %v97
    %101 = vrot.lane.b32.xlu0 %v85, 96
    %v102 = vpop.permute.xlu0 %101
    %v104 = vadd.f32 %v98, %v102
    %v105 = vadd.f32 %v99, %v102
    %v106 = vlaneseq
    %v107 = vshrl.u32 %v106, 7
    %v108 = vsub.s32 0, %v107
    %v109 = vrot.slane %v42, %v108
    %v111 = vsel %vm45, %v104, 0
    %v114 = vsel %vm45, %v105, 0
    %116 = vmatprep.subr.mxu0 0.0
    %117 = vmatpush1.msra.mxu0 %v21
    %118 = vmatprep.subr.mxu0 0.0
    %119 = vmatpush1.msra.mxu0 %v22
    %120 = vmatprep.subr.mxu0 0.0
    %121 = vmatpush1.msra.mxu0 %v23
    %122 = vmatprep.subr.mxu0 0.0
    %123 = vmatpush1.msra.mxu0 %v24
    %124 = vmatprep.subr.mxu0 0.0
    %125 = vmatpush1.msra.mxu0 0.0
    %126 = vmatprep.subr.mxu0 0.0
    %127 = vmatpush1.msra.mxu0 0.0
    %128 = vmatprep.subr.mxu0 0.0
    %129 = vmatpush1.msra.mxu0 0.0
    %130 = vmatprep.subr.mxu0 0.0
    %131 = vmatpush1.msra.mxu0 0.0
    %132 = vmatprep.subr.mxu0 0.0
    %133 = vmatpush1.msra.mxu0 0.0
    %134 = vmatprep.subr.mxu0 0.0
    %135 = vmatpush1.msra.mxu0 0.0
    %136 = vmatprep.subr.mxu0 0.0
    %137 = vmatpush1.msra.mxu0 0.0
    %138 = vmatprep.subr.mxu0 0.0
    %139 = vmatpush1.msra.mxu0 0.0
    %140 = vmatprep.subr.mxu0 0.0
    %141 = vmatpush1.msra.mxu0 0.0
    %142 = vmatprep.subr.mxu0 0.0
    %143 = vmatpush1.msra.mxu0 0.0
    %144 = vmatprep.subr.mxu0 0.0
    %145 = vmatpush1.msra.mxu0 0.0
    %146 = vmatprep.subr.mxu0 0.0
    %147 = vmatpush1.msra.mxu0 0.0
    %148 = vmatprep.subr.mxu0 0.0
    %149 = vmatpush1.msra.mxu0 0.0
    %150 = vmatprep.subr.mxu0 0.0
    %151 = vmatpush1.msra.mxu0 0.0
    %152 = vmatprep.subr.mxu0 0.0
    %153 = vmatpush1.msra.mxu0 0.0
    %154 = vmatprep.subr.mxu0 0.0
    %155 = vmatpush1.msra.mxu0 0.0
    %156 = vmatprep.subr.mxu0 0.0
    %157 = vmatpush1.msra.mxu0 0.0
    %158 = vmatprep.subr.mxu0 0.0
    %159 = vmatpush1.msra.mxu0 0.0
    %160 = vmatprep.subr.mxu0 0.0
    %161 = vmatpush1.msra.mxu0 0.0
    %162 = vmatprep.subr.mxu0 0.0
    %163 = vmatpush1.msra.mxu0 0.0
    %164 = vmatprep.subr.mxu0 0.0
    %165 = vmatpush1.msra.mxu0 0.0
    %166 = vmatprep.subr.mxu0 0.0
    %167 = vmatpush1.msra.mxu0 0.0
    %168 = vmatprep.subr.mxu0 0.0
    %169 = vmatpush1.msra.mxu0 0.0
    %170 = vmatprep.subr.mxu0 0.0
    %171 = vmatpush1.msra.mxu0 0.0
    %172 = vmatprep.subr.mxu0 0.0
    %173 = vmatpush1.msra.mxu0 0.0
    %174 = vmatprep.subr.mxu0 0.0
    %175 = vmatpush1.msra.mxu0 0.0
    %176 = vmatprep.subr.mxu0 0.0
    %177 = vmatpush1.msra.mxu0 0.0
    %178 = vmatprep.subr.mxu0 0.0
    %179 = vmatpush1.msra.mxu0 0.0
    %180 = vmatprep.mubr.f32.mxu0 0.0
    %181 = vmatmul.mubr.f32.gmra.mrb[0].mxu0 %v111
    %v182 = vpop.f32.mrb[0].mxu0
    %v183 = vadd.f32 %v109, %v182
    %v184 = vpop.f32.mrb[0].mxu0
    %185 = vmatprep.mubr.f32.mxu0 0.0
    %186 = vmatmul.mubr.f32.gmra.mrb[0].mxu0 %v114
    %v187 = vpop.f32.mrb[0].mxu0
    %v188 = vadd.f32 %v109, %v187
    %v189 = vpop.f32.mrb[0].mxu0
    %190 = vdwg.mxu0
    %193 = vrot.lane.b32.xlu0 %v183, 96
    %v194 = vpop.permute.xlu0 %193
    %195 = vrot.lane.b32.xlu0 %v188, 96
    %v196 = vpop.permute.xlu0 %195
    %vm197 = vcmask 64512
    %v198 = vsel %vm197, %v183, 0
    %v200 = vsel %vm197, %v188, 0
    %v202 = vsel %vm197, %v194, 0
    %v204 = vsel %vm197, %v196, 0
    %206 = vmatprep.subr.mxu0 0.0
    %207 = vmatpush1.xpose.msra.mxu0 %v202
    %208 = vmatprep.subr.mxu0 0.0
    %209 = vmatpush1.xpose.msra.mxu0 %v204
    %210 = vmatprep.subr.mxu0 0.0
    %211 = vmatpush1.xpose.msra.mxu0 0.0
    %212 = vmatprep.subr.mxu0 0.0
    %213 = vmatpush1.xpose.msra.mxu0 0.0
    %214 = vmatprep.subr.mxu0 0.0
    %215 = vmatpush1.xpose.msra.mxu0 0.0
    %216 = vmatprep.subr.mxu0 0.0
    %217 = vmatpush1.xpose.msra.mxu0 0.0
    %218 = vmatprep.subr.mxu0 0.0
    %219 = vmatpush1.xpose.msra.mxu0 0.0
    %220 = vmatprep.subr.mxu0 0.0
    %221 = vmatpush1.xpose.msra.mxu0 0.0
    %222 = vmatprep.subr.mxu0 0.0
    %223 = vmatpush1.xpose.msra.mxu0 0.0
    %224 = vmatprep.subr.mxu0 0.0
    %225 = vmatpush1.xpose.msra.mxu0 0.0
    %226 = vmatprep.subr.mxu0 0.0
    %227 = vmatpush1.xpose.msra.mxu0 0.0
    %228 = vmatprep.subr.mxu0 0.0
    %229 = vmatpush1.xpose.msra.mxu0 0.0
    %230 = vmatprep.subr.mxu0 0.0
    %231 = vmatpush1.xpose.msra.mxu0 0.0
    %232 = vmatprep.subr.mxu0 0.0
    %233 = vmatpush1.xpose.msra.mxu0 0.0
    %234 = vmatprep.subr.mxu0 0.0
    %235 = vmatpush1.xpose.msra.mxu0 0.0
    %236 = vmatprep.subr.mxu0 0.0
    %237 = vmatpush1.xpose.msra.mxu0 0.0
    %238 = vmatprep.subr.mxu0 0.0
    %239 = vmatpush1.xpose.msra.mxu0 0.0
    %240 = vmatprep.subr.mxu0 0.0
    %241 = vmatpush1.xpose.msra.mxu0 0.0
    %242 = vmatprep.subr.mxu0 0.0
    %243 = vmatpush1.xpose.msra.mxu0 0.0
    %244 = vmatprep.subr.mxu0 0.0
    %245 = vmatpush1.xpose.msra.mxu0 0.0
    %246 = vmatprep.subr.mxu0 0.0
    %247 = vmatpush1.xpose.msra.mxu0 0.0
    %248 = vmatprep.subr.mxu0 0.0
    %249 = vmatpush1.xpose.msra.mxu0 0.0
    %250 = vmatprep.subr.mxu0 0.0
    %251 = vmatpush1.xpose.msra.mxu0 0.0
    %252 = vmatprep.subr.mxu0 0.0
    %253 = vmatpush1.xpose.msra.mxu0 0.0
    %254 = vmatprep.subr.mxu0 0.0
    %255 = vmatpush1.xpose.msra.mxu0 0.0
    %256 = vmatprep.subr.mxu0 0.0
    %257 = vmatpush1.xpose.msra.mxu0 0.0
    %258 = vmatprep.subr.mxu0 0.0
    %259 = vmatpush1.xpose.msra.mxu0 0.0
    %260 = vmatprep.subr.mxu0 0.0
    %261 = vmatpush1.xpose.msra.mxu0 0.0
    %262 = vmatprep.subr.mxu0 0.0
    %263 = vmatpush1.xpose.msra.mxu0 0.0
    %264 = vmatprep.subr.mxu0 0.0
    %265 = vmatpush1.xpose.msra.mxu0 0.0
    %266 = vmatprep.subr.mxu0 0.0
    %267 = vmatpush1.xpose.msra.mxu0 0.0
    %268 = vmatprep.subr.mxu0 0.0
    %269 = vmatpush1.xpose.msra.mxu0 0.0
    %270 = vmatprep.mubr.f32.mxu0 0.0
    %271 = vmatmul.mubr.f32.gmra.mrb[0].mxu0 %v198
    %v272 = vpop.f32.mrb[0].mxu0
    %v273 = vadd.f32 0.0, %v272
    %v274 = vpop.f32.mrb[0].mxu0
    %275 = vmatprep.mubr.f32.mxu0 0.0
    %276 = vmatmul.mubr.f32.gmra.mrb[0].mxu0 %v200
    %v277 = vpop.f32.mrb[0].mxu0
    %v278 = vadd.f32 0.0, %v277
    %v279 = vpop.f32.mrb[0].mxu0
    %280 = vdwg.mxu0
    %v281 = vmul.f32 %v273, 0.35355338
    %v282 = vmul.f32 %v278, 0.35355338
    %v283 = vadd.f32 %v281, %v19
    %v284 = vadd.f32 %v282, %v20
    %vm285 = vcmask 130048
    %v286 = vsel %vm285, %v283, -inf
    %287 = vmax.xlane.f32.xlu0 %v286
    %v288 = vpop.xlane.xlu0 %287
    %v289 = vsel %vm285, %v284, -inf
    %290 = vmax.xlane.f32.xlu0 %v289
    %v291 = vpop.xlane.xlu0 %290
    %v292 = vsub.f32 %v283, %v288
    %v293 = vsub.f32 %v284, %v291
    %v294 = vmul.f32 %v292, 1.442695
    %v295 = vpow.pop %v294
    %v296 = vmul.f32 %v293, 1.442695
    %v297 = vpow.pop %v296
    %v298 = vsel %vm285, %v295, 0.0
    %299 = vadd.xlane.f32.xlu0 %v298
    %v300 = vpop.xlane.xlu0 %299
    %v301 = vsel %vm285, %v297, 0.0
    %302 = vadd.xlane.f32.xlu0 %v301
    %v303 = vpop.xlane.xlu0 %302
    %v304 = vrcp.pop %v300
    %v305 = vrcp.pop %v303
    %v306 = vmul.f32 %v300, %v304
    %v307 = vmul.f32 %v303, %v305
    %v308 = vsub.f32 2.0, %v306
    %v309 = vsub.f32 2.0, %v307
    %v310 = vmul.f32 %v304, %v308
    %v311 = vmul.f32 %v305, %v309
    %v312 = vmul.f32 %v295, %v310
    %v313 = vmul.f32 %v297, %v311
    %314 = vrot.lane.b32.xlu0 %v183, 64
    %v315 = vpop.permute.xlu0 %314
    %316 = vrot.lane.b32.xlu0 %v188, 64
    %v317 = vpop.permute.xlu0 %316
    %v321 = vsel %vm285, %v312, 0
    %v324 = vsel %vm285, %v313, 0
    %326 = vmatprep.subr.mxu0 0.0
    %327 = vmatpush1.msra.mxu0 %v315
    %328 = vmatprep.subr.mxu0 0.0
    %329 = vmatpush1.msra.mxu0 %v317
    %330 = vmatprep.subr.mxu0 0.0
    %331 = vmatpush1.msra.mxu0 0.0
    %332 = vmatprep.subr.mxu0 0.0
    %333 = vmatpush1.msra.mxu0 0.0
    %334 = vmatprep.subr.mxu0 0.0
    %335 = vmatpush1.msra.mxu0 0.0
    %336 = vmatprep.subr.mxu0 0.0
    %337 = vmatpush1.msra.mxu0 0.0
    %338 = vmatprep.subr.mxu0 0.0
    %339 = vmatpush1.msra.mxu0 0.0
    %340 = vmatprep.subr.mxu0 0.0
    %341 = vmatpush1.msra.mxu0 0.0
    %342 = vmatprep.subr.mxu0 0.0
    %343 = vmatpush1.msra.mxu0 0.0
    %344 = vmatprep.subr.mxu0 0.0
    %345 = vmatpush1.msra.mxu0 0.0
    %346 = vmatprep.subr.mxu0 0.0
    %347 = vmatpush1.msra.mxu0 0.0
    %348 = vmatprep.subr.mxu0 0.0
    %349 = vmatpush1.msra.mxu0 0.0
    %350 = vmatprep.subr.mxu0 0.0
    %351 = vmatpush1.msra.mxu0 0.0
    %352 = vmatprep.subr.mxu0 0.0
    %353 = vmatpush1.msra.mxu0 0.0
    %354 = vmatprep.subr.mxu0 0.0
    %355 = vmatpush1.msra.mxu0 0.0
    %356 = vmatprep.subr.mxu0 0.0
    %357 = vmatpush1.msra.mxu0 0.0
    %358 = vmatprep.subr.mxu0 0.0
    %359 = vmatpush1.msra.mxu0 0.0
    %360 = vmatprep.subr.mxu0 0.0
    %361 = vmatpush1.msra.mxu0 0.0
    %362 = vmatprep.subr.mxu0 0.0
    %363 = vmatpush1.msra.mxu0 0.0
    %364 = vmatprep.subr.mxu0 0.0
    %365 = vmatpush1.msra.mxu0 0.0
    %366 = vmatprep.subr.mxu0 0.0
    %367 = vmatpush1.msra.mxu0 0.0
    %368 = vmatprep.subr.mxu0 0.0
    %369 = vmatpush1.msra.mxu0 0.0
    %370 = vmatprep.subr.mxu0 0.0
    %371 = vmatpush1.msra.mxu0 0.0
    %372 = vmatprep.subr.mxu0 0.0
    %373 = vmatpush1.msra.mxu0 0.0
    %374 = vmatprep.subr.mxu0 0.0
    %375 = vmatpush1.msra.mxu0 0.0
    %376 = vmatprep.subr.mxu0 0.0
    %377 = vmatpush1.msra.mxu0 0.0
    %378 = vmatprep.subr.mxu0 0.0
    %379 = vmatpush1.msra.mxu0 0.0
    %380 = vmatprep.subr.mxu0 0.0
    %381 = vmatpush1.msra.mxu0 0.0
    %382 = vmatprep.subr.mxu0 0.0
    %383 = vmatpush1.msra.mxu0 0.0
    %384 = vmatprep.subr.mxu0 0.0
    %385 = vmatpush1.msra.mxu0 0.0
    %386 = vmatprep.subr.mxu0 0.0
    %387 = vmatpush1.msra.mxu0 0.0
    %388 = vmatprep.subr.mxu0 0.0
    %389 = vmatpush1.msra.mxu0 0.0
    %390 = vmatprep.mubr.f32.mxu0 0.0
    %391 = vmatmul.mubr.f32.gmra.mrb[0].mxu0 %v321
    %v392 = vpop.f32.mrb[0].mxu0
    %v393 = vadd.f32 0.0, %v392
    %v394 = vpop.f32.mrb[0].mxu0
    %395 = vmatprep.mubr.f32.mxu0 0.0
    %396 = vmatmul.mubr.f32.gmra.mrb[0].mxu0 %v324
    %v397 = vpop.f32.mrb[0].mxu0
    %v398 = vadd.f32 0.0, %v397
    %v399 = vpop.f32.mrb[0].mxu0
    %400 = vdwg.mxu0
    %401 = vrot.lane.b32.xlu0 %v183, 120
    %v402 = vpop.permute.xlu0 %401
    %403 = vrot.lane.b32.xlu0 %v188, 120
    %v404 = vpop.permute.xlu0 %403
    %405 = vrot.lane.b32.xlu0 %v183, 88
    %v406 = vpop.permute.xlu0 %405
    %407 = vrot.lane.b32.xlu0 %v188, 88
    %v408 = vpop.permute.xlu0 %407
    %v409 = vsel %vm197, %v402, 0
    %v411 = vsel %vm197, %v404, 0
    %v413 = vsel %vm197, %v406, 0
    %v415 = vsel %vm197, %v408, 0
    %417 = vmatprep.subr.mxu0 0.0
    %418 = vmatpush1.xpose.msra.mxu0 %v413
    %419 = vmatprep.subr.mxu0 0.0
    %420 = vmatpush1.xpose.msra.mxu0 %v415
    %421 = vmatprep.subr.mxu0 0.0
    %422 = vmatpush1.xpose.msra.mxu0 0.0
    %423 = vmatprep.subr.mxu0 0.0
    %424 = vmatpush1.xpose.msra.mxu0 0.0
    %425 = vmatprep.subr.mxu0 0.0
    %426 = vmatpush1.xpose.msra.mxu0 0.0
    %427 = vmatprep.subr.mxu0 0.0
    %428 = vmatpush1.xpose.msra.mxu0 0.0
    %429 = vmatprep.subr.mxu0 0.0
    %430 = vmatpush1.xpose.msra.mxu0 0.0
    %431 = vmatprep.subr.mxu0 0.0
    %432 = vmatpush1.xpose.msra.mxu0 0.0
    %433 = vmatprep.subr.mxu0 0.0
    %434 = vmatpush1.xpose.msra.mxu0 0.0
    %435 = vmatprep.subr.mxu0 0.0
    %436 = vmatpush1.xpose.msra.mxu0 0.0
    %437 = vmatprep.subr.mxu0 0.0
    %438 = vmatpush1.xpose.msra.mxu0 0.0
    %439 = vmatprep.subr.mxu0 0.0
    %440 = vmatpush1.xpose.msra.mxu0 0.0
    %441 = vmatprep.subr.mxu0 0.0
    %442 = vmatpush1.xpose.msra.mxu0 0.0
    %443 = vmatprep.subr.mxu0 0.0
    %444 = vmatpush1.xpose.msra.mxu0 0.0
    %445 = vmatprep.subr.mxu0 0.0
    %446 = vmatpush1.xpose.msra.mxu0 0.0
    %447 = vmatprep.subr.mxu0 0.0
    %448 = vmatpush1.xpose.msra.mxu0 0.0
    %449 = vmatprep.subr.mxu0 0.0
    %450 = vmatpush1.xpose.msra.mxu0 0.0
    %451 = vmatprep.subr.mxu0 0.0
    %452 = vmatpush1.xpose.msra.mxu0 0.0
    %453 = vmatprep.subr.mxu0 0.0
    %454 = vmatpush1.xpose.msra.mxu0 0.0
    %455 = vmatprep.subr.mxu0 0.0
    %456 = vmatpush1.xpose.msra.mxu0 0.0
    %457 = vmatprep.subr.mxu0 0.0
    %458 = vmatpush1.xpose.msra.mxu0 0.0
    %459 = vmatprep.subr.mxu0 0.0
    %460 = vmatpush1.xpose.msra.mxu0 0.0
    %461 = vmatprep.subr.mxu0 0.0
    %462 = vmatpush1.xpose.msra.mxu0 0.0
    %463 = vmatprep.subr.mxu0 0.0
    %464 = vmatpush1.xpose.msra.mxu0 0.0
    %465 = vmatprep.subr.mxu0 0.0
    %466 = vmatpush1.xpose.msra.mxu0 0.0
    %467 = vmatprep.subr.mxu0 0.0
    %468 = vmatpush1.xpose.msra.mxu0 0.0
    %469 = vmatprep.subr.mxu0 0.0
    %470 = vmatpush1.xpose.msra.mxu0 0.0
    %471 = vmatprep.subr.mxu0 0.0
    %472 = vmatpush1.xpose.msra.mxu0 0.0
    %473 = vmatprep.subr.mxu0 0.0
    %474 = vmatpush1.xpose.msra.mxu0 0.0
    %475 = vmatprep.subr.mxu0 0.0
    %476 = vmatpush1.xpose.msra.mxu0 0.0
    %477 = vmatprep.subr.mxu0 0.0
    %478 = vmatpush1.xpose.msra.mxu0 0.0
    %479 = vmatprep.subr.mxu0 0.0
    %480 = vmatpush1.xpose.msra.mxu0 0.0
    %481 = vmatprep.mubr.f32.mxu0 0.0
    %482 = vmatmul.mubr.f32.gmra.mrb[0].mxu0 %v409
    %v483 = vpop.f32.mrb[0].mxu0
    %v484 = vadd.f32 0.0, %v483
    %v485 = vpop.f32.mrb[0].mxu0
    %486 = vmatprep.mubr.f32.mxu0 0.0
    %487 = vmatmul.mubr.f32.gmra.mrb[0].mxu0 %v411
    %v488 = vpop.f32.mrb[0].mxu0
    %v489 = vadd.f32 0.0, %v488
    %v490 = vpop.f32.mrb[0].mxu0
    %491 = vdwg.mxu0
    %v492 = vmul.f32 %v484, 0.35355338
    %v493 = vmul.f32 %v489, 0.35355338
    %v494 = vadd.f32 %v492, %v19
    %v495 = vadd.f32 %v493, %v20
    %v496 = vsel %vm285, %v494, -inf
    %497 = vmax.xlane.f32.xlu0 %v496
    %v498 = vpop.xlane.xlu0 %497
    %v499 = vsel %vm285, %v495, -inf
    %500 = vmax.xlane.f32.xlu0 %v499
    %v501 = vpop.xlane.xlu0 %500
    %v502 = vsub.f32 %v494, %v498
    %v503 = vsub.f32 %v495, %v501
    %v504 = vmul.f32 %v502, 1.442695
    %v505 = vpow.pop %v504
    %v506 = vmul.f32 %v503, 1.442695
    %v507 = vpow.pop %v506
    %v508 = vsel %vm285, %v505, 0.0
    %509 = vadd.xlane.f32.xlu0 %v508
    %v510 = vpop.xlane.xlu0 %509
    %v511 = vsel %vm285, %v507, 0.0
    %512 = vadd.xlane.f32.xlu0 %v511
    %v513 = vpop.xlane.xlu0 %512
    %v514 = vrcp.pop %v510
    %v515 = vrcp.pop %v513
    %v516 = vmul.f32 %v510, %v514
    %v517 = vmul.f32 %v513, %v515
    %v518 = vsub.f32 2.0, %v516
    %v519 = vsub.f32 2.0, %v517
    %v520 = vmul.f32 %v514, %v518
    %v521 = vmul.f32 %v515, %v519
    %v522 = vmul.f32 %v505, %v520
    %v523 = vmul.f32 %v507, %v521
    %524 = vrot.lane.b32.xlu0 %v183, 56
    %v525 = vpop.permute.xlu0 %524
    %526 = vrot.lane.b32.xlu0 %v188, 56
    %v527 = vpop.permute.xlu0 %526
    %v531 = vsel %vm285, %v522, 0
    %v534 = vsel %vm285, %v523, 0
    %536 = vmatprep.subr.mxu0 0.0
    %537 = vmatpush1.msra.mxu0 %v525
    %538 = vmatprep.subr.mxu0 0.0
    %539 = vmatpush1.msra.mxu0 %v527
    %540 = vmatprep.subr.mxu0 0.0
    %541 = vmatpush1.msra.mxu0 0.0
    %542 = vmatprep.subr.mxu0 0.0
    %543 = vmatpush1.msra.mxu0 0.0
    %544 = vmatprep.subr.mxu0 0.0
    %545 = vmatpush1.msra.mxu0 0.0
    %546 = vmatprep.subr.mxu0 0.0
    %547 = vmatpush1.msra.mxu0 0.0
    %548 = vmatprep.subr.mxu0 0.0
    %549 = vmatpush1.msra.mxu0 0.0
    %550 = vmatprep.subr.mxu0 0.0
    %551 = vmatpush1.msra.mxu0 0.0
    %552 = vmatprep.subr.mxu0 0.0
    %553 = vmatpush1.msra.mxu0 0.0
    %554 = vmatprep.subr.mxu0 0.0
    %555 = vmatpush1.msra.mxu0 0.0
    %556 = vmatprep.subr.mxu0 0.0
    %557 = vmatpush1.msra.mxu0 0.0
    %558 = vmatprep.subr.mxu0 0.0
    %559 = vmatpush1.msra.mxu0 0.0
    %560 = vmatprep.subr.mxu0 0.0
    %561 = vmatpush1.msra.mxu0 0.0
    %562 = vmatprep.subr.mxu0 0.0
    %563 = vmatpush1.msra.mxu0 0.0
    %564 = vmatprep.subr.mxu0 0.0
    %565 = vmatpush1.msra.mxu0 0.0
    %566 = vmatprep.subr.mxu0 0.0
    %567 = vmatpush1.msra.mxu0 0.0
    %568 = vmatprep.subr.mxu0 0.0
    %569 = vmatpush1.msra.mxu0 0.0
    %570 = vmatprep.subr.mxu0 0.0
    %571 = vmatpush1.msra.mxu0 0.0
    %572 = vmatprep.subr.mxu0 0.0
    %573 = vmatpush1.msra.mxu0 0.0
    %574 = vmatprep.subr.mxu0 0.0
    %575 = vmatpush1.msra.mxu0 0.0
    %576 = vmatprep.subr.mxu0 0.0
    %577 = vmatpush1.msra.mxu0 0.0
    %578 = vmatprep.subr.mxu0 0.0
    %579 = vmatpush1.msra.mxu0 0.0
    %580 = vmatprep.subr.mxu0 0.0
    %581 = vmatpush1.msra.mxu0 0.0
    %582 = vmatprep.subr.mxu0 0.0
    %583 = vmatpush1.msra.mxu0 0.0
    %584 = vmatprep.subr.mxu0 0.0
    %585 = vmatpush1.msra.mxu0 0.0
    %586 = vmatprep.subr.mxu0 0.0
    %587 = vmatpush1.msra.mxu0 0.0
    %588 = vmatprep.subr.mxu0 0.0
    %589 = vmatpush1.msra.mxu0 0.0
    %590 = vmatprep.subr.mxu0 0.0
    %591 = vmatpush1.msra.mxu0 0.0
    %592 = vmatprep.subr.mxu0 0.0
    %593 = vmatpush1.msra.mxu0 0.0
    %594 = vmatprep.subr.mxu0 0.0
    %595 = vmatpush1.msra.mxu0 0.0
    %596 = vmatprep.subr.mxu0 0.0
    %597 = vmatpush1.msra.mxu0 0.0
    %598 = vmatprep.subr.mxu0 0.0
    %599 = vmatpush1.msra.mxu0 0.0
    %600 = vmatprep.mubr.f32.mxu0 0.0
    %601 = vmatmul.mubr.f32.gmra.mrb[0].mxu0 %v531
    %v602 = vpop.f32.mrb[0].mxu0
    %v603 = vadd.f32 0.0, %v602
    %v604 = vpop.f32.mrb[0].mxu0
    %605 = vmatprep.mubr.f32.mxu0 0.0
    %606 = vmatmul.mubr.f32.gmra.mrb[0].mxu0 %v534
    %v607 = vpop.f32.mrb[0].mxu0
    %v608 = vadd.f32 0.0, %v607
    %v609 = vpop.f32.mrb[0].mxu0
    %610 = vdwg.mxu0
    %611 = vrot.lane.b32.xlu0 %v183, 112
    %v612 = vpop.permute.xlu0 %611
    %613 = vrot.lane.b32.xlu0 %v188, 112
    %v614 = vpop.permute.xlu0 %613
    %615 = vrot.lane.b32.xlu0 %v183, 80
    %v616 = vpop.permute.xlu0 %615
    %617 = vrot.lane.b32.xlu0 %v188, 80
    %v618 = vpop.permute.xlu0 %617
    %v619 = vsel %vm197, %v612, 0
    %v621 = vsel %vm197, %v614, 0
    %v623 = vsel %vm197, %v616, 0
    %v625 = vsel %vm197, %v618, 0
    %627 = vmatprep.subr.mxu0 0.0
    %628 = vmatpush1.xpose.msra.mxu0 %v623
    %629 = vmatprep.subr.mxu0 0.0
    %630 = vmatpush1.xpose.msra.mxu0 %v625
    %631 = vmatprep.subr.mxu0 0.0
    %632 = vmatpush1.xpose.msra.mxu0 0.0
    %633 = vmatprep.subr.mxu0 0.0
    %634 = vmatpush1.xpose.msra.mxu0 0.0
    %635 = vmatprep.subr.mxu0 0.0
    %636 = vmatpush1.xpose.msra.mxu0 0.0
    %637 = vmatprep.subr.mxu0 0.0
    %638 = vmatpush1.xpose.msra.mxu0 0.0
    %639 = vmatprep.subr.mxu0 0.0
    %640 = vmatpush1.xpose.msra.mxu0 0.0
    %641 = vmatprep.subr.mxu0 0.0
    %642 = vmatpush1.xpose.msra.mxu0 0.0
    %643 = vmatprep.subr.mxu0 0.0
    %644 = vmatpush1.xpose.msra.mxu0 0.0
    %645 = vmatprep.subr.mxu0 0.0
    %646 = vmatpush1.xpose.msra.mxu0 0.0
    %647 = vmatprep.subr.mxu0 0.0
    %648 = vmatpush1.xpose.msra.mxu0 0.0
    %649 = vmatprep.subr.mxu0 0.0
    %650 = vmatpush1.xpose.msra.mxu0 0.0
    %651 = vmatprep.subr.mxu0 0.0
    %652 = vmatpush1.xpose.msra.mxu0 0.0
    %653 = vmatprep.subr.mxu0 0.0
    %654 = vmatpush1.xpose.msra.mxu0 0.0
    %655 = vmatprep.subr.mxu0 0.0
    %656 = vmatpush1.xpose.msra.mxu0 0.0
    %657 = vmatprep.subr.mxu0 0.0
    %658 = vmatpush1.xpose.msra.mxu0 0.0
    %659 = vmatprep.subr.mxu0 0.0
    %660 = vmatpush1.xpose.msra.mxu0 0.0
    %661 = vmatprep.subr.mxu0 0.0
    %662 = vmatpush1.xpose.msra.mxu0 0.0
    %663 = vmatprep.subr.mxu0 0.0
    %664 = vmatpush1.xpose.msra.mxu0 0.0
    %665 = vmatprep.subr.mxu0 0.0
    %666 = vmatpush1.xpose.msra.mxu0 0.0
    %667 = vmatprep.subr.mxu0 0.0
    %668 = vmatpush1.xpose.msra.mxu0 0.0
    %669 = vmatprep.subr.mxu0 0.0
    %670 = vmatpush1.xpose.msra.mxu0 0.0
    %671 = vmatprep.subr.mxu0 0.0
    %672 = vmatpush1.xpose.msra.mxu0 0.0
    %673 = vmatprep.subr.mxu0 0.0
    %674 = vmatpush1.xpose.msra.mxu0 0.0
    %675 = vmatprep.subr.mxu0 0.0
    %676 = vmatpush1.xpose.msra.mxu0 0.0
    %677 = vmatprep.subr.mxu0 0.0
    %678 = vmatpush1.xpose.msra.mxu0 0.0
    %679 = vmatprep.subr.mxu0 0.0
    %680 = vmatpush1.xpose.msra.mxu0 0.0
    %681 = vmatprep.subr.mxu0 0.0
    %682 = vmatpush1.xpose.msra.mxu0 0.0
    %683 = vmatprep.subr.mxu0 0.0
    %684 = vmatpush1.xpose.msra.mxu0 0.0
    %685 = vmatprep.subr.mxu0 0.0
    %686 = vmatpush1.xpose.msra.mxu0 0.0
    %687 = vmatprep.subr.mxu0 0.0
    %688 = vmatpush1.xpose.msra.mxu0 0.0
    %689 = vmatprep.subr.mxu0 0.0
    %690 = vmatpush1.xpose.msra.mxu0 0.0
    %691 = vmatprep.mubr.f32.mxu0 0.0
    %692 = vmatmul.mubr.f32.gmra.mrb[0].mxu0 %v619
    %v693 = vpop.f32.mrb[0].mxu0
    %v694 = vadd.f32 0.0, %v693
    %v695 = vpop.f32.mrb[0].mxu0
    %696 = vmatprep.mubr.f32.mxu0 0.0
    %697 = vmatmul.mubr.f32.gmra.mrb[0].mxu0 %v621
    %v698 = vpop.f32.mrb[0].mxu0
    %v699 = vadd.f32 0.0, %v698
    %v700 = vpop.f32.mrb[0].mxu0
    %701 = vdwg.mxu0
    %v702 = vmul.f32 %v694, 0.35355338
    %v703 = vmul.f32 %v699, 0.35355338
    %v704 = vadd.f32 %v702, %v19
    %v705 = vadd.f32 %v703, %v20
    %v706 = vsel %vm285, %v704, -inf
    %707 = vmax.xlane.f32.xlu0 %v706
    %v708 = vpop.xlane.xlu0 %707
    %v709 = vsel %vm285, %v705, -inf
    %710 = vmax.xlane.f32.xlu0 %v709
    %v711 = vpop.xlane.xlu0 %710
    %v712 = vsub.f32 %v704, %v708
    %v713 = vsub.f32 %v705, %v711
    %v714 = vmul.f32 %v712, 1.442695
    %v715 = vpow.pop %v714
    %v716 = vmul.f32 %v713, 1.442695
    %v717 = vpow.pop %v716
    %v718 = vsel %vm285, %v715, 0.0
    %719 = vadd.xlane.f32.xlu0 %v718
    %v720 = vpop.xlane.xlu0 %719
    %v721 = vsel %vm285, %v717, 0.0
    %722 = vadd.xlane.f32.xlu0 %v721
    %v723 = vpop.xlane.xlu0 %722
    %v724 = vrcp.pop %v720
    %v725 = vrcp.pop %v723
    %v726 = vmul.f32 %v720, %v724
    %v727 = vmul.f32 %v723, %v725
    %v728 = vsub.f32 2.0, %v726
    %v729 = vsub.f32 2.0, %v727
    %v730 = vmul.f32 %v724, %v728
    %v731 = vmul.f32 %v725, %v729
    %v732 = vmul.f32 %v715, %v730
    %v733 = vmul.f32 %v717, %v731
    %734 = vrot.lane.b32.xlu0 %v183, 48
    %v735 = vpop.permute.xlu0 %734
    %736 = vrot.lane.b32.xlu0 %v188, 48
    %v737 = vpop.permute.xlu0 %736
    %v741 = vsel %vm285, %v732, 0
    %v744 = vsel %vm285, %v733, 0
    %746 = vmatprep.subr.mxu0 0.0
    %747 = vmatpush1.msra.mxu0 %v735
    %748 = vmatprep.subr.mxu0 0.0
    %749 = vmatpush1.msra.mxu0 %v737
    %750 = vmatprep.subr.mxu0 0.0
    %751 = vmatpush1.msra.mxu0 0.0
    %752 = vmatprep.subr.mxu0 0.0
    %753 = vmatpush1.msra.mxu0 0.0
    %754 = vmatprep.subr.mxu0 0.0
    %755 = vmatpush1.msra.mxu0 0.0
    %756 = vmatprep.subr.mxu0 0.0
    %757 = vmatpush1.msra.mxu0 0.0
    %758 = vmatprep.subr.mxu0 0.0
    %759 = vmatpush1.msra.mxu0 0.0
    %760 = vmatprep.subr.mxu0 0.0
    %761 = vmatpush1.msra.mxu0 0.0
    %762 = vmatprep.subr.mxu0 0.0
    %763 = vmatpush1.msra.mxu0 0.0
    %764 = vmatprep.subr.mxu0 0.0
    %765 = vmatpush1.msra.mxu0 0.0
    %766 = vmatprep.subr.mxu0 0.0
    %767 = vmatpush1.msra.mxu0 0.0
    %768 = vmatprep.subr.mxu0 0.0
    %769 = vmatpush1.msra.mxu0 0.0
    %770 = vmatprep.subr.mxu0 0.0
    %771 = vmatpush1.msra.mxu0 0.0
    %772 = vmatprep.subr.mxu0 0.0
    %773 = vmatpush1.msra.mxu0 0.0
    %774 = vmatprep.subr.mxu0 0.0
    %775 = vmatpush1.msra.mxu0 0.0
    %776 = vmatprep.subr.mxu0 0.0
    %777 = vmatpush1.msra.mxu0 0.0
    %778 = vmatprep.subr.mxu0 0.0
    %779 = vmatpush1.msra.mxu0 0.0
    %780 = vmatprep.subr.mxu0 0.0
    %781 = vmatpush1.msra.mxu0 0.0
    %782 = vmatprep.subr.mxu0 0.0
    %783 = vmatpush1.msra.mxu0 0.0
    %784 = vmatprep.subr.mxu0 0.0
    %785 = vmatpush1.msra.mxu0 0.0
    %786 = vmatprep.subr.mxu0 0.0
    %787 = vmatpush1.msra.mxu0 0.0
    %788 = vmatprep.subr.mxu0 0.0
    %789 = vmatpush1.msra.mxu0 0.0
    %790 = vmatprep.subr.mxu0 0.0
    %791 = vmatpush1.msra.mxu0 0.0
    %792 = vmatprep.subr.mxu0 0.0
    %793 = vmatpush1.msra.mxu0 0.0
    %794 = vmatprep.subr.mxu0 0.0
    %795 = vmatpush1.msra.mxu0 0.0
    %796 = vmatprep.subr.mxu0 0.0
    %797 = vmatpush1.msra.mxu0 0.0
    %798 = vmatprep.subr.mxu0 0.0
    %799 = vmatpush1.msra.mxu0 0.0
    %800 = vmatprep.subr.mxu0 0.0
    %801 = vmatpush1.msra.mxu0 0.0
    %802 = vmatprep.subr.mxu0 0.0
    %803 = vmatpush1.msra.mxu0 0.0
    %804 = vmatprep.subr.mxu0 0.0
    %805 = vmatpush1.msra.mxu0 0.0
    %806 = vmatprep.subr.mxu0 0.0
    %807 = vmatpush1.msra.mxu0 0.0
    %808 = vmatprep.subr.mxu0 0.0
    %809 = vmatpush1.msra.mxu0 0.0
    %810 = vmatprep.mubr.f32.mxu0 0.0
    %811 = vmatmul.mubr.f32.gmra.mrb[0].mxu0 %v741
    %v812 = vpop.f32.mrb[0].mxu0
    %v813 = vadd.f32 0.0, %v812
    %v814 = vpop.f32.mrb[0].mxu0
    %815 = vmatprep.mubr.f32.mxu0 0.0
    %816 = vmatmul.mubr.f32.gmra.mrb[0].mxu0 %v744
    %v817 = vpop.f32.mrb[0].mxu0
    %v818 = vadd.f32 0.0, %v817
    %v819 = vpop.f32.mrb[0].mxu0
    %820 = vdwg.mxu0
    %821 = vrot.lane.b32.xlu0 %v183, 104
    %v822 = vpop.permute.xlu0 %821
    %823 = vrot.lane.b32.xlu0 %v188, 104
    %v824 = vpop.permute.xlu0 %823
    %825 = vrot.lane.b32.xlu0 %v183, 72
    %v826 = vpop.permute.xlu0 %825
    %827 = vrot.lane.b32.xlu0 %v188, 72
    %v828 = vpop.permute.xlu0 %827
    %v829 = vsel %vm197, %v822, 0
    %v831 = vsel %vm197, %v824, 0
    %v833 = vsel %vm197, %v826, 0
    %v835 = vsel %vm197, %v828, 0
    %837 = vmatprep.subr.mxu0 0.0
    %838 = vmatpush1.xpose.msra.mxu0 %v833
    %839 = vmatprep.subr.mxu0 0.0
    %840 = vmatpush1.xpose.msra.mxu0 %v835
    %841 = vmatprep.subr.mxu0 0.0
    %842 = vmatpush1.xpose.msra.mxu0 0.0
    %843 = vmatprep.subr.mxu0 0.0
    %844 = vmatpush1.xpose.msra.mxu0 0.0
    %845 = vmatprep.subr.mxu0 0.0
    %846 = vmatpush1.xpose.msra.mxu0 0.0
    %847 = vmatprep.subr.mxu0 0.0
    %848 = vmatpush1.xpose.msra.mxu0 0.0
    %849 = vmatprep.subr.mxu0 0.0
    %850 = vmatpush1.xpose.msra.mxu0 0.0
    %851 = vmatprep.subr.mxu0 0.0
    %852 = vmatpush1.xpose.msra.mxu0 0.0
    %853 = vmatprep.subr.mxu0 0.0
    %854 = vmatpush1.xpose.msra.mxu0 0.0
    %855 = vmatprep.subr.mxu0 0.0
    %856 = vmatpush1.xpose.msra.mxu0 0.0
    %857 = vmatprep.subr.mxu0 0.0
    %858 = vmatpush1.xpose.msra.mxu0 0.0
    %859 = vmatprep.subr.mxu0 0.0
    %860 = vmatpush1.xpose.msra.mxu0 0.0
    %861 = vmatprep.subr.mxu0 0.0
    %862 = vmatpush1.xpose.msra.mxu0 0.0
    %863 = vmatprep.subr.mxu0 0.0
    %864 = vmatpush1.xpose.msra.mxu0 0.0
    %865 = vmatprep.subr.mxu0 0.0
    %866 = vmatpush1.xpose.msra.mxu0 0.0
    %867 = vmatprep.subr.mxu0 0.0
    %868 = vmatpush1.xpose.msra.mxu0 0.0
    %869 = vmatprep.subr.mxu0 0.0
    %870 = vmatpush1.xpose.msra.mxu0 0.0
    %871 = vmatprep.subr.mxu0 0.0
    %872 = vmatpush1.xpose.msra.mxu0 0.0
    %873 = vmatprep.subr.mxu0 0.0
    %874 = vmatpush1.xpose.msra.mxu0 0.0
    %875 = vmatprep.subr.mxu0 0.0
    %876 = vmatpush1.xpose.msra.mxu0 0.0
    %877 = vmatprep.subr.mxu0 0.0
    %878 = vmatpush1.xpose.msra.mxu0 0.0
    %879 = vmatprep.subr.mxu0 0.0
    %880 = vmatpush1.xpose.msra.mxu0 0.0
    %881 = vmatprep.subr.mxu0 0.0
    %882 = vmatpush1.xpose.msra.mxu0 0.0
    %883 = vmatprep.subr.mxu0 0.0
    %884 = vmatpush1.xpose.msra.mxu0 0.0
    %885 = vmatprep.subr.mxu0 0.0
    %886 = vmatpush1.xpose.msra.mxu0 0.0
    %887 = vmatprep.subr.mxu0 0.0
    %888 = vmatpush1.xpose.msra.mxu0 0.0
    %889 = vmatprep.subr.mxu0 0.0
    %890 = vmatpush1.xpose.msra.mxu0 0.0
    %891 = vmatprep.subr.mxu0 0.0
    %892 = vmatpush1.xpose.msra.mxu0 0.0
    %893 = vmatprep.subr.mxu0 0.0
    %894 = vmatpush1.xpose.msra.mxu0 0.0
    %895 = vmatprep.subr.mxu0 0.0
    %896 = vmatpush1.xpose.msra.mxu0 0.0
    %897 = vmatprep.subr.mxu0 0.0
    %898 = vmatpush1.xpose.msra.mxu0 0.0
    %899 = vmatprep.subr.mxu0 0.0
    %900 = vmatpush1.xpose.msra.mxu0 0.0
    %901 = vmatprep.mubr.f32.mxu0 0.0
    %902 = vmatmul.mubr.f32.gmra.mrb[0].mxu0 %v829
    %v903 = vpop.f32.mrb[0].mxu0
    %v904 = vadd.f32 0.0, %v903
    %v905 = vpop.f32.mrb[0].mxu0
    %906 = vmatprep.mubr.f32.mxu0 0.0
    %907 = vmatmul.mubr.f32.gmra.mrb[0].mxu0 %v831
    %v908 = vpop.f32.mrb[0].mxu0
    %v909 = vadd.f32 0.0, %v908
    %v910 = vpop.f32.mrb[0].mxu0
    %911 = vdwg.mxu0
    %v912 = vmul.f32 %v904, 0.35355338
    %v913 = vmul.f32 %v909, 0.35355338
    %v914 = vadd.f32 %v912, %v19
    %v915 = vadd.f32 %v913, %v20
    %v916 = vsel %vm285, %v914, -inf
    %917 = vmax.xlane.f32.xlu0 %v916
    %v918 = vpop.xlane.xlu0 %917
    %v919 = vsel %vm285, %v915, -inf
    %920 = vmax.xlane.f32.xlu0 %v919
    %v921 = vpop.xlane.xlu0 %920
    %v922 = vsub.f32 %v914, %v918
    %v923 = vsub.f32 %v915, %v921
    %v924 = vmul.f32 %v922, 1.442695
    %v925 = vpow.pop %v924
    %v926 = vmul.f32 %v923, 1.442695
    %v927 = vpow.pop %v926
    %v928 = vsel %vm285, %v925, 0.0
    %929 = vadd.xlane.f32.xlu0 %v928
    %v930 = vpop.xlane.xlu0 %929
    %v931 = vsel %vm285, %v927, 0.0
    %932 = vadd.xlane.f32.xlu0 %v931
    %v933 = vpop.xlane.xlu0 %932
    %v934 = vrcp.pop %v930
    %v935 = vrcp.pop %v933
    %v936 = vmul.f32 %v930, %v934
    %v937 = vmul.f32 %v933, %v935
    %v938 = vsub.f32 2.0, %v936
    %v939 = vsub.f32 2.0, %v937
    %v940 = vmul.f32 %v934, %v938
    %v941 = vmul.f32 %v935, %v939
    %v942 = vmul.f32 %v925, %v940
    %v943 = vmul.f32 %v927, %v941
    %944 = vrot.lane.b32.xlu0 %v183, 40
    %v945 = vpop.permute.xlu0 %944
    %946 = vrot.lane.b32.xlu0 %v188, 40
    %v947 = vpop.permute.xlu0 %946
    %v951 = vsel %vm285, %v942, 0
    %v954 = vsel %vm285, %v943, 0
    %956 = vmatprep.subr.mxu0 0.0
    %957 = vmatpush1.msra.mxu0 %v945
    %958 = vmatprep.subr.mxu0 0.0
    %959 = vmatpush1.msra.mxu0 %v947
    %960 = vmatprep.subr.mxu0 0.0
    %961 = vmatpush1.msra.mxu0 0.0
    %962 = vmatprep.subr.mxu0 0.0
    %963 = vmatpush1.msra.mxu0 0.0
    %964 = vmatprep.subr.mxu0 0.0
    %965 = vmatpush1.msra.mxu0 0.0
    %966 = vmatprep.subr.mxu0 0.0
    %967 = vmatpush1.msra.mxu0 0.0
    %968 = vmatprep.subr.mxu0 0.0
    %969 = vmatpush1.msra.mxu0 0.0
    %970 = vmatprep.subr.mxu0 0.0
    %971 = vmatpush1.msra.mxu0 0.0
    %972 = vmatprep.subr.mxu0 0.0
    %973 = vmatpush1.msra.mxu0 0.0
    %974 = vmatprep.subr.mxu0 0.0
    %975 = vmatpush1.msra.mxu0 0.0
    %976 = vmatprep.subr.mxu0 0.0
    %977 = vmatpush1.msra.mxu0 0.0
    %978 = vmatprep.subr.mxu0 0.0
    %979 = vmatpush1.msra.mxu0 0.0
    %980 = vmatprep.subr.mxu0 0.0
    %981 = vmatpush1.msra.mxu0 0.0
    %982 = vmatprep.subr.mxu0 0.0
    %983 = vmatpush1.msra.mxu0 0.0
    %984 = vmatprep.subr.mxu0 0.0
    %985 = vmatpush1.msra.mxu0 0.0
    %986 = vmatprep.subr.mxu0 0.0
    %987 = vmatpush1.msra.mxu0 0.0
    %988 = vmatprep.subr.mxu0 0.0
    %989 = vmatpush1.msra.mxu0 0.0
    %990 = vmatprep.subr.mxu0 0.0
    %991 = vmatpush1.msra.mxu0 0.0
    %992 = vmatprep.subr.mxu0 0.0
    %993 = vmatpush1.msra.mxu0 0.0
    %994 = vmatprep.subr.mxu0 0.0
    %995 = vmatpush1.msra.mxu0 0.0
    %996 = vmatprep.subr.mxu0 0.0
    %997 = vmatpush1.msra.mxu0 0.0
    %998 = vmatprep.subr.mxu0 0.0
    %999 = vmatpush1.msra.mxu0 0.0
    %1000 = vmatprep.subr.mxu0 0.0
    %1001 = vmatpush1.msra.mxu0 0.0
    %1002 = vmatprep.subr.mxu0 0.0
    %1003 = vmatpush1.msra.mxu0 0.0
    %1004 = vmatprep.subr.mxu0 0.0
    %1005 = vmatpush1.msra.mxu0 0.0
    %1006 = vmatprep.subr.mxu0 0.0
    %1007 = vmatpush1.msra.mxu0 0.0
    %1008 = vmatprep.subr.mxu0 0.0
    %1009 = vmatpush1.msra.mxu0 0.0
    %1010 = vmatprep.subr.mxu0 0.0
    %1011 = vmatpush1.msra.mxu0 0.0
    %1012 = vmatprep.subr.mxu0 0.0
    %1013 = vmatpush1.msra.mxu0 0.0
    %1014 = vmatprep.subr.mxu0 0.0
    %1015 = vmatpush1.msra.mxu0 0.0
    %1016 = vmatprep.subr.mxu0 0.0
    %1017 = vmatpush1.msra.mxu0 0.0
    %1018 = vmatprep.subr.mxu0 0.0
    %1019 = vmatpush1.msra.mxu0 0.0
    %1020 = vmatprep.mubr.f32.mxu0 0.0
    %1021 = vmatmul.mubr.f32.gmra.mrb[0].mxu0 %v951
    %v1022 = vpop.f32.mrb[0].mxu0
    %v1023 = vadd.f32 0.0, %v1022
    %v1024 = vpop.f32.mrb[0].mxu0
    %1025 = vmatprep.mubr.f32.mxu0 0.0
    %1026 = vmatmul.mubr.f32.gmra.mrb[0].mxu0 %v954
    %v1027 = vpop.f32.mrb[0].mxu0
    %v1028 = vadd.f32 0.0, %v1027
    %v1029 = vpop.f32.mrb[0].mxu0
    %1030 = vdwg.mxu0
    %1033 = vrot.lane.b32.xlu0 %v603, 8
    %v1034 = vpop.permute.xlu0 %1033
    %1035 = vrot.lane.b32.xlu0 %v608, 8
    %v1036 = vpop.permute.xlu0 %1035
    %1041 = vrot.lane.b32.xlu0 %v813, 16
    %v1042 = vpop.permute.xlu0 %1041
    %1043 = vrot.lane.b32.xlu0 %v818, 16
    %v1044 = vpop.permute.xlu0 %1043
    %1049 = vrot.lane.b32.xlu0 %v1023, 24
    %v1050 = vpop.permute.xlu0 %1049
    %1051 = vrot.lane.b32.xlu0 %v1028, 24
    %v1052 = vpop.permute.xlu0 %1051
    %v1055 = vsel %vm197, %v393, %v1034
    %v1056 = vsel %vm197, %v398, %v1036
    %v1057 = vsel %vm285, %v1055, %v1042
    %v1058 = vsel %vm285, %v1056, %v1044
    %vm1059 = vcmask 195584
    %v1060 = vsel %vm1059, %v1057, %v1050
    %v1061 = vsel %vm1059, %v1058, %v1052
    %1066 = vrot.lane.b32.xlu0 %v21, 32
    %v1067 = vpop.permute.xlu0 %1066
    %1068 = vrot.lane.b32.xlu0 %v22, 32
    %v1069 = vpop.permute.xlu0 %1068
    %1070 = vrot.lane.b32.xlu0 %v23, 32
    %v1071 = vpop.permute.xlu0 %1070
    %1072 = vrot.lane.b32.xlu0 %v24, 32
    %v1073 = vpop.permute.xlu0 %1072
    %1079 = vrot.lane.b32.xlu0 %v109, 32
    %v1080 = vpop.permute.xlu0 %1079
    %v1083 = vsel %vm45, %v1060, 0
    %v1086 = vsel %vm45, %v1061, 0
    %1088 = vmatprep.subr.mxu0 0.0
    %1089 = vmatpush1.msra.mxu0 %v1067
    %1090 = vmatprep.subr.mxu0 0.0
    %1091 = vmatpush1.msra.mxu0 %v1069
    %1092 = vmatprep.subr.mxu0 0.0
    %1093 = vmatpush1.msra.mxu0 %v1071
    %1094 = vmatprep.subr.mxu0 0.0
    %1095 = vmatpush1.msra.mxu0 %v1073
    %1096 = vmatprep.subr.mxu0 0.0
    %1097 = vmatpush1.msra.mxu0 0.0
    %1098 = vmatprep.subr.mxu0 0.0
    %1099 = vmatpush1.msra.mxu0 0.0
    %1100 = vmatprep.subr.mxu0 0.0
    %1101 = vmatpush1.msra.mxu0 0.0
    %1102 = vmatprep.subr.mxu0 0.0
    %1103 = vmatpush1.msra.mxu0 0.0
    %1104 = vmatprep.subr.mxu0 0.0
    %1105 = vmatpush1.msra.mxu0 0.0
    %1106 = vmatprep.subr.mxu0 0.0
    %1107 = vmatpush1.msra.mxu0 0.0
    %1108 = vmatprep.subr.mxu0 0.0
    %1109 = vmatpush1.msra.mxu0 0.0
    %1110 = vmatprep.subr.mxu0 0.0
    %1111 = vmatpush1.msra.mxu0 0.0
    %1112 = vmatprep.subr.mxu0 0.0
    %1113 = vmatpush1.msra.mxu0 0.0
    %1114 = vmatprep.subr.mxu0 0.0
    %1115 = vmatpush1.msra.mxu0 0.0
    %1116 = vmatprep.subr.mxu0 0.0
    %1117 = vmatpush1.msra.mxu0 0.0
    %1118 = vmatprep.subr.mxu0 0.0
    %1119 = vmatpush1.msra.mxu0 0.0
    %1120 = vmatprep.subr.mxu0 0.0
    %1121 = vmatpush1.msra.mxu0 0.0
    %1122 = vmatprep.subr.mxu0 0.0
    %1123 = vmatpush1.msra.mxu0 0.0
    %1124 = vmatprep.subr.mxu0 0.0
    %1125 = vmatpush1.msra.mxu0 0.0
    %1126 = vmatprep.subr.mxu0 0.0
    %1127 = vmatpush1.msra.mxu0 0.0
    %1128 = vmatprep.subr.mxu0 0.0
    %1129 = vmatpush1.msra.mxu0 0.0
    %1130 = vmatprep.subr.mxu0 0.0
    %1131 = vmatpush1.msra.mxu0 0.0
    %1132 = vmatprep.subr.mxu0 0.0
    %1133 = vmatpush1.msra.mxu0 0.0
    %1134 = vmatprep.subr.mxu0 0.0
    %1135 = vmatpush1.msra.mxu0 0.0
    %1136 = vmatprep.subr.mxu0 0.0
    %1137 = vmatpush1.msra.mxu0 0.0
    %1138 = vmatprep.subr.mxu0 0.0
    %1139 = vmatpush1.msra.mxu0 0.0
    %1140 = vmatprep.subr.mxu0 0.0
    %1141 = vmatpush1.msra.mxu0 0.0
    %1142 = vmatprep.subr.mxu0 0.0
    %1143 = vmatpush1.msra.mxu0 0.0
    %1144 = vmatprep.subr.mxu0 0.0
    %1145 = vmatpush1.msra.mxu0 0.0
    %1146 = vmatprep.subr.mxu0 0.0
    %1147 = vmatpush1.msra.mxu0 0.0
    %1148 = vmatprep.subr.mxu0 0.0
    %1149 = vmatpush1.msra.mxu0 0.0
    %1150 = vmatprep.subr.mxu0 0.0
    %1151 = vmatpush1.msra.mxu0 0.0
    %1152 = vmatprep.mubr.f32.mxu0 0.0
    %1153 = vmatmul.mubr.f32.gmra.mrb[0].mxu0 %v1083
    %v1154 = vpop.f32.mrb[0].mxu0
    %v1155 = vadd.f32 %v1080, %v1154
    %v1156 = vpop.f32.mrb[0].mxu0
    %1157 = vmatprep.mubr.f32.mxu0 0.0
    %1158 = vmatmul.mubr.f32.gmra.mrb[0].mxu0 %v1086
    %v1159 = vpop.f32.mrb[0].mxu0
    %v1160 = vadd.f32 %v1080, %v1159
    %v1161 = vpop.f32.mrb[0].mxu0
    %1162 = vdwg.mxu0
    %v1163 = vadd.f32 %v15, %v1155
    %v1164 = vadd.f32 %v16, %v1160
    %v1165 = vsel %vm45, %v1163, 0.0
    %1166 = vadd.xlane.f32.xlu0 %v1165
    %v1167 = vpop.xlane.xlu0 %1166
    %v1168 = vsel %vm45, %v1164, 0.0
    %1169 = vadd.xlane.f32.xlu0 %v1168
    %v1170 = vpop.xlane.xlu0 %1169
    %v1171 = vmul.f32 %v1167, %v52
    %v1172 = vmul.f32 %v1170, %v52
    %v1173 = vsub.f32 %v1163, %v1171
    %v1174 = vsub.f32 %v1164, %v1172
    %v1175 = vmul.f32 %v1173, %v1173
    %v1176 = vmul.f32 %v1174, %v1174
    %v1177 = vsel %vm45, %v1175, 0.0
    %1178 = vadd.xlane.f32.xlu0 %v1177
    %v1179 = vpop.xlane.xlu0 %1178
    %v1180 = vsel %vm45, %v1176, 0.0
    %1181 = vadd.xlane.f32.xlu0 %v1180
    %v1182 = vpop.xlane.xlu0 %1181
    %v1183 = vmul.f32 %v1179, %v65
    %v1184 = vmul.f32 %v1182, %v65
    %v1185 = vrsqrt.pop %v1183
    %v1186 = vmul.f32 %v1183, %v1185
    %vm1187 = vcmp.eq.f32.partialorder %v1183, inf
    %v1188 = vsel %vm1187, %v1183, %v1186
    %vm1189 = vcmp.eq.f32.partialorder %v1183, 0.0
    %v1190 = vand.u32 %v1183, 2147483648
    %v1191 = vsel %vm1189, %v1190, %v1188
    %v1192 = vrsqrt.pop %v1184
    %v1193 = vmul.f32 %v1184, %v1192
    %vm1194 = vcmp.eq.f32.partialorder %v1184, inf
    %v1195 = vsel %vm1194, %v1184, %v1193
    %vm1196 = vcmp.eq.f32.partialorder %v1184, 0.0
    %v1197 = vand.u32 %v1184, 2147483648
    %v1198 = vsel %vm1196, %v1197, %v1195
    %v1199 = vlaneseq
    %v1200 = vshrl.u32 %v1199, 7
    %v1201 = vsub.s32 1, %v1200
    %v1202 = vrot.slane %v41, %v1201
    %v1203 = vmul.f32 %v1202, %v1173
    %v1204 = vmul.f32 %v1202, %v1174
    %v1205 = vadd.f32 %v1191, 1e-06
    %v1206 = vadd.f32 %v1198, 1e-06
    %v1207 = vrcp.pop %v1205
    %v1208 = vrcp.pop %v1206
    %v1209 = vmul.f32 %v1205, %v1207
    %v1210 = vmul.f32 %v1206, %v1208
    %v1211 = vsub.f32 2.0, %v1209
    %v1212 = vsub.f32 2.0, %v1210
    %v1213 = vmul.f32 %v1207, %v1211
    %v1214 = vmul.f32 %v1208, %v1212
    %v1215 = vmul.f32 %v1203, %v1213
    %v1216 = vmul.f32 %v1204, %v1214
    %1218 = vrot.lane.b32.xlu0 %v1202, 96
    %v1219 = vpop.permute.xlu0 %1218
    %v1221 = vadd.f32 %v1215, %v1219
    %v1222 = vadd.f32 %v1216, %v1219
    %v1223 = vlaneseq
    %v1224 = vshrl.u32 %v1223, 7
    %v1225 = vsub.s32 0, %v1224
    %v1226 = vrot.slane %v43, %v1225
    %v1228 = vsel %vm45, %v1221, 0
    %v1231 = vsel %vm45, %v1222, 0
    %1233 = vmatprep.subr.mxu0 0.0
    %1234 = vmatpush1.msra.mxu0 %v25
    %1235 = vmatprep.subr.mxu0 0.0
    %1236 = vmatpush1.msra.mxu0 %v26
    %1237 = vmatprep.subr.mxu0 0.0
    %1238 = vmatpush1.msra.mxu0 %v27
    %1239 = vmatprep.subr.mxu0 0.0
    %1240 = vmatpush1.msra.mxu0 %v28
    %1241 = vmatprep.subr.mxu0 0.0
    %1242 = vmatpush1.msra.mxu0 0.0
    %1243 = vmatprep.subr.mxu0 0.0
    %1244 = vmatpush1.msra.mxu0 0.0
    %1245 = vmatprep.subr.mxu0 0.0
    %1246 = vmatpush1.msra.mxu0 0.0
    %1247 = vmatprep.subr.mxu0 0.0
    %1248 = vmatpush1.msra.mxu0 0.0
    %1249 = vmatprep.subr.mxu0 0.0
    %1250 = vmatpush1.msra.mxu0 0.0
    %1251 = vmatprep.subr.mxu0 0.0
    %1252 = vmatpush1.msra.mxu0 0.0
    %1253 = vmatprep.subr.mxu0 0.0
    %1254 = vmatpush1.msra.mxu0 0.0
    %1255 = vmatprep.subr.mxu0 0.0
    %1256 = vmatpush1.msra.mxu0 0.0
    %1257 = vmatprep.subr.mxu0 0.0
    %1258 = vmatpush1.msra.mxu0 0.0
    %1259 = vmatprep.subr.mxu0 0.0
    %1260 = vmatpush1.msra.mxu0 0.0
    %1261 = vmatprep.subr.mxu0 0.0
    %1262 = vmatpush1.msra.mxu0 0.0
    %1263 = vmatprep.subr.mxu0 0.0
    %1264 = vmatpush1.msra.mxu0 0.0
    %1265 = vmatprep.subr.mxu0 0.0
    %1266 = vmatpush1.msra.mxu0 0.0
    %1267 = vmatprep.subr.mxu0 0.0
    %1268 = vmatpush1.msra.mxu0 0.0
    %1269 = vmatprep.subr.mxu0 0.0
    %1270 = vmatpush1.msra.mxu0 0.0
    %1271 = vmatprep.subr.mxu0 0.0
    %1272 = vmatpush1.msra.mxu0 0.0
    %1273 = vmatprep.subr.mxu0 0.0
    %1274 = vmatpush1.msra.mxu0 0.0
    %1275 = vmatprep.subr.mxu0 0.0
    %1276 = vmatpush1.msra.mxu0 0.0
    %1277 = vmatprep.subr.mxu0 0.0
    %1278 = vmatpush1.msra.mxu0 0.0
    %1279 = vmatprep.subr.mxu0 0.0
    %1280 = vmatpush1.msra.mxu0 0.0
    %1281 = vmatprep.subr.mxu0 0.0
    %1282 = vmatpush1.msra.mxu0 0.0
    %1283 = vmatprep.subr.mxu0 0.0
    %1284 = vmatpush1.msra.mxu0 0.0
    %1285 = vmatprep.subr.mxu0 0.0
    %1286 = vmatpush1.msra.mxu0 0.0
    %1287 = vmatprep.subr.mxu0 0.0
    %1288 = vmatpush1.msra.mxu0 0.0
    %1289 = vmatprep.subr.mxu0 0.0
    %1290 = vmatpush1.msra.mxu0 0.0
    %1291 = vmatprep.subr.mxu0 0.0
    %1292 = vmatpush1.msra.mxu0 0.0
    %1293 = vmatprep.subr.mxu0 0.0
    %1294 = vmatpush1.msra.mxu0 0.0
    %1295 = vmatprep.subr.mxu0 0.0
    %1296 = vmatpush1.msra.mxu0 0.0
    %1297 = vmatprep.mubr.f32.mxu0 0.0
    %1298 = vmatmul.mubr.f32.gmra.mrb[0].mxu0 %v1228
    %v1299 = vpop.f32.mrb[0].mxu0
    %v1300 = vadd.f32 %v1226, %v1299
    %v1301 = vpop.f32.mrb[0].mxu0
    %1302 = vmatprep.mubr.f32.mxu0 0.0
    %1303 = vmatmul.mubr.f32.gmra.mrb[0].mxu0 %v1231
    %v1304 = vpop.f32.mrb[0].mxu0
    %v1305 = vadd.f32 %v1226, %v1304
    %v1306 = vpop.f32.mrb[0].mxu0
    %1307 = vdwg.mxu0
    %1312 = vrot.lane.b32.xlu0 %v25, 96
    %v1313 = vpop.permute.xlu0 %1312
    %1314 = vrot.lane.b32.xlu0 %v26, 96
    %v1315 = vpop.permute.xlu0 %1314
    %1316 = vrot.lane.b32.xlu0 %v27, 96
    %v1317 = vpop.permute.xlu0 %1316
    %1318 = vrot.lane.b32.xlu0 %v28, 96
    %v1319 = vpop.permute.xlu0 %1318
    %1325 = vrot.lane.b32.xlu0 %v1226, 96
    %v1326 = vpop.permute.xlu0 %1325
    %v1329 = vsel %vm45, %v17, 0
    %v1332 = vsel %vm45, %v18, 0
    %1334 = vmatprep.subr.mxu0 0.0
    %1335 = vmatpush1.msra.mxu0 %v1313
    %1336 = vmatprep.subr.mxu0 0.0
    %1337 = vmatpush1.msra.mxu0 %v1315
    %1338 = vmatprep.subr.mxu0 0.0
    %1339 = vmatpush1.msra.mxu0 %v1317
    %1340 = vmatprep.subr.mxu0 0.0
    %1341 = vmatpush1.msra.mxu0 %v1319
    %1342 = vmatprep.subr.mxu0 0.0
    %1343 = vmatpush1.msra.mxu0 0.0
    %1344 = vmatprep.subr.mxu0 0.0
    %1345 = vmatpush1.msra.mxu0 0.0
    %1346 = vmatprep.subr.mxu0 0.0
    %1347 = vmatpush1.msra.mxu0 0.0
    %1348 = vmatprep.subr.mxu0 0.0
    %1349 = vmatpush1.msra.mxu0 0.0
    %1350 = vmatprep.subr.mxu0 0.0
    %1351 = vmatpush1.msra.mxu0 0.0
    %1352 = vmatprep.subr.mxu0 0.0
    %1353 = vmatpush1.msra.mxu0 0.0
    %1354 = vmatprep.subr.mxu0 0.0
    %1355 = vmatpush1.msra.mxu0 0.0
    %1356 = vmatprep.subr.mxu0 0.0
    %1357 = vmatpush1.msra.mxu0 0.0
    %1358 = vmatprep.subr.mxu0 0.0
    %1359 = vmatpush1.msra.mxu0 0.0
    %1360 = vmatprep.subr.mxu0 0.0
    %1361 = vmatpush1.msra.mxu0 0.0
    %1362 = vmatprep.subr.mxu0 0.0
    %1363 = vmatpush1.msra.mxu0 0.0
    %1364 = vmatprep.subr.mxu0 0.0
    %1365 = vmatpush1.msra.mxu0 0.0
    %1366 = vmatprep.subr.mxu0 0.0
    %1367 = vmatpush1.msra.mxu0 0.0
    %1368 = vmatprep.subr.mxu0 0.0
    %1369 = vmatpush1.msra.mxu0 0.0
    %1370 = vmatprep.subr.mxu0 0.0
    %1371 = vmatpush1.msra.mxu0 0.0
    %1372 = vmatprep.subr.mxu0 0.0
    %1373 = vmatpush1.msra.mxu0 0.0
    %1374 = vmatprep.subr.mxu0 0.0
    %1375 = vmatpush1.msra.mxu0 0.0
    %1376 = vmatprep.subr.mxu0 0.0
    %1377 = vmatpush1.msra.mxu0 0.0
    %1378 = vmatprep.subr.mxu0 0.0
    %1379 = vmatpush1.msra.mxu0 0.0
    %1380 = vmatprep.subr.mxu0 0.0
    %1381 = vmatpush1.msra.mxu0 0.0
    %1382 = vmatprep.subr.mxu0 0.0
    %1383 = vmatpush1.msra.mxu0 0.0
    %1384 = vmatprep.subr.mxu0 0.0
    %1385 = vmatpush1.msra.mxu0 0.0
    %1386 = vmatprep.subr.mxu0 0.0
    %1387 = vmatpush1.msra.mxu0 0.0
    %1388 = vmatprep.subr.mxu0 0.0
    %1389 = vmatpush1.msra.mxu0 0.0
    %1390 = vmatprep.subr.mxu0 0.0
    %1391 = vmatpush1.msra.mxu0 0.0
    %1392 = vmatprep.subr.mxu0 0.0
    %1393 = vmatpush1.msra.mxu0 0.0
    %1394 = vmatprep.subr.mxu0 0.0
    %1395 = vmatpush1.msra.mxu0 0.0
    %1396 = vmatprep.subr.mxu0 0.0
    %1397 = vmatpush1.msra.mxu0 0.0
    %1398 = vmatprep.mubr.f32.mxu0 0.0
    %1399 = vmatmul.mubr.f32.gmra.mrb[0].mxu0 %v1329
    %v1400 = vpop.f32.mrb[0].mxu0
    %v1401 = vadd.f32 %v1326, %v1400
    %v1402 = vpop.f32.mrb[0].mxu0
    %1403 = vmatprep.mubr.f32.mxu0 0.0
    %1404 = vmatmul.mubr.f32.gmra.mrb[0].mxu0 %v1332
    %v1405 = vpop.f32.mrb[0].mxu0
    %v1406 = vadd.f32 %v1326, %v1405
    %v1407 = vpop.f32.mrb[0].mxu0
    %1408 = vdwg.mxu0
    %v1410 = vsel %vm197, %v1300, 0
    %v1413 = vsel %vm197, %v1305, 0
    %v1416 = vsel %vm197, %v1401, 0
    %v1419 = vsel %vm197, %v1406, 0
    %1421 = vmatprep.subr.mxu0 0.0
    %1422 = vmatpush1.xpose.msra.mxu0 %v1416
    %1423 = vmatprep.subr.mxu0 0.0
    %1424 = vmatpush1.xpose.msra.mxu0 %v1419
    %1425 = vmatprep.subr.mxu0 0.0
    %1426 = vmatpush1.xpose.msra.mxu0 0.0
    %1427 = vmatprep.subr.mxu0 0.0
    %1428 = vmatpush1.xpose.msra.mxu0 0.0
    %1429 = vmatprep.subr.mxu0 0.0
    %1430 = vmatpush1.xpose.msra.mxu0 0.0
    %1431 = vmatprep.subr.mxu0 0.0
    %1432 = vmatpush1.xpose.msra.mxu0 0.0
    %1433 = vmatprep.subr.mxu0 0.0
    %1434 = vmatpush1.xpose.msra.mxu0 0.0
    %1435 = vmatprep.subr.mxu0 0.0
    %1436 = vmatpush1.xpose.msra.mxu0 0.0
    %1437 = vmatprep.subr.mxu0 0.0
    %1438 = vmatpush1.xpose.msra.mxu0 0.0
    %1439 = vmatprep.subr.mxu0 0.0
    %1440 = vmatpush1.xpose.msra.mxu0 0.0
    %1441 = vmatprep.subr.mxu0 0.0
    %1442 = vmatpush1.xpose.msra.mxu0 0.0
    %1443 = vmatprep.subr.mxu0 0.0
    %1444 = vmatpush1.xpose.msra.mxu0 0.0
    %1445 = vmatprep.subr.mxu0 0.0
    %1446 = vmatpush1.xpose.msra.mxu0 0.0
    %1447 = vmatprep.subr.mxu0 0.0
    %1448 = vmatpush1.xpose.msra.mxu0 0.0
    %1449 = vmatprep.subr.mxu0 0.0
    %1450 = vmatpush1.xpose.msra.mxu0 0.0
    %1451 = vmatprep.subr.mxu0 0.0
    %1452 = vmatpush1.xpose.msra.mxu0 0.0
    %1453 = vmatprep.subr.mxu0 0.0
    %1454 = vmatpush1.xpose.msra.mxu0 0.0
    %1455 = vmatprep.subr.mxu0 0.0
    %1456 = vmatpush1.xpose.msra.mxu0 0.0
    %1457 = vmatprep.subr.mxu0 0.0
    %1458 = vmatpush1.xpose.msra.mxu0 0.0
    %1459 = vmatprep.subr.mxu0 0.0
    %1460 = vmatpush1.xpose.msra.mxu0 0.0
    %1461 = vmatprep.subr.mxu0 0.0
    %1462 = vmatpush1.xpose.msra.mxu0 0.0
    %1463 = vmatprep.subr.mxu0 0.0
    %1464 = vmatpush1.xpose.msra.mxu0 0.0
    %1465 = vmatprep.subr.mxu0 0.0
    %1466 = vmatpush1.xpose.msra.mxu0 0.0
    %1467 = vmatprep.subr.mxu0 0.0
    %1468 = vmatpush1.xpose.msra.mxu0 0.0
    %1469 = vmatprep.subr.mxu0 0.0
    %1470 = vmatpush1.xpose.msra.mxu0 0.0
    %1471 = vmatprep.subr.mxu0 0.0
    %1472 = vmatpush1.xpose.msra.mxu0 0.0
    %1473 = vmatprep.subr.mxu0 0.0
    %1474 = vmatpush1.xpose.msra.mxu0 0.0
    %1475 = vmatprep.subr.mxu0 0.0
    %1476 = vmatpush1.xpose.msra.mxu0 0.0
    %1477 = vmatprep.subr.mxu0 0.0
    %1478 = vmatpush1.xpose.msra.mxu0 0.0
    %1479 = vmatprep.subr.mxu0 0.0
    %1480 = vmatpush1.xpose.msra.mxu0 0.0
    %1481 = vmatprep.subr.mxu0 0.0
    %1482 = vmatpush1.xpose.msra.mxu0 0.0
    %1483 = vmatprep.subr.mxu0 0.0
    %1484 = vmatpush1.xpose.msra.mxu0 0.0
    %1485 = vmatprep.mubr.f32.mxu0 0.0
    %1486 = vmatmul.mubr.f32.gmra.mrb[0].mxu0 %v1410
    %v1487 = vpop.f32.mrb[0].mxu0
    %v1488 = vadd.f32 0.0, %v1487
    %v1489 = vpop.f32.mrb[0].mxu0
    %1490 = vmatprep.mubr.f32.mxu0 0.0
    %1491 = vmatmul.mubr.f32.gmra.mrb[0].mxu0 %v1413
    %v1492 = vpop.f32.mrb[0].mxu0
    %v1493 = vadd.f32 0.0, %v1492
    %v1494 = vpop.f32.mrb[0].mxu0
    %1495 = vdwg.mxu0
    %v1496 = vmul.f32 %v1488, 0.35355338
    %v1497 = vmul.f32 %v1493, 0.35355338
    %1500 = vrot.lane.b32.xlu0 %v19, 112
    %v1501 = vpop.permute.xlu0 %1500
    %1502 = vrot.lane.b32.xlu0 %v20, 112
    %v1503 = vpop.permute.xlu0 %1502
    %v1506 = vadd.f32 %v1496, %v1501
    %v1507 = vadd.f32 %v1497, %v1503
    %v1508 = vsel %vm285, %v1506, -inf
    %1509 = vmax.xlane.f32.xlu0 %v1508
    %v1510 = vpop.xlane.xlu0 %1509
    %v1511 = vsel %vm285, %v1507, -inf
    %1512 = vmax.xlane.f32.xlu0 %v1511
    %v1513 = vpop.xlane.xlu0 %1512
    %v1514 = vsub.f32 %v1506, %v1510
    %v1515 = vsub.f32 %v1507, %v1513
    %v1516 = vmul.f32 %v1514, 1.442695
    %v1517 = vpow.pop %v1516
    %v1518 = vmul.f32 %v1515, 1.442695
    %v1519 = vpow.pop %v1518
    %v1520 = vsel %vm285, %v1517, 0.0
    %1521 = vadd.xlane.f32.xlu0 %v1520
    %v1522 = vpop.xlane.xlu0 %1521
    %v1523 = vsel %vm285, %v1519, 0.0
    %1524 = vadd.xlane.f32.xlu0 %v1523
    %v1525 = vpop.xlane.xlu0 %1524
    %v1526 = vrcp.pop %v1522
    %v1527 = vrcp.pop %v1525
    %v1528 = vmul.f32 %v1522, %v1526
    %v1529 = vmul.f32 %v1525, %v1527
    %v1530 = vsub.f32 2.0, %v1528
    %v1531 = vsub.f32 2.0, %v1529
    %v1532 = vmul.f32 %v1526, %v1530
    %v1533 = vmul.f32 %v1527, %v1531
    %v1534 = vmul.f32 %v1517, %v1532
    %v1535 = vmul.f32 %v1519, %v1533
    %1536 = vrot.lane.b32.xlu0 %v1401, 96
    %v1537 = vpop.permute.xlu0 %1536
    %1538 = vrot.lane.b32.xlu0 %v1406, 96
    %v1539 = vpop.permute.xlu0 %1538
    %v1543 = vsel %vm285, %v1534, 0
    %v1546 = vsel %vm285, %v1535, 0
    %1548 = vmatprep.subr.mxu0 0.0
    %1549 = vmatpush1.msra.mxu0 %v1537
    %1550 = vmatprep.subr.mxu0 0.0
    %1551 = vmatpush1.msra.mxu0 %v1539
    %1552 = vmatprep.subr.mxu0 0.0
    %1553 = vmatpush1.msra.mxu0 0.0
    %1554 = vmatprep.subr.mxu0 0.0
    %1555 = vmatpush1.msra.mxu0 0.0
    %1556 = vmatprep.subr.mxu0 0.0
    %1557 = vmatpush1.msra.mxu0 0.0
    %1558 = vmatprep.subr.mxu0 0.0
    %1559 = vmatpush1.msra.mxu0 0.0
    %1560 = vmatprep.subr.mxu0 0.0
    %1561 = vmatpush1.msra.mxu0 0.0
    %1562 = vmatprep.subr.mxu0 0.0
    %1563 = vmatpush1.msra.mxu0 0.0
    %1564 = vmatprep.subr.mxu0 0.0
    %1565 = vmatpush1.msra.mxu0 0.0
    %1566 = vmatprep.subr.mxu0 0.0
    %1567 = vmatpush1.msra.mxu0 0.0
    %1568 = vmatprep.subr.mxu0 0.0
    %1569 = vmatpush1.msra.mxu0 0.0
    %1570 = vmatprep.subr.mxu0 0.0
    %1571 = vmatpush1.msra.mxu0 0.0
    %1572 = vmatprep.subr.mxu0 0.0
    %1573 = vmatpush1.msra.mxu0 0.0
    %1574 = vmatprep.subr.mxu0 0.0
    %1575 = vmatpush1.msra.mxu0 0.0
    %1576 = vmatprep.subr.mxu0 0.0
    %1577 = vmatpush1.msra.mxu0 0.0
    %1578 = vmatprep.subr.mxu0 0.0
    %1579 = vmatpush1.msra.mxu0 0.0
    %1580 = vmatprep.subr.mxu0 0.0
    %1581 = vmatpush1.msra.mxu0 0.0
    %1582 = vmatprep.subr.mxu0 0.0
    %1583 = vmatpush1.msra.mxu0 0.0
    %1584 = vmatprep.subr.mxu0 0.0
    %1585 = vmatpush1.msra.mxu0 0.0
    %1586 = vmatprep.subr.mxu0 0.0
    %1587 = vmatpush1.msra.mxu0 0.0
    %1588 = vmatprep.subr.mxu0 0.0
    %1589 = vmatpush1.msra.mxu0 0.0
    %1590 = vmatprep.subr.mxu0 0.0
    %1591 = vmatpush1.msra.mxu0 0.0
    %1592 = vmatprep.subr.mxu0 0.0
    %1593 = vmatpush1.msra.mxu0 0.0
    %1594 = vmatprep.subr.mxu0 0.0
    %1595 = vmatpush1.msra.mxu0 0.0
    %1596 = vmatprep.subr.mxu0 0.0
    %1597 = vmatpush1.msra.mxu0 0.0
    %1598 = vmatprep.subr.mxu0 0.0
    %1599 = vmatpush1.msra.mxu0 0.0
    %1600 = vmatprep.subr.mxu0 0.0
    %1601 = vmatpush1.msra.mxu0 0.0
    %1602 = vmatprep.subr.mxu0 0.0
    %1603 = vmatpush1.msra.mxu0 0.0
    %1604 = vmatprep.subr.mxu0 0.0
    %1605 = vmatpush1.msra.mxu0 0.0
    %1606 = vmatprep.subr.mxu0 0.0
    %1607 = vmatpush1.msra.mxu0 0.0
    %1608 = vmatprep.subr.mxu0 0.0
    %1609 = vmatpush1.msra.mxu0 0.0
    %1610 = vmatprep.subr.mxu0 0.0
    %1611 = vmatpush1.msra.mxu0 0.0
    %1612 = vmatprep.mubr.f32.mxu0 0.0
    %1613 = vmatmul.mubr.f32.gmra.mrb[0].mxu0 %v1543
    %v1614 = vpop.f32.mrb[0].mxu0
    %v1615 = vadd.f32 0.0, %v1614
    %v1616 = vpop.f32.mrb[0].mxu0
    %1617 = vmatprep.mubr.f32.mxu0 0.0
    %1618 = vmatmul.mubr.f32.gmra.mrb[0].mxu0 %v1546
    %v1619 = vpop.f32.mrb[0].mxu0
    %v1620 = vadd.f32 0.0, %v1619
    %v1621 = vpop.f32.mrb[0].mxu0
    %1622 = vdwg.mxu0
    %1623 = vrot.lane.b32.xlu0 %v1300, 120
    %v1624 = vpop.permute.xlu0 %1623
    %1625 = vrot.lane.b32.xlu0 %v1305, 120
    %v1626 = vpop.permute.xlu0 %1625
    %1627 = vrot.lane.b32.xlu0 %v1401, 120
    %v1628 = vpop.permute.xlu0 %1627
    %1629 = vrot.lane.b32.xlu0 %v1406, 120
    %v1630 = vpop.permute.xlu0 %1629
    %v1631 = vsel %vm197, %v1624, 0
    %v1633 = vsel %vm197, %v1626, 0
    %v1635 = vsel %vm197, %v1628, 0
    %v1637 = vsel %vm197, %v1630, 0
    %1639 = vmatprep.subr.mxu0 0.0
    %1640 = vmatpush1.xpose.msra.mxu0 %v1635
    %1641 = vmatprep.subr.mxu0 0.0
    %1642 = vmatpush1.xpose.msra.mxu0 %v1637
    %1643 = vmatprep.subr.mxu0 0.0
    %1644 = vmatpush1.xpose.msra.mxu0 0.0
    %1645 = vmatprep.subr.mxu0 0.0
    %1646 = vmatpush1.xpose.msra.mxu0 0.0
    %1647 = vmatprep.subr.mxu0 0.0
    %1648 = vmatpush1.xpose.msra.mxu0 0.0
    %1649 = vmatprep.subr.mxu0 0.0
    %1650 = vmatpush1.xpose.msra.mxu0 0.0
    %1651 = vmatprep.subr.mxu0 0.0
    %1652 = vmatpush1.xpose.msra.mxu0 0.0
    %1653 = vmatprep.subr.mxu0 0.0
    %1654 = vmatpush1.xpose.msra.mxu0 0.0
    %1655 = vmatprep.subr.mxu0 0.0
    %1656 = vmatpush1.xpose.msra.mxu0 0.0
    %1657 = vmatprep.subr.mxu0 0.0
    %1658 = vmatpush1.xpose.msra.mxu0 0.0
    %1659 = vmatprep.subr.mxu0 0.0
    %1660 = vmatpush1.xpose.msra.mxu0 0.0
    %1661 = vmatprep.subr.mxu0 0.0
    %1662 = vmatpush1.xpose.msra.mxu0 0.0
    %1663 = vmatprep.subr.mxu0 0.0
    %1664 = vmatpush1.xpose.msra.mxu0 0.0
    %1665 = vmatprep.subr.mxu0 0.0
    %1666 = vmatpush1.xpose.msra.mxu0 0.0
    %1667 = vmatprep.subr.mxu0 0.0
    %1668 = vmatpush1.xpose.msra.mxu0 0.0
    %1669 = vmatprep.subr.mxu0 0.0
    %1670 = vmatpush1.xpose.msra.mxu0 0.0
    %1671 = vmatprep.subr.mxu0 0.0
    %1672 = vmatpush1.xpose.msra.mxu0 0.0
    %1673 = vmatprep.subr.mxu0 0.0
    %1674 = vmatpush1.xpose.msra.mxu0 0.0
    %1675 = vmatprep.subr.mxu0 0.0
    %1676 = vmatpush1.xpose.msra.mxu0 0.0
    %1677 = vmatprep.subr.mxu0 0.0
    %1678 = vmatpush1.xpose.msra.mxu0 0.0
    %1679 = vmatprep.subr.mxu0 0.0
    %1680 = vmatpush1.xpose.msra.mxu0 0.0
    %1681 = vmatprep.subr.mxu0 0.0
    %1682 = vmatpush1.xpose.msra.mxu0 0.0
    %1683 = vmatprep.subr.mxu0 0.0
    %1684 = vmatpush1.xpose.msra.mxu0 0.0
    %1685 = vmatprep.subr.mxu0 0.0
    %1686 = vmatpush1.xpose.msra.mxu0 0.0
    %1687 = vmatprep.subr.mxu0 0.0
    %1688 = vmatpush1.xpose.msra.mxu0 0.0
    %1689 = vmatprep.subr.mxu0 0.0
    %1690 = vmatpush1.xpose.msra.mxu0 0.0
    %1691 = vmatprep.subr.mxu0 0.0
    %1692 = vmatpush1.xpose.msra.mxu0 0.0
    %1693 = vmatprep.subr.mxu0 0.0
    %1694 = vmatpush1.xpose.msra.mxu0 0.0
    %1695 = vmatprep.subr.mxu0 0.0
    %1696 = vmatpush1.xpose.msra.mxu0 0.0
    %1697 = vmatprep.subr.mxu0 0.0
    %1698 = vmatpush1.xpose.msra.mxu0 0.0
    %1699 = vmatprep.subr.mxu0 0.0
    %1700 = vmatpush1.xpose.msra.mxu0 0.0
    %1701 = vmatprep.subr.mxu0 0.0
    %1702 = vmatpush1.xpose.msra.mxu0 0.0
    %1703 = vmatprep.mubr.f32.mxu0 0.0
    %1704 = vmatmul.mubr.f32.gmra.mrb[0].mxu0 %v1631
    %v1705 = vpop.f32.mrb[0].mxu0
    %v1706 = vadd.f32 0.0, %v1705
    %v1707 = vpop.f32.mrb[0].mxu0
    %1708 = vmatprep.mubr.f32.mxu0 0.0
    %1709 = vmatmul.mubr.f32.gmra.mrb[0].mxu0 %v1633
    %v1710 = vpop.f32.mrb[0].mxu0
    %v1711 = vadd.f32 0.0, %v1710
    %v1712 = vpop.f32.mrb[0].mxu0
    %1713 = vdwg.mxu0
    %v1714 = vmul.f32 %v1706, 0.35355338
    %v1715 = vmul.f32 %v1711, 0.35355338
    %v1716 = vadd.f32 %v1714, %v1501
    %v1717 = vadd.f32 %v1715, %v1503
    %v1718 = vsel %vm285, %v1716, -inf
    %1719 = vmax.xlane.f32.xlu0 %v1718
    %v1720 = vpop.xlane.xlu0 %1719
    %v1721 = vsel %vm285, %v1717, -inf
    %1722 = vmax.xlane.f32.xlu0 %v1721
    %v1723 = vpop.xlane.xlu0 %1722
    %v1724 = vsub.f32 %v1716, %v1720
    %v1725 = vsub.f32 %v1717, %v1723
    %v1726 = vmul.f32 %v1724, 1.442695
    %v1727 = vpow.pop %v1726
    %v1728 = vmul.f32 %v1725, 1.442695
    %v1729 = vpow.pop %v1728
    %v1730 = vsel %vm285, %v1727, 0.0
    %1731 = vadd.xlane.f32.xlu0 %v1730
    %v1732 = vpop.xlane.xlu0 %1731
    %v1733 = vsel %vm285, %v1729, 0.0
    %1734 = vadd.xlane.f32.xlu0 %v1733
    %v1735 = vpop.xlane.xlu0 %1734
    %v1736 = vrcp.pop %v1732
    %v1737 = vrcp.pop %v1735
    %v1738 = vmul.f32 %v1732, %v1736
    %v1739 = vmul.f32 %v1735, %v1737
    %v1740 = vsub.f32 2.0, %v1738
    %v1741 = vsub.f32 2.0, %v1739
    %v1742 = vmul.f32 %v1736, %v1740
    %v1743 = vmul.f32 %v1737, %v1741
    %v1744 = vmul.f32 %v1727, %v1742
    %v1745 = vmul.f32 %v1729, %v1743
    %1746 = vrot.lane.b32.xlu0 %v1401, 88
    %v1747 = vpop.permute.xlu0 %1746
    %1748 = vrot.lane.b32.xlu0 %v1406, 88
    %v1749 = vpop.permute.xlu0 %1748
    %v1753 = vsel %vm285, %v1744, 0
    %v1756 = vsel %vm285, %v1745, 0
    %1758 = vmatprep.subr.mxu0 0.0
    %1759 = vmatpush1.msra.mxu0 %v1747
    %1760 = vmatprep.subr.mxu0 0.0
    %1761 = vmatpush1.msra.mxu0 %v1749
    %1762 = vmatprep.subr.mxu0 0.0
    %1763 = vmatpush1.msra.mxu0 0.0
    %1764 = vmatprep.subr.mxu0 0.0
    %1765 = vmatpush1.msra.mxu0 0.0
    %1766 = vmatprep.subr.mxu0 0.0
    %1767 = vmatpush1.msra.mxu0 0.0
    %1768 = vmatprep.subr.mxu0 0.0
    %1769 = vmatpush1.msra.mxu0 0.0
    %1770 = vmatprep.subr.mxu0 0.0
    %1771 = vmatpush1.msra.mxu0 0.0
    %1772 = vmatprep.subr.mxu0 0.0
    %1773 = vmatpush1.msra.mxu0 0.0
    %1774 = vmatprep.subr.mxu0 0.0
    %1775 = vmatpush1.msra.mxu0 0.0
    %1776 = vmatprep.subr.mxu0 0.0
    %1777 = vmatpush1.msra.mxu0 0.0
    %1778 = vmatprep.subr.mxu0 0.0
    %1779 = vmatpush1.msra.mxu0 0.0
    %1780 = vmatprep.subr.mxu0 0.0
    %1781 = vmatpush1.msra.mxu0 0.0
    %1782 = vmatprep.subr.mxu0 0.0
    %1783 = vmatpush1.msra.mxu0 0.0
    %1784 = vmatprep.subr.mxu0 0.0
    %1785 = vmatpush1.msra.mxu0 0.0
    %1786 = vmatprep.subr.mxu0 0.0
    %1787 = vmatpush1.msra.mxu0 0.0
    %1788 = vmatprep.subr.mxu0 0.0
    %1789 = vmatpush1.msra.mxu0 0.0
    %1790 = vmatprep.subr.mxu0 0.0
    %1791 = vmatpush1.msra.mxu0 0.0
    %1792 = vmatprep.subr.mxu0 0.0
    %1793 = vmatpush1.msra.mxu0 0.0
    %1794 = vmatprep.subr.mxu0 0.0
    %1795 = vmatpush1.msra.mxu0 0.0
    %1796 = vmatprep.subr.mxu0 0.0
    %1797 = vmatpush1.msra.mxu0 0.0
    %1798 = vmatprep.subr.mxu0 0.0
    %1799 = vmatpush1.msra.mxu0 0.0
    %1800 = vmatprep.subr.mxu0 0.0
    %1801 = vmatpush1.msra.mxu0 0.0
    %1802 = vmatprep.subr.mxu0 0.0
    %1803 = vmatpush1.msra.mxu0 0.0
    %1804 = vmatprep.subr.mxu0 0.0
    %1805 = vmatpush1.msra.mxu0 0.0
    %1806 = vmatprep.subr.mxu0 0.0
    %1807 = vmatpush1.msra.mxu0 0.0
    %1808 = vmatprep.subr.mxu0 0.0
    %1809 = vmatpush1.msra.mxu0 0.0
    %1810 = vmatprep.subr.mxu0 0.0
    %1811 = vmatpush1.msra.mxu0 0.0
    %1812 = vmatprep.subr.mxu0 0.0
    %1813 = vmatpush1.msra.mxu0 0.0
    %1814 = vmatprep.subr.mxu0 0.0
    %1815 = vmatpush1.msra.mxu0 0.0
    %1816 = vmatprep.subr.mxu0 0.0
    %1817 = vmatpush1.msra.mxu0 0.0
    %1818 = vmatprep.subr.mxu0 0.0
    %1819 = vmatpush1.msra.mxu0 0.0
    %1820 = vmatprep.subr.mxu0 0.0
    %1821 = vmatpush1.msra.mxu0 0.0
    %1822 = vmatprep.mubr.f32.mxu0 0.0
    %1823 = vmatmul.mubr.f32.gmra.mrb[0].mxu0 %v1753
    %v1824 = vpop.f32.mrb[0].mxu0
    %v1825 = vadd.f32 0.0, %v1824
    %v1826 = vpop.f32.mrb[0].mxu0
    %1827 = vmatprep.mubr.f32.mxu0 0.0
    %1828 = vmatmul.mubr.f32.gmra.mrb[0].mxu0 %v1756
    %v1829 = vpop.f32.mrb[0].mxu0
    %v1830 = vadd.f32 0.0, %v1829
    %v1831 = vpop.f32.mrb[0].mxu0
    %1832 = vdwg.mxu0
    %1833 = vrot.lane.b32.xlu0 %v1300, 112
    %v1834 = vpop.permute.xlu0 %1833
    %1835 = vrot.lane.b32.xlu0 %v1305, 112
    %v1836 = vpop.permute.xlu0 %1835
    %1837 = vrot.lane.b32.xlu0 %v1401, 112
    %v1838 = vpop.permute.xlu0 %1837
    %1839 = vrot.lane.b32.xlu0 %v1406, 112
    %v1840 = vpop.permute.xlu0 %1839
    %v1841 = vsel %vm197, %v1834, 0
    %v1843 = vsel %vm197, %v1836, 0
    %v1845 = vsel %vm197, %v1838, 0
    %v1847 = vsel %vm197, %v1840, 0
    %1849 = vmatprep.subr.mxu0 0.0
    %1850 = vmatpush1.xpose.msra.mxu0 %v1845
    %1851 = vmatprep.subr.mxu0 0.0
    %1852 = vmatpush1.xpose.msra.mxu0 %v1847
    %1853 = vmatprep.subr.mxu0 0.0
    %1854 = vmatpush1.xpose.msra.mxu0 0.0
    %1855 = vmatprep.subr.mxu0 0.0
    %1856 = vmatpush1.xpose.msra.mxu0 0.0
    %1857 = vmatprep.subr.mxu0 0.0
    %1858 = vmatpush1.xpose.msra.mxu0 0.0
    %1859 = vmatprep.subr.mxu0 0.0
    %1860 = vmatpush1.xpose.msra.mxu0 0.0
    %1861 = vmatprep.subr.mxu0 0.0
    %1862 = vmatpush1.xpose.msra.mxu0 0.0
    %1863 = vmatprep.subr.mxu0 0.0
    %1864 = vmatpush1.xpose.msra.mxu0 0.0
    %1865 = vmatprep.subr.mxu0 0.0
    %1866 = vmatpush1.xpose.msra.mxu0 0.0
    %1867 = vmatprep.subr.mxu0 0.0
    %1868 = vmatpush1.xpose.msra.mxu0 0.0
    %1869 = vmatprep.subr.mxu0 0.0
    %1870 = vmatpush1.xpose.msra.mxu0 0.0
    %1871 = vmatprep.subr.mxu0 0.0
    %1872 = vmatpush1.xpose.msra.mxu0 0.0
    %1873 = vmatprep.subr.mxu0 0.0
    %1874 = vmatpush1.xpose.msra.mxu0 0.0
    %1875 = vmatprep.subr.mxu0 0.0
    %1876 = vmatpush1.xpose.msra.mxu0 0.0
    %1877 = vmatprep.subr.mxu0 0.0
    %1878 = vmatpush1.xpose.msra.mxu0 0.0
    %1879 = vmatprep.subr.mxu0 0.0
    %1880 = vmatpush1.xpose.msra.mxu0 0.0
    %1881 = vmatprep.subr.mxu0 0.0
    %1882 = vmatpush1.xpose.msra.mxu0 0.0
    %1883 = vmatprep.subr.mxu0 0.0
    %1884 = vmatpush1.xpose.msra.mxu0 0.0
    %1885 = vmatprep.subr.mxu0 0.0
    %1886 = vmatpush1.xpose.msra.mxu0 0.0
    %1887 = vmatprep.subr.mxu0 0.0
    %1888 = vmatpush1.xpose.msra.mxu0 0.0
    %1889 = vmatprep.subr.mxu0 0.0
    %1890 = vmatpush1.xpose.msra.mxu0 0.0
    %1891 = vmatprep.subr.mxu0 0.0
    %1892 = vmatpush1.xpose.msra.mxu0 0.0
    %1893 = vmatprep.subr.mxu0 0.0
    %1894 = vmatpush1.xpose.msra.mxu0 0.0
    %1895 = vmatprep.subr.mxu0 0.0
    %1896 = vmatpush1.xpose.msra.mxu0 0.0
    %1897 = vmatprep.subr.mxu0 0.0
    %1898 = vmatpush1.xpose.msra.mxu0 0.0
    %1899 = vmatprep.subr.mxu0 0.0
    %1900 = vmatpush1.xpose.msra.mxu0 0.0
    %1901 = vmatprep.subr.mxu0 0.0
    %1902 = vmatpush1.xpose.msra.mxu0 0.0
    %1903 = vmatprep.subr.mxu0 0.0
    %1904 = vmatpush1.xpose.msra.mxu0 0.0
    %1905 = vmatprep.subr.mxu0 0.0
    %1906 = vmatpush1.xpose.msra.mxu0 0.0
    %1907 = vmatprep.subr.mxu0 0.0
    %1908 = vmatpush1.xpose.msra.mxu0 0.0
    %1909 = vmatprep.subr.mxu0 0.0
    %1910 = vmatpush1.xpose.msra.mxu0 0.0
    %1911 = vmatprep.subr.mxu0 0.0
    %1912 = vmatpush1.xpose.msra.mxu0 0.0
    %1913 = vmatprep.mubr.f32.mxu0 0.0
    %1914 = vmatmul.mubr.f32.gmra.mrb[0].mxu0 %v1841
    %v1915 = vpop.f32.mrb[0].mxu0
    %v1916 = vadd.f32 0.0, %v1915
    %v1917 = vpop.f32.mrb[0].mxu0
    %1918 = vmatprep.mubr.f32.mxu0 0.0
    %1919 = vmatmul.mubr.f32.gmra.mrb[0].mxu0 %v1843
    %v1920 = vpop.f32.mrb[0].mxu0
    %v1921 = vadd.f32 0.0, %v1920
    %v1922 = vpop.f32.mrb[0].mxu0
    %1923 = vdwg.mxu0
    %v1924 = vmul.f32 %v1916, 0.35355338
    %v1925 = vmul.f32 %v1921, 0.35355338
    %v1926 = vadd.f32 %v1924, %v1501
    %v1927 = vadd.f32 %v1925, %v1503
    %v1928 = vsel %vm285, %v1926, -inf
    %1929 = vmax.xlane.f32.xlu0 %v1928
    %v1930 = vpop.xlane.xlu0 %1929
    %v1931 = vsel %vm285, %v1927, -inf
    %1932 = vmax.xlane.f32.xlu0 %v1931
    %v1933 = vpop.xlane.xlu0 %1932
    %v1934 = vsub.f32 %v1926, %v1930
    %v1935 = vsub.f32 %v1927, %v1933
    %v1936 = vmul.f32 %v1934, 1.442695
    %v1937 = vpow.pop %v1936
    %v1938 = vmul.f32 %v1935, 1.442695
    %v1939 = vpow.pop %v1938
    %v1940 = vsel %vm285, %v1937, 0.0
    %1941 = vadd.xlane.f32.xlu0 %v1940
    %v1942 = vpop.xlane.xlu0 %1941
    %v1943 = vsel %vm285, %v1939, 0.0
    %1944 = vadd.xlane.f32.xlu0 %v1943
    %v1945 = vpop.xlane.xlu0 %1944
    %v1946 = vrcp.pop %v1942
    %v1947 = vrcp.pop %v1945
    %v1948 = vmul.f32 %v1942, %v1946
    %v1949 = vmul.f32 %v1945, %v1947
    %v1950 = vsub.f32 2.0, %v1948
    %v1951 = vsub.f32 2.0, %v1949
    %v1952 = vmul.f32 %v1946, %v1950
    %v1953 = vmul.f32 %v1947, %v1951
    %v1954 = vmul.f32 %v1937, %v1952
    %v1955 = vmul.f32 %v1939, %v1953
    %1956 = vrot.lane.b32.xlu0 %v1401, 80
    %v1957 = vpop.permute.xlu0 %1956
    %1958 = vrot.lane.b32.xlu0 %v1406, 80
    %v1959 = vpop.permute.xlu0 %1958
    %v1963 = vsel %vm285, %v1954, 0
    %v1966 = vsel %vm285, %v1955, 0
    %1968 = vmatprep.subr.mxu0 0.0
    %1969 = vmatpush1.msra.mxu0 %v1957
    %1970 = vmatprep.subr.mxu0 0.0
    %1971 = vmatpush1.msra.mxu0 %v1959
    %1972 = vmatprep.subr.mxu0 0.0
    %1973 = vmatpush1.msra.mxu0 0.0
    %1974 = vmatprep.subr.mxu0 0.0
    %1975 = vmatpush1.msra.mxu0 0.0
    %1976 = vmatprep.subr.mxu0 0.0
    %1977 = vmatpush1.msra.mxu0 0.0
    %1978 = vmatprep.subr.mxu0 0.0
    %1979 = vmatpush1.msra.mxu0 0.0
    %1980 = vmatprep.subr.mxu0 0.0
    %1981 = vmatpush1.msra.mxu0 0.0
    %1982 = vmatprep.subr.mxu0 0.0
    %1983 = vmatpush1.msra.mxu0 0.0
    %1984 = vmatprep.subr.mxu0 0.0
    %1985 = vmatpush1.msra.mxu0 0.0
    %1986 = vmatprep.subr.mxu0 0.0
    %1987 = vmatpush1.msra.mxu0 0.0
    %1988 = vmatprep.subr.mxu0 0.0
    %1989 = vmatpush1.msra.mxu0 0.0
    %1990 = vmatprep.subr.mxu0 0.0
    %1991 = vmatpush1.msra.mxu0 0.0
    %1992 = vmatprep.subr.mxu0 0.0
    %1993 = vmatpush1.msra.mxu0 0.0
    %1994 = vmatprep.subr.mxu0 0.0
    %1995 = vmatpush1.msra.mxu0 0.0
    %1996 = vmatprep.subr.mxu0 0.0
    %1997 = vmatpush1.msra.mxu0 0.0
    %1998 = vmatprep.subr.mxu0 0.0
    %1999 = vmatpush1.msra.mxu0 0.0
    %2000 = vmatprep.subr.mxu0 0.0
    %2001 = vmatpush1.msra.mxu0 0.0
    %2002 = vmatprep.subr.mxu0 0.0
    %2003 = vmatpush1.msra.mxu0 0.0
    %2004 = vmatprep.subr.mxu0 0.0
    %2005 = vmatpush1.msra.mxu0 0.0
    %2006 = vmatprep.subr.mxu0 0.0
    %2007 = vmatpush1.msra.mxu0 0.0
    %2008 = vmatprep.subr.mxu0 0.0
    %2009 = vmatpush1.msra.mxu0 0.0
    %2010 = vmatprep.subr.mxu0 0.0
    %2011 = vmatpush1.msra.mxu0 0.0
    %2012 = vmatprep.subr.mxu0 0.0
    %2013 = vmatpush1.msra.mxu0 0.0
    %2014 = vmatprep.subr.mxu0 0.0
    %2015 = vmatpush1.msra.mxu0 0.0
    %2016 = vmatprep.subr.mxu0 0.0
    %2017 = vmatpush1.msra.mxu0 0.0
    %2018 = vmatprep.subr.mxu0 0.0
    %2019 = vmatpush1.msra.mxu0 0.0
    %2020 = vmatprep.subr.mxu0 0.0
    %2021 = vmatpush1.msra.mxu0 0.0
    %2022 = vmatprep.subr.mxu0 0.0
    %2023 = vmatpush1.msra.mxu0 0.0
    %2024 = vmatprep.subr.mxu0 0.0
    %2025 = vmatpush1.msra.mxu0 0.0
    %2026 = vmatprep.subr.mxu0 0.0
    %2027 = vmatpush1.msra.mxu0 0.0
    %2028 = vmatprep.subr.mxu0 0.0
    %2029 = vmatpush1.msra.mxu0 0.0
    %2030 = vmatprep.subr.mxu0 0.0
    %2031 = vmatpush1.msra.mxu0 0.0
    %2032 = vmatprep.mubr.f32.mxu0 0.0
    %2033 = vmatmul.mubr.f32.gmra.mrb[0].mxu0 %v1963
    %v2034 = vpop.f32.mrb[0].mxu0
    %v2035 = vadd.f32 0.0, %v2034
    %v2036 = vpop.f32.mrb[0].mxu0
    %2037 = vmatprep.mubr.f32.mxu0 0.0
    %2038 = vmatmul.mubr.f32.gmra.mrb[0].mxu0 %v1966
    %v2039 = vpop.f32.mrb[0].mxu0
    %v2040 = vadd.f32 0.0, %v2039
    %v2041 = vpop.f32.mrb[0].mxu0
    %2042 = vdwg.mxu0
    %2043 = vrot.lane.b32.xlu0 %v1300, 104
    %v2044 = vpop.permute.xlu0 %2043
    %2045 = vrot.lane.b32.xlu0 %v1305, 104
    %v2046 = vpop.permute.xlu0 %2045
    %2047 = vrot.lane.b32.xlu0 %v1401, 104
    %v2048 = vpop.permute.xlu0 %2047
    %2049 = vrot.lane.b32.xlu0 %v1406, 104
    %v2050 = vpop.permute.xlu0 %2049
    %v2051 = vsel %vm197, %v2044, 0
    %v2053 = vsel %vm197, %v2046, 0
    %v2055 = vsel %vm197, %v2048, 0
    %v2057 = vsel %vm197, %v2050, 0
    %2059 = vmatprep.subr.mxu0 0.0
    %2060 = vmatpush1.xpose.msra.mxu0 %v2055
    %2061 = vmatprep.subr.mxu0 0.0
    %2062 = vmatpush1.xpose.msra.mxu0 %v2057
    %2063 = vmatprep.subr.mxu0 0.0
    %2064 = vmatpush1.xpose.msra.mxu0 0.0
    %2065 = vmatprep.subr.mxu0 0.0
    %2066 = vmatpush1.xpose.msra.mxu0 0.0
    %2067 = vmatprep.subr.mxu0 0.0
    %2068 = vmatpush1.xpose.msra.mxu0 0.0
    %2069 = vmatprep.subr.mxu0 0.0
    %2070 = vmatpush1.xpose.msra.mxu0 0.0
    %2071 = vmatprep.subr.mxu0 0.0
    %2072 = vmatpush1.xpose.msra.mxu0 0.0
    %2073 = vmatprep.subr.mxu0 0.0
    %2074 = vmatpush1.xpose.msra.mxu0 0.0
    %2075 = vmatprep.subr.mxu0 0.0
    %2076 = vmatpush1.xpose.msra.mxu0 0.0
    %2077 = vmatprep.subr.mxu0 0.0
    %2078 = vmatpush1.xpose.msra.mxu0 0.0
    %2079 = vmatprep.subr.mxu0 0.0
    %2080 = vmatpush1.xpose.msra.mxu0 0.0
    %2081 = vmatprep.subr.mxu0 0.0
    %2082 = vmatpush1.xpose.msra.mxu0 0.0
    %2083 = vmatprep.subr.mxu0 0.0
    %2084 = vmatpush1.xpose.msra.mxu0 0.0
    %2085 = vmatprep.subr.mxu0 0.0
    %2086 = vmatpush1.xpose.msra.mxu0 0.0
    %2087 = vmatprep.subr.mxu0 0.0
    %2088 = vmatpush1.xpose.msra.mxu0 0.0
    %2089 = vmatprep.subr.mxu0 0.0
    %2090 = vmatpush1.xpose.msra.mxu0 0.0
    %2091 = vmatprep.subr.mxu0 0.0
    %2092 = vmatpush1.xpose.msra.mxu0 0.0
    %2093 = vmatprep.subr.mxu0 0.0
    %2094 = vmatpush1.xpose.msra.mxu0 0.0
    %2095 = vmatprep.subr.mxu0 0.0
    %2096 = vmatpush1.xpose.msra.mxu0 0.0
    %2097 = vmatprep.subr.mxu0 0.0
    %2098 = vmatpush1.xpose.msra.mxu0 0.0
    %2099 = vmatprep.subr.mxu0 0.0
    %2100 = vmatpush1.xpose.msra.mxu0 0.0
    %2101 = vmatprep.subr.mxu0 0.0
    %2102 = vmatpush1.xpose.msra.mxu0 0.0
    %2103 = vmatprep.subr.mxu0 0.0
    %2104 = vmatpush1.xpose.msra.mxu0 0.0
    %2105 = vmatprep.subr.mxu0 0.0
    %2106 = vmatpush1.xpose.msra.mxu0 0.0
    %2107 = vmatprep.subr.mxu0 0.0
    %2108 = vmatpush1.xpose.msra.mxu0 0.0
    %2109 = vmatprep.subr.mxu0 0.0
    %2110 = vmatpush1.xpose.msra.mxu0 0.0
    %2111 = vmatprep.subr.mxu0 0.0
    %2112 = vmatpush1.xpose.msra.mxu0 0.0
    %2113 = vmatprep.subr.mxu0 0.0
    %2114 = vmatpush1.xpose.msra.mxu0 0.0
    %2115 = vmatprep.subr.mxu0 0.0
    %2116 = vmatpush1.xpose.msra.mxu0 0.0
    %2117 = vmatprep.subr.mxu0 0.0
    %2118 = vmatpush1.xpose.msra.mxu0 0.0
    %2119 = vmatprep.subr.mxu0 0.0
    %2120 = vmatpush1.xpose.msra.mxu0 0.0
    %2121 = vmatprep.subr.mxu0 0.0
    %2122 = vmatpush1.xpose.msra.mxu0 0.0
    %2123 = vmatprep.mubr.f32.mxu0 0.0
    %2124 = vmatmul.mubr.f32.gmra.mrb[0].mxu0 %v2051
    %v2125 = vpop.f32.mrb[0].mxu0
    %v2126 = vadd.f32 0.0, %v2125
    %v2127 = vpop.f32.mrb[0].mxu0
    %2128 = vmatprep.mubr.f32.mxu0 0.0
    %2129 = vmatmul.mubr.f32.gmra.mrb[0].mxu0 %v2053
    %v2130 = vpop.f32.mrb[0].mxu0
    %v2131 = vadd.f32 0.0, %v2130
    %v2132 = vpop.f32.mrb[0].mxu0
    %2133 = vdwg.mxu0
    %v2134 = vmul.f32 %v2126, 0.35355338
    %v2135 = vmul.f32 %v2131, 0.35355338
    %v2136 = vadd.f32 %v2134, %v1501
    %v2137 = vadd.f32 %v2135, %v1503
    %v2138 = vsel %vm285, %v2136, -inf
    %2139 = vmax.xlane.f32.xlu0 %v2138
    %v2140 = vpop.xlane.xlu0 %2139
    %v2141 = vsel %vm285, %v2137, -inf
    %2142 = vmax.xlane.f32.xlu0 %v2141
    %v2143 = vpop.xlane.xlu0 %2142
    %v2144 = vsub.f32 %v2136, %v2140
    %v2145 = vsub.f32 %v2137, %v2143
    %v2146 = vmul.f32 %v2144, 1.442695
    %v2147 = vpow.pop %v2146
    %v2148 = vmul.f32 %v2145, 1.442695
    %v2149 = vpow.pop %v2148
    %v2150 = vsel %vm285, %v2147, 0.0
    %2151 = vadd.xlane.f32.xlu0 %v2150
    %v2152 = vpop.xlane.xlu0 %2151
    %v2153 = vsel %vm285, %v2149, 0.0
    %2154 = vadd.xlane.f32.xlu0 %v2153
    %v2155 = vpop.xlane.xlu0 %2154
    %v2156 = vrcp.pop %v2152
    %v2157 = vrcp.pop %v2155
    %v2158 = vmul.f32 %v2152, %v2156
    %v2159 = vmul.f32 %v2155, %v2157
    %v2160 = vsub.f32 2.0, %v2158
    %v2161 = vsub.f32 2.0, %v2159
    %v2162 = vmul.f32 %v2156, %v2160
    %v2163 = vmul.f32 %v2157, %v2161
    %v2164 = vmul.f32 %v2147, %v2162
    %v2165 = vmul.f32 %v2149, %v2163
    %2166 = vrot.lane.b32.xlu0 %v1401, 72
    %v2167 = vpop.permute.xlu0 %2166
    %2168 = vrot.lane.b32.xlu0 %v1406, 72
    %v2169 = vpop.permute.xlu0 %2168
    %v2173 = vsel %vm285, %v2164, 0
    %v2176 = vsel %vm285, %v2165, 0
    %2178 = vmatprep.subr.mxu0 0.0
    %2179 = vmatpush1.msra.mxu0 %v2167
    %2180 = vmatprep.subr.mxu0 0.0
    %2181 = vmatpush1.msra.mxu0 %v2169
    %2182 = vmatprep.subr.mxu0 0.0
    %2183 = vmatpush1.msra.mxu0 0.0
    %2184 = vmatprep.subr.mxu0 0.0
    %2185 = vmatpush1.msra.mxu0 0.0
    %2186 = vmatprep.subr.mxu0 0.0
    %2187 = vmatpush1.msra.mxu0 0.0
    %2188 = vmatprep.subr.mxu0 0.0
    %2189 = vmatpush1.msra.mxu0 0.0
    %2190 = vmatprep.subr.mxu0 0.0
    %2191 = vmatpush1.msra.mxu0 0.0
    %2192 = vmatprep.subr.mxu0 0.0
    %2193 = vmatpush1.msra.mxu0 0.0
    %2194 = vmatprep.subr.mxu0 0.0
    %2195 = vmatpush1.msra.mxu0 0.0
    %2196 = vmatprep.subr.mxu0 0.0
    %2197 = vmatpush1.msra.mxu0 0.0
    %2198 = vmatprep.subr.mxu0 0.0
    %2199 = vmatpush1.msra.mxu0 0.0
    %2200 = vmatprep.subr.mxu0 0.0
    %2201 = vmatpush1.msra.mxu0 0.0
    %2202 = vmatprep.subr.mxu0 0.0
    %2203 = vmatpush1.msra.mxu0 0.0
    %2204 = vmatprep.subr.mxu0 0.0
    %2205 = vmatpush1.msra.mxu0 0.0
    %2206 = vmatprep.subr.mxu0 0.0
    %2207 = vmatpush1.msra.mxu0 0.0
    %2208 = vmatprep.subr.mxu0 0.0
    %2209 = vmatpush1.msra.mxu0 0.0
    %2210 = vmatprep.subr.mxu0 0.0
    %2211 = vmatpush1.msra.mxu0 0.0
    %2212 = vmatprep.subr.mxu0 0.0
    %2213 = vmatpush1.msra.mxu0 0.0
    %2214 = vmatprep.subr.mxu0 0.0
    %2215 = vmatpush1.msra.mxu0 0.0
    %2216 = vmatprep.subr.mxu0 0.0
    %2217 = vmatpush1.msra.mxu0 0.0
    %2218 = vmatprep.subr.mxu0 0.0
    %2219 = vmatpush1.msra.mxu0 0.0
    %2220 = vmatprep.subr.mxu0 0.0
    %2221 = vmatpush1.msra.mxu0 0.0
    %2222 = vmatprep.subr.mxu0 0.0
    %2223 = vmatpush1.msra.mxu0 0.0
    %2224 = vmatprep.subr.mxu0 0.0
    %2225 = vmatpush1.msra.mxu0 0.0
    %2226 = vmatprep.subr.mxu0 0.0
    %2227 = vmatpush1.msra.mxu0 0.0
    %2228 = vmatprep.subr.mxu0 0.0
    %2229 = vmatpush1.msra.mxu0 0.0
    %2230 = vmatprep.subr.mxu0 0.0
    %2231 = vmatpush1.msra.mxu0 0.0
    %2232 = vmatprep.subr.mxu0 0.0
    %2233 = vmatpush1.msra.mxu0 0.0
    %2234 = vmatprep.subr.mxu0 0.0
    %2235 = vmatpush1.msra.mxu0 0.0
    %2236 = vmatprep.subr.mxu0 0.0
    %2237 = vmatpush1.msra.mxu0 0.0
    %2238 = vmatprep.subr.mxu0 0.0
    %2239 = vmatpush1.msra.mxu0 0.0
    %2240 = vmatprep.subr.mxu0 0.0
    %2241 = vmatpush1.msra.mxu0 0.0
    %2242 = vmatprep.mubr.f32.mxu0 0.0
    %2243 = vmatmul.mubr.f32.gmra.mrb[0].mxu0 %v2173
    %v2244 = vpop.f32.mrb[0].mxu0
    %v2245 = vadd.f32 0.0, %v2244
    %v2246 = vpop.f32.mrb[0].mxu0
    %2247 = vmatprep.mubr.f32.mxu0 0.0
    %2248 = vmatmul.mubr.f32.gmra.mrb[0].mxu0 %v2176
    %v2249 = vpop.f32.mrb[0].mxu0
    %v2250 = vadd.f32 0.0, %v2249
    %v2251 = vpop.f32.mrb[0].mxu0
    %2252 = vdwg.mxu0
    %2255 = vrot.lane.b32.xlu0 %v1825, 8
    %v2256 = vpop.permute.xlu0 %2255
    %2257 = vrot.lane.b32.xlu0 %v1830, 8
    %v2258 = vpop.permute.xlu0 %2257
    %2263 = vrot.lane.b32.xlu0 %v2035, 16
    %v2264 = vpop.permute.xlu0 %2263
    %2265 = vrot.lane.b32.xlu0 %v2040, 16
    %v2266 = vpop.permute.xlu0 %2265
    %2271 = vrot.lane.b32.xlu0 %v2245, 24
    %v2272 = vpop.permute.xlu0 %2271
    %2273 = vrot.lane.b32.xlu0 %v2250, 24
    %v2274 = vpop.permute.xlu0 %2273
    %v2277 = vsel %vm197, %v1615, %v2256
    %v2278 = vsel %vm197, %v1620, %v2258
    %v2279 = vsel %vm285, %v2277, %v2264
    %v2280 = vsel %vm285, %v2278, %v2266
    %v2281 = vsel %vm1059, %v2279, %v2272
    %v2282 = vsel %vm1059, %v2280, %v2274
    %2283 = vrot.lane.b32.xlu0 %v25, 32
    %v2284 = vpop.permute.xlu0 %2283
    %2285 = vrot.lane.b32.xlu0 %v26, 32
    %v2286 = vpop.permute.xlu0 %2285
    %2287 = vrot.lane.b32.xlu0 %v27, 32
    %v2288 = vpop.permute.xlu0 %2287
    %2289 = vrot.lane.b32.xlu0 %v28, 32
    %v2290 = vpop.permute.xlu0 %2289
    %2295 = vrot.lane.b32.xlu0 %v1226, 32
    %v2296 = vpop.permute.xlu0 %2295
    %v2299 = vsel %vm45, %v2281, 0
    %v2302 = vsel %vm45, %v2282, 0
    %2304 = vmatprep.subr.mxu0 0.0
    %2305 = vmatpush1.msra.mxu0 %v2284
    %2306 = vmatprep.subr.mxu0 0.0
    %2307 = vmatpush1.msra.mxu0 %v2286
    %2308 = vmatprep.subr.mxu0 0.0
    %2309 = vmatpush1.msra.mxu0 %v2288
    %2310 = vmatprep.subr.mxu0 0.0
    %2311 = vmatpush1.msra.mxu0 %v2290
    %2312 = vmatprep.subr.mxu0 0.0
    %2313 = vmatpush1.msra.mxu0 0.0
    %2314 = vmatprep.subr.mxu0 0.0
    %2315 = vmatpush1.msra.mxu0 0.0
    %2316 = vmatprep.subr.mxu0 0.0
    %2317 = vmatpush1.msra.mxu0 0.0
    %2318 = vmatprep.subr.mxu0 0.0
    %2319 = vmatpush1.msra.mxu0 0.0
    %2320 = vmatprep.subr.mxu0 0.0
    %2321 = vmatpush1.msra.mxu0 0.0
    %2322 = vmatprep.subr.mxu0 0.0
    %2323 = vmatpush1.msra.mxu0 0.0
    %2324 = vmatprep.subr.mxu0 0.0
    %2325 = vmatpush1.msra.mxu0 0.0
    %2326 = vmatprep.subr.mxu0 0.0
    %2327 = vmatpush1.msra.mxu0 0.0
    %2328 = vmatprep.subr.mxu0 0.0
    %2329 = vmatpush1.msra.mxu0 0.0
    %2330 = vmatprep.subr.mxu0 0.0
    %2331 = vmatpush1.msra.mxu0 0.0
    %2332 = vmatprep.subr.mxu0 0.0
    %2333 = vmatpush1.msra.mxu0 0.0
    %2334 = vmatprep.subr.mxu0 0.0
    %2335 = vmatpush1.msra.mxu0 0.0
    %2336 = vmatprep.subr.mxu0 0.0
    %2337 = vmatpush1.msra.mxu0 0.0
    %2338 = vmatprep.subr.mxu0 0.0
    %2339 = vmatpush1.msra.mxu0 0.0
    %2340 = vmatprep.subr.mxu0 0.0
    %2341 = vmatpush1.msra.mxu0 0.0
    %2342 = vmatprep.subr.mxu0 0.0
    %2343 = vmatpush1.msra.mxu0 0.0
    %2344 = vmatprep.subr.mxu0 0.0
    %2345 = vmatpush1.msra.mxu0 0.0
    %2346 = vmatprep.subr.mxu0 0.0
    %2347 = vmatpush1.msra.mxu0 0.0
    %2348 = vmatprep.subr.mxu0 0.0
    %2349 = vmatpush1.msra.mxu0 0.0
    %2350 = vmatprep.subr.mxu0 0.0
    %2351 = vmatpush1.msra.mxu0 0.0
    %2352 = vmatprep.subr.mxu0 0.0
    %2353 = vmatpush1.msra.mxu0 0.0
    %2354 = vmatprep.subr.mxu0 0.0
    %2355 = vmatpush1.msra.mxu0 0.0
    %2356 = vmatprep.subr.mxu0 0.0
    %2357 = vmatpush1.msra.mxu0 0.0
    %2358 = vmatprep.subr.mxu0 0.0
    %2359 = vmatpush1.msra.mxu0 0.0
    %2360 = vmatprep.subr.mxu0 0.0
    %2361 = vmatpush1.msra.mxu0 0.0
    %2362 = vmatprep.subr.mxu0 0.0
    %2363 = vmatpush1.msra.mxu0 0.0
    %2364 = vmatprep.subr.mxu0 0.0
    %2365 = vmatpush1.msra.mxu0 0.0
    %2366 = vmatprep.subr.mxu0 0.0
    %2367 = vmatpush1.msra.mxu0 0.0
    %2368 = vmatprep.mubr.f32.mxu0 0.0
    %2369 = vmatmul.mubr.f32.gmra.mrb[0].mxu0 %v2299
    %v2370 = vpop.f32.mrb[0].mxu0
    %v2371 = vadd.f32 %v2296, %v2370
    %v2372 = vpop.f32.mrb[0].mxu0
    %2373 = vmatprep.mubr.f32.mxu0 0.0
    %2374 = vmatmul.mubr.f32.gmra.mrb[0].mxu0 %v2302
    %v2375 = vpop.f32.mrb[0].mxu0
    %v2376 = vadd.f32 %v2296, %v2375
    %v2377 = vpop.f32.mrb[0].mxu0
    %2378 = vdwg.mxu0
    %v2379 = vadd.f32 %v1163, %v2371
    %v2380 = vadd.f32 %v1164, %v2376
    %v2381 = vsel %vm45, %v2379, 0.0
    %2382 = vadd.xlane.f32.xlu0 %v2381
    %v2383 = vpop.xlane.xlu0 %2382
    %v2384 = vsel %vm45, %v2380, 0.0
    %2385 = vadd.xlane.f32.xlu0 %v2384
    %v2386 = vpop.xlane.xlu0 %2385
    %v2387 = vmul.f32 %v2383, %v52
    %v2388 = vmul.f32 %v2386, %v52
    %v2389 = vsub.f32 %v2379, %v2387
    %v2390 = vsub.f32 %v2380, %v2388
    %v2391 = vmul.f32 %v2389, %v2389
    %v2392 = vmul.f32 %v2390, %v2390
    %v2393 = vsel %vm45, %v2391, 0.0
    %2394 = vadd.xlane.f32.xlu0 %v2393
    %v2395 = vpop.xlane.xlu0 %2394
    %v2396 = vsel %vm45, %v2392, 0.0
    %2397 = vadd.xlane.f32.xlu0 %v2396
    %v2398 = vpop.xlane.xlu0 %2397
    %v2399 = vmul.f32 %v2395, %v65
    %v2400 = vmul.f32 %v2398, %v65
    %v2401 = vrsqrt.pop %v2399
    %v2402 = vmul.f32 %v2399, %v2401
    %vm2403 = vcmp.eq.f32.partialorder %v2399, inf
    %v2404 = vsel %vm2403, %v2399, %v2402
    %vm2405 = vcmp.eq.f32.partialorder %v2399, 0.0
    %v2406 = vand.u32 %v2399, 2147483648
    %v2407 = vsel %vm2405, %v2406, %v2404
    %v2408 = vrsqrt.pop %v2400
    %v2409 = vmul.f32 %v2400, %v2408
    %vm2410 = vcmp.eq.f32.partialorder %v2400, inf
    %v2411 = vsel %vm2410, %v2400, %v2409
    %vm2412 = vcmp.eq.f32.partialorder %v2400, 0.0
    %v2413 = vand.u32 %v2400, 2147483648
    %v2414 = vsel %vm2412, %v2413, %v2411
    %v2415 = vlaneseq
    %v2416 = vshrl.u32 %v2415, 7
    %v2417 = vsub.s32 2, %v2416
    %v2418 = vrot.slane %v41, %v2417
    %v2419 = vmul.f32 %v2418, %v2389
    %v2420 = vmul.f32 %v2418, %v2390
    %v2421 = vadd.f32 %v2407, 1e-06
    %v2422 = vadd.f32 %v2414, 1e-06
    %v2423 = vrcp.pop %v2421
    %v2424 = vrcp.pop %v2422
    %v2425 = vmul.f32 %v2421, %v2423
    %v2426 = vmul.f32 %v2422, %v2424
    %v2427 = vsub.f32 2.0, %v2425
    %v2428 = vsub.f32 2.0, %v2426
    %v2429 = vmul.f32 %v2423, %v2427
    %v2430 = vmul.f32 %v2424, %v2428
    %v2431 = vmul.f32 %v2419, %v2429
    %v2432 = vmul.f32 %v2420, %v2430
    %2434 = vrot.lane.b32.xlu0 %v2418, 96
    %v2435 = vpop.permute.xlu0 %2434
    %v2437 = vadd.f32 %v2431, %v2435
    %v2438 = vadd.f32 %v2432, %v2435
    %v2439 = vlaneseq
    %v2440 = vshrl.u32 %v2439, 7
    %v2441 = vsub.s32 0, %v2440
    %v2442 = vrot.slane %v44, %v2441
    %v2444 = vsel %vm45, %v2437, 0
    %v2447 = vsel %vm45, %v2438, 0
    %2449 = vmatprep.subr.mxu0 0.0
    %2450 = vmatpush1.msra.mxu0 %v29
    %2451 = vmatprep.subr.mxu0 0.0
    %2452 = vmatpush1.msra.mxu0 %v30
    %2453 = vmatprep.subr.mxu0 0.0
    %2454 = vmatpush1.msra.mxu0 %v31
    %2455 = vmatprep.subr.mxu0 0.0
    %2456 = vmatpush1.msra.mxu0 %v32
    %2457 = vmatprep.subr.mxu0 0.0
    %2458 = vmatpush1.msra.mxu0 0.0
    %2459 = vmatprep.subr.mxu0 0.0
    %2460 = vmatpush1.msra.mxu0 0.0
    %2461 = vmatprep.subr.mxu0 0.0
    %2462 = vmatpush1.msra.mxu0 0.0
    %2463 = vmatprep.subr.mxu0 0.0
    %2464 = vmatpush1.msra.mxu0 0.0
    %2465 = vmatprep.subr.mxu0 0.0
    %2466 = vmatpush1.msra.mxu0 0.0
    %2467 = vmatprep.subr.mxu0 0.0
    %2468 = vmatpush1.msra.mxu0 0.0
    %2469 = vmatprep.subr.mxu0 0.0
    %2470 = vmatpush1.msra.mxu0 0.0
    %2471 = vmatprep.subr.mxu0 0.0
    %2472 = vmatpush1.msra.mxu0 0.0
    %2473 = vmatprep.subr.mxu0 0.0
    %2474 = vmatpush1.msra.mxu0 0.0
    %2475 = vmatprep.subr.mxu0 0.0
    %2476 = vmatpush1.msra.mxu0 0.0
    %2477 = vmatprep.subr.mxu0 0.0
    %2478 = vmatpush1.msra.mxu0 0.0
    %2479 = vmatprep.subr.mxu0 0.0
    %2480 = vmatpush1.msra.mxu0 0.0
    %2481 = vmatprep.subr.mxu0 0.0
    %2482 = vmatpush1.msra.mxu0 0.0
    %2483 = vmatprep.subr.mxu0 0.0
    %2484 = vmatpush1.msra.mxu0 0.0
    %2485 = vmatprep.subr.mxu0 0.0
    %2486 = vmatpush1.msra.mxu0 0.0
    %2487 = vmatprep.subr.mxu0 0.0
    %2488 = vmatpush1.msra.mxu0 0.0
    %2489 = vmatprep.subr.mxu0 0.0
    %2490 = vmatpush1.msra.mxu0 0.0
    %2491 = vmatprep.subr.mxu0 0.0
    %2492 = vmatpush1.msra.mxu0 0.0
    %2493 = vmatprep.subr.mxu0 0.0
    %2494 = vmatpush1.msra.mxu0 0.0
    %2495 = vmatprep.subr.mxu0 0.0
    %2496 = vmatpush1.msra.mxu0 0.0
    %2497 = vmatprep.subr.mxu0 0.0
    %2498 = vmatpush1.msra.mxu0 0.0
    %2499 = vmatprep.subr.mxu0 0.0
    %2500 = vmatpush1.msra.mxu0 0.0
    %2501 = vmatprep.subr.mxu0 0.0
    %2502 = vmatpush1.msra.mxu0 0.0
    %2503 = vmatprep.subr.mxu0 0.0
    %2504 = vmatpush1.msra.mxu0 0.0
    %2505 = vmatprep.subr.mxu0 0.0
    %2506 = vmatpush1.msra.mxu0 0.0
    %2507 = vmatprep.subr.mxu0 0.0
    %2508 = vmatpush1.msra.mxu0 0.0
    %2509 = vmatprep.subr.mxu0 0.0
    %2510 = vmatpush1.msra.mxu0 0.0
    %2511 = vmatprep.subr.mxu0 0.0
    %2512 = vmatpush1.msra.mxu0 0.0
    %2513 = vmatprep.mubr.f32.mxu0 0.0
    %2514 = vmatmul.mubr.f32.gmra.mrb[0].mxu0 %v2444
    %v2515 = vpop.f32.mrb[0].mxu0
    %v2516 = vadd.f32 %v2442, %v2515
    %v2517 = vpop.f32.mrb[0].mxu0
    %2518 = vmatprep.mubr.f32.mxu0 0.0
    %2519 = vmatmul.mubr.f32.gmra.mrb[0].mxu0 %v2447
    %v2520 = vpop.f32.mrb[0].mxu0
    %v2521 = vadd.f32 %v2442, %v2520
    %v2522 = vpop.f32.mrb[0].mxu0
    %2523 = vdwg.mxu0
    %v2524 = vmax.f32 %v2516, 0.0
    %v2525 = vmax.f32 %v2521, 0.0
    %vm2526 = vcmask 523264
    %v2528 = vsel %vm2526, %v2524, 0
    %v2531 = vsel %vm2526, %v2525, 0
    %2533 = vmatprep.subr.mxu0 0.0
    %2534 = vmatpush1.msra.mxu0 %v33
    %2535 = vmatprep.subr.mxu0 0.0
    %2536 = vmatpush1.msra.mxu0 %v34
    %2537 = vmatprep.subr.mxu0 0.0
    %2538 = vmatpush1.msra.mxu0 %v35
    %2539 = vmatprep.subr.mxu0 0.0
    %2540 = vmatpush1.msra.mxu0 %v36
    %2541 = vmatprep.subr.mxu0 0.0
    %2542 = vmatpush1.msra.mxu0 %v37
    %2543 = vmatprep.subr.mxu0 0.0
    %2544 = vmatpush1.msra.mxu0 %v38
    %2545 = vmatprep.subr.mxu0 0.0
    %2546 = vmatpush1.msra.mxu0 %v39
    %2547 = vmatprep.subr.mxu0 0.0
    %2548 = vmatpush1.msra.mxu0 %v40
    %2549 = vmatprep.subr.mxu0 0.0
    %2550 = vmatpush1.msra.mxu0 0.0
    %2551 = vmatprep.subr.mxu0 0.0
    %2552 = vmatpush1.msra.mxu0 0.0
    %2553 = vmatprep.subr.mxu0 0.0
    %2554 = vmatpush1.msra.mxu0 0.0
    %2555 = vmatprep.subr.mxu0 0.0
    %2556 = vmatpush1.msra.mxu0 0.0
    %2557 = vmatprep.subr.mxu0 0.0
    %2558 = vmatpush1.msra.mxu0 0.0
    %2559 = vmatprep.subr.mxu0 0.0
    %2560 = vmatpush1.msra.mxu0 0.0
    %2561 = vmatprep.subr.mxu0 0.0
    %2562 = vmatpush1.msra.mxu0 0.0
    %2563 = vmatprep.subr.mxu0 0.0
    %2564 = vmatpush1.msra.mxu0 0.0
    %2565 = vmatprep.subr.mxu0 0.0
    %2566 = vmatpush1.msra.mxu0 0.0
    %2567 = vmatprep.subr.mxu0 0.0
    %2568 = vmatpush1.msra.mxu0 0.0
    %2569 = vmatprep.subr.mxu0 0.0
    %2570 = vmatpush1.msra.mxu0 0.0
    %2571 = vmatprep.subr.mxu0 0.0
    %2572 = vmatpush1.msra.mxu0 0.0
    %2573 = vmatprep.subr.mxu0 0.0
    %2574 = vmatpush1.msra.mxu0 0.0
    %2575 = vmatprep.subr.mxu0 0.0
    %2576 = vmatpush1.msra.mxu0 0.0
    %2577 = vmatprep.subr.mxu0 0.0
    %2578 = vmatpush1.msra.mxu0 0.0
    %2579 = vmatprep.subr.mxu0 0.0
    %2580 = vmatpush1.msra.mxu0 0.0
    %2581 = vmatprep.subr.mxu0 0.0
    %2582 = vmatpush1.msra.mxu0 0.0
    %2583 = vmatprep.subr.mxu0 0.0
    %2584 = vmatpush1.msra.mxu0 0.0
    %2585 = vmatprep.subr.mxu0 0.0
    %2586 = vmatpush1.msra.mxu0 0.0
    %2587 = vmatprep.subr.mxu0 0.0
    %2588 = vmatpush1.msra.mxu0 0.0
    %2589 = vmatprep.subr.mxu0 0.0
    %2590 = vmatpush1.msra.mxu0 0.0
    %2591 = vmatprep.subr.mxu0 0.0
    %2592 = vmatpush1.msra.mxu0 0.0
    %2593 = vmatprep.subr.mxu0 0.0
    %2594 = vmatpush1.msra.mxu0 0.0
    %2595 = vmatprep.subr.mxu0 0.0
    %2596 = vmatpush1.msra.mxu0 0.0
    %2597 = vmatprep.mubr.f32.mxu0 0.0
    %2598 = vmatmul.mubr.f32.gmra.mrb[0].mxu0 %v2528
    %v2599 = vpop.f32.mrb[0].mxu0
    %v2600 = vadd.f32 0.0, %v2599
    %v2601 = vpop.f32.mrb[0].mxu0
    %2602 = vmatprep.mubr.f32.mxu0 0.0
    %2603 = vmatmul.mubr.f32.gmra.mrb[0].mxu0 %v2531
    %v2604 = vpop.f32.mrb[0].mxu0
    %v2605 = vadd.f32 0.0, %v2604
    %v2606 = vpop.f32.mrb[0].mxu0
    %2607 = vdwg.mxu0
    %v2608 = vadd.f32 %v2379, %v2600
    %v2609 = vadd.f32 %v2380, %v2605
    %2611 = vrot.lane.b32.xlu0 %v2442, 64
    %v2612 = vpop.permute.xlu0 %2611
    %v2614 = vadd.f32 %v2608, %v2612
    %v2615 = vadd.f32 %v2609, %v2612
    %2616 = vst.msk [vmem:[#allocation2] sm:$0xff] %vm45, %v2614
    %2617 = vst.msk [vmem:[#allocation2 + $0x8] sm:$0xff] %vm45, %v2615
    // Predicated region
    $region14: #{decoder_layer.1} parent=1 // pred_check
      _
    $region15: #{decoder_layer.1} parent=1 // pred_check_branch
      %2619 = sbr.rel (0) target = $region17
    $region16: #{decoder_layer.1} parent=1 // pred_region
      %s2621 = ssub.s32 256, 256
      %2622 = vsyncadd [#allocation3], %s2621
      %s2623 = sshll.u32 [#allocation2], 4
      %s2624 = int_to_ptr.vmem [resolvable:$true] %s2623
      %2629 = dma.vmem_to_hbm [thread:$0]  %s2624, 256, %s3, [#allocation3], 128, 128, 8
    $region17: #{decoder_layer.1} parent=1 // pred_fallthru
      _
    // Predicated region
    $region18: #{decoder_layer.1} parent=1 // pred_check
      _
    $region19: #{decoder_layer.1} parent=1 // pred_check_branch
      %2631 = sbr.rel (0) target = $region21
    $region20: #{decoder_layer.1} parent=1 // pred_region
      %2632 = dma.done [#allocation3], 256
    $region21: #{decoder_layer.1} parent=1 // pred_fallthru
      _
    %2633 = vsyncpa [#allocation3], 1

</llo_original>
